<compile_context>
chip_gen: v5e
topology: v5e:2x2
jax: 0.10.0
libtpu: 0.0.40
codegen_flags: <defaults>
</compile_context>

<pallas_src>
import functools
from collections import namedtuple

import jax
import jax.numpy as jnp
from jax.experimental import pallas as pl
from jax.experimental.pallas import tpu as pltpu

EPS = 1e-5
LANE = 128                      # vreg lane width: pad all channel dims to this
ROW_TILE_TARGET = 256           # rows per block (>=256 rows ~ 63-85% of HBM roofline)
ROW_TILE_BUDGET = 8 << 20       # VMEM budget for the double-buffered row tiles
VMEM_LIMIT = 32 * 1024 * 1024   # explicit scoped-VMEM limit (v7x physical = 64 MiB)

ConvConfig = namedtuple(
    "ConvConfig",
    ["in_channels", "out_channels", "k", "s", "p",
     "normalize", "activation", "pooling"])


# ----------------------------------------------------------------------------
# small helpers
# ----------------------------------------------------------------------------
def _pad_to(n, mult):
    return ((n + mult - 1) // mult) * mult


def _pick_row_tile(m, target):
    """Largest row tile <= target that is a multiple of 8 and divides m."""
    if m <= target:
        return m
    t = (target // 8) * 8
    while t >= 8:
        if m % t == 0:
            return t
        t -= 8
    return m                     # fall back to a single full block


# ----------------------------------------------------------------------------
# Pallas kernels
# ----------------------------------------------------------------------------
def _conv1x1_fused_kernel(x_ref, sc_ref, sh_ref, w_ref, y_ref, st_ref, *,
                          apply_in_bn, in_relu):
    # x: (tm, Cin) bf16 -- *raw* previous-layer conv output; the previous layer's
    #    folded BN (scale, shift) + ReLU is applied here (fused, no extra HBM pass).
    # w: (Cin, Cout) bf16 -> y: (tm, Cout) bf16
    # st: (1, 2, Cout) f32 per-tile [sum, sum_sq] partials (this layer's BN stats).
    x = x_ref[...]
    if apply_in_bn:
        xa = x.astype(jnp.float32) * sc_ref[...] + sh_ref[...]
        if in_relu:
            xa = jnp.maximum(xa, 0.0)
        x = xa.astype(jnp.bfloat16)
    y = jnp.dot(x, w_ref[...], preferred_element_type=jnp.float32)
    y_ref[...] = y.astype(y_ref.dtype)
    st = jnp.concatenate([jnp.sum(y, axis=0, keepdims=True),
                          jnp.sum(y * y, axis=0, keepdims=True)], axis=0)
    st_ref[...] = st.reshape(1, 2, -1)


def _conv3x3_fused_kernel(x_ref, sc_ref, sh_ref, w_ref, y_ref, st_ref, *,
                          ho, wo, pad, apply_in_bn, in_relu):
    # x: (1, ho+2, wo+2, Cin) bf16 -- zero-padded *raw* previous-layer conv output
    #    (one image).  The previous layer's folded BN + ReLU is applied in-kernel
    #    and the halo is re-zeroed (zero-padding of the post-BN activation).
    # w: (9, Cin, Cout) bf16 -> y: (1, ho, wo, Cout) bf16, st: (1, 2, Cout) f32
    # 9-tap in-kernel accumulation: shifted views of the haloed block, no im2col.
    cout = w_ref.shape[-1]
    hp, wp = ho + 2, wo + 2
    cin = x_ref.shape[-1]
    xa = x_ref[0].astype(jnp.float32)            # 32-bit layout for cheap slicing
    if apply_in_bn:
        xa = xa * sc_ref[...] + sh_ref[...]
        if in_relu:
            xa = jnp.maximum(xa, 0.0)
        if pad:
            # re-zero the halo: BN/ReLU of a zero pad is not zero in general
            row = jax.lax.broadcasted_iota(jnp.int32, (hp, wp, cin), 0)
            col = jax.lax.broadcasted_iota(jnp.int32, (hp, wp, cin), 1)
            interior = ((row >= pad) & (row < hp - pad)
                        & (col >= pad) & (col < wp - pad))
            xa = jnp.where(interior, xa, 0.0)
    acc = jnp.zeros((ho * wo, cout), jnp.float32)
    for ky in range(3):
        for kx in range(3):
            patch = xa[ky:ky + ho, kx:kx + wo, :].reshape(ho * wo, -1)
            acc = acc + jnp.dot(patch.astype(jnp.bfloat16),
                                w_ref[ky * 3 + kx],
                                preferred_element_type=jnp.float32)
    y_ref[...] = acc.reshape(1, ho, wo, cout).astype(y_ref.dtype)
    st = jnp.concatenate([jnp.sum(acc, axis=0, keepdims=True),
                          jnp.sum(acc * acc, axis=0, keepdims=True)], axis=0)
    st_ref[...] = st.reshape(1, 2, -1)


def _bn_act_kernel(y_ref, sc_ref, sh_ref, o_ref, *, relu):
    # Folded BN: one multiply-add per element (+ optional ReLU).  Only used for
    # the final layer (also performs the bf16 -> f32 output cast).
    y = y_ref[...].astype(jnp.float32)
    o = y * sc_ref[...] + sh_ref[...]
    if relu:
        o = jnp.maximum(o, 0.0)
    o_ref[...] = o.astype(o_ref.dtype)


# ----------------------------------------------------------------------------
# pallas_call wrappers
# ----------------------------------------------------------------------------
def _conv1x1_fused(x_rows, scale_in, shift_in, w, *, apply_in_bn, in_relu):
    m, cin = x_rows.shape
    cout = w.shape[1]
    bytes_per_row = 2 * 2 * (cin + cout)            # 2 bf16 blocks, double-buffered
    cap = max(8, ROW_TILE_BUDGET // bytes_per_row)
    tm = _pick_row_tile(m, min(ROW_TILE_TARGET, cap))
    grid = (m // tm,)
    kern = functools.partial(_conv1x1_fused_kernel,
                             apply_in_bn=apply_in_bn, in_relu=in_relu)
    return pl.pallas_call(
        kern,
        grid=grid,
        in_specs=[pl.BlockSpec((tm, cin), lambda i: (i, 0)),
                  pl.BlockSpec((1, cin), lambda i: (0, 0)),
                  pl.BlockSpec((1, cin), lambda i: (0, 0)),
                  pl.BlockSpec((cin, cout), lambda i: (0, 0))],
        out_specs=[pl.BlockSpec((tm, cout), lambda i: (i, 0)),
                   pl.BlockSpec((1, 2, cout), lambda i: (i, 0, 0))],
        out_shape=[jax.ShapeDtypeStruct((m, cout), jnp.bfloat16),
                   jax.ShapeDtypeStruct((grid[0], 2, cout), jnp.float32)],
        compiler_params=pltpu.CompilerParams(
            dimension_semantics=("parallel",),
            vmem_limit_bytes=VMEM_LIMIT),
        cost_estimate=pl.CostEstimate(
            flops=2 * m * cin * cout + (4 * m * cin if apply_in_bn else 0),
            transcendentals=0,
            bytes_accessed=2 * (m * cin + m * cout + cin * cout)),
    )(x_rows, scale_in, shift_in, w)


def _conv3x3_fused(xpad, scale_in, shift_in, w9, *, pad, apply_in_bn, in_relu):
    # TODO(synk): for very large spatial sizes this per-image block should become
    # row-block tiling with a manual halo DMA (pl.ANY + make_async_copy).
    n, hp, wp, cin = xpad.shape
    ho, wo = hp - 2, wp - 2
    cout = w9.shape[-1]
    kern = functools.partial(_conv3x3_fused_kernel, ho=ho, wo=wo, pad=pad,
                             apply_in_bn=apply_in_bn, in_relu=in_relu)
    return pl.pallas_call(
        kern,
        grid=(n,),
        in_specs=[pl.BlockSpec((1, hp, wp, cin), lambda i: (i, 0, 0, 0)),
                  pl.BlockSpec((1, cin), lambda i: (0, 0)),
                  pl.BlockSpec((1, cin), lambda i: (0, 0)),
                  pl.BlockSpec((9, cin, cout), lambda i: (0, 0, 0))],
        out_specs=[pl.BlockSpec((1, ho, wo, cout), lambda i: (i, 0, 0, 0)),
                   pl.BlockSpec((1, 2, cout), lambda i: (i, 0, 0))],
        out_shape=[jax.ShapeDtypeStruct((n, ho, wo, cout), jnp.bfloat16),
                   jax.ShapeDtypeStruct((n, 2, cout), jnp.float32)],
        compiler_params=pltpu.CompilerParams(
            dimension_semantics=("parallel",),
            vmem_limit_bytes=VMEM_LIMIT),
        cost_estimate=pl.CostEstimate(
            flops=2 * n * ho * wo * 9 * cin * cout
                  + (4 * n * hp * wp * cin if apply_in_bn else 0),
            transcendentals=0,
            bytes_accessed=2 * (n * hp * wp * cin + n * ho * wo * cout
                                + 9 * cin * cout)),
    )(xpad, scale_in, shift_in, w9)


def _bn_act(y_rows, scale, shift, *, relu, out_dtype):
    m, c = y_rows.shape
    out_bytes = jnp.dtype(out_dtype).itemsize
    bytes_per_row = 2 * c * (2 + out_bytes)
    cap = max(8, ROW_TILE_BUDGET // bytes_per_row)
    tm = _pick_row_tile(m, min(ROW_TILE_TARGET, cap))
    grid = (m // tm,)
    kern = functools.partial(_bn_act_kernel, relu=relu)
    return pl.pallas_call(
        kern,
        grid=grid,
        in_specs=[pl.BlockSpec((tm, c), lambda i: (i, 0)),
                  pl.BlockSpec((1, c), lambda i: (0, 0)),
                  pl.BlockSpec((1, c), lambda i: (0, 0))],
        out_specs=pl.BlockSpec((tm, c), lambda i: (i, 0)),
        out_shape=jax.ShapeDtypeStruct((m, c), out_dtype),
        compiler_params=pltpu.CompilerParams(
            dimension_semantics=("parallel",),
            vmem_limit_bytes=VMEM_LIMIT),
        cost_estimate=pl.CostEstimate(
            flops=3 * m * c,
            transcendentals=0,
            bytes_accessed=m * c * (2 + out_bytes)),
    )(y_rows, scale, shift)


# ----------------------------------------------------------------------------
# layer / network drivers (plain-JAX glue around the kernels)
# ----------------------------------------------------------------------------
def _prep_layer_weights(w, gamma, beta, k):
    """PyTorch OIHW weight -> lane-padded bf16 matmul weight (+ padded gamma/beta)."""
    cout, cin = w.shape[0], w.shape[1]
    cin_p, cout_p = _pad_to(cin, LANE), _pad_to(cout, LANE)
    if k == 1:
        wk = jnp.zeros((cin_p, cout_p), jnp.float32).at[:cin, :cout].set(
            w[:, :, 0, 0].T)
    else:
        w9 = jnp.transpose(w, (2, 3, 1, 0)).reshape(k * k, cin, cout)
        wk = jnp.zeros((k * k, cin_p, cout_p), jnp.float32).at[:, :cin, :cout].set(w9)
    g = jnp.ones((cout_p,), jnp.float32).at[:cout].set(gamma)
    b = jnp.zeros((cout_p,), jnp.float32).at[:cout].set(beta)
    return wk.astype(jnp.bfloat16), g, b


def _conv_layer(a, wk, *, k, s, p, in_scale, in_shift, in_apply, in_relu):
    """Conv of this layer; the *previous* layer's folded BN/ReLU is applied to the
    input inside the kernel.  Returns raw conv output (n, ho, wo, cout_p) bf16 and
    global per-channel [sum, sum_sq] for this layer's BN."""
    n, _, _, cin_p = a.shape
    if k == 1:
        if p:
            raise NotImplementedError("1x1 conv with padding")
        if s > 1:
            a = a[:, ::s, ::s, :]       # stride of a 1x1 conv == spatial subsample
        n, ho, wo, _ = a.shape
        y_rows, stats = _conv1x1_fused(a.reshape(n * ho * wo, cin_p),
                                       in_scale, in_shift, wk,
                                       apply_in_bn=in_apply, in_relu=in_relu)
        y = y_rows.reshape(n, ho, wo, y_rows.shape[-1])
    elif k == 3:
        # TODO(synk): strided / oddly-padded 3x3 convs (halo + stride tiling) are not
        # implemented here; the demo config downsamples with a strided 1x1 conv.
        if s != 1 or p != 1:
            raise NotImplementedError("only stride=1, padding=1 3x3 convs")
        xp = jnp.pad(a, ((0, 0), (p, p), (p, p), (0, 0)))
        y, stats = _conv3x3_fused(xp, in_scale, in_shift, wk, pad=p,
                                  apply_in_bn=in_apply, in_relu=in_relu)
    else:
        raise NotImplementedError(f"kernel size {k}")
    tot = jnp.sum(stats, axis=0)                      # (2, cout_p) global partial sum
    return y, tot


def basic_convnet_forward(x_nchw, params, cfg, output_shape=None, image_shape=None):
    """Pallas forward of BasicConvNet (conv[+BN][+ReLU] per layer, sequential)."""
    n = x_nchw.shape[0]
    a = jnp.transpose(x_nchw, (0, 2, 3, 1)).astype(jnp.float32)   # single NCHW->NHWC relayout
    cin0 = a.shape[-1]
    pad_c = _pad_to(cin0, LANE) - cin0
    if pad_c:
        a = jnp.pad(a, ((0, 0), (0, 0), (0, 0), (0, pad_c)))
    a = a.astype(jnp.bfloat16)

    # Pending per-channel transform of the *previous* layer (folded BN + ReLU),
    # applied lazily inside the next conv kernel to save an HBM roundtrip.
    pend_scale = jnp.ones((1, a.shape[-1]), jnp.float32)
    pend_shift = jnp.zeros((1, a.shape[-1]), jnp.float32)
    pend_apply = False
    pend_relu = False

    n_layers = len(cfg.in_channels)
    for idx in range(n_layers):
        wk, g, b = _prep_layer_weights(params[idx]["w"], params[idx]["gamma"],
                                       params[idx]["beta"], cfg.k[idx])
        y, tot = _conv_layer(
            a, wk, k=cfg.k[idx], s=cfg.s[idx], p=cfg.p[idx],
            in_scale=pend_scale, in_shift=pend_shift,
            in_apply=pend_apply, in_relu=pend_relu)
        nb, ho, wo, cout_p = y.shape
        m = nb * ho * wo
        if cfg.normalize[idx]:
            # Global (not per-tile!) BN statistics: reduce the per-tile partials,
            # then fold into one per-channel scale/shift.
            mean = tot[0] / m
            var = jnp.maximum(tot[1] / m - mean * mean, 0.0)
            scale = g * jax.lax.rsqrt(var + EPS)
            shift = b - mean * scale
            has_bn = True
        else:
            scale = jnp.ones((cout_p,), jnp.float32)
            shift = jnp.zeros((cout_p,), jnp.float32)
            has_bn = False
        pend_relu = (cfg.activation[idx] == "relu")
        pend_apply = has_bn or pend_relu
        pend_scale = scale.reshape(1, -1)
        pend_shift = shift.reshape(1, -1)
        a = y
        if cfg.pooling[idx]:
            # TODO(synk): pooling layers are not implemented in this Pallas port
            # (the demo config uses pooling=None everywhere).
            raise NotImplementedError("pooling not implemented")

    # Materialize the final pending BN/ReLU (also casts bf16 -> f32).
    nb, ho, wo, cout_p = a.shape
    out_rows = _bn_act(a.reshape(nb * ho * wo, cout_p), pend_scale, pend_shift,
                       relu=pend_relu, out_dtype=jnp.float32)
    a = out_rows.reshape(nb, ho, wo, cout_p)

    out = a[..., :cfg.out_channels[-1]]                 # drop lane padding
    out = jnp.transpose(out, (0, 3, 1, 2))              # NHWC -> NCHW
    if output_shape == "image":
        out = out.reshape(n, *image_shape)
    return out


# ----------------------------------------------------------------------------
# Pure-JAX f32 reference (mirrors the PyTorch semantics) for validation
# ----------------------------------------------------------------------------
def basic_convnet_reference(x, params, cfg, output_shape=None, image_shape=None):
    y = x
    for idx in range(len(cfg.in_channels)):
        p = params[idx]
        pad = cfg.p[idx]
        y = jax.lax.conv_general_dilated(
            y, p["w"], (cfg.s[idx], cfg.s[idx]), [(pad, pad), (pad, pad)],
            dimension_numbers=("NCHW", "OIHW", "NCHW"),
            precision=jax.lax.Precision.HIGHEST)
        if cfg.normalize[idx]:
            mean = y.mean(axis=(0, 2, 3), keepdims=True)
            var = jnp.square(y - mean).mean(axis=(0, 2, 3), keepdims=True)
            y = (y - mean) * jax.lax.rsqrt(var + EPS)
            y = (y * p["gamma"][None, :, None, None]
                 + p["beta"][None, :, None, None])
        if cfg.activation[idx] == "relu":
            y = jax.nn.relu(y)
    if output_shape == "image":
        y = y.reshape(x.shape[0], *image_shape)
    return y


def make_params(key, cfg):
    params = []
    for idx in range(len(cfg.in_channels)):
        key, sub = jax.random.split(key)
        cin, cout, k = cfg.in_channels[idx], cfg.out_channels[idx], cfg.k[idx]
        fan_in = cin * k * k
        w = (jax.random.normal(sub, (cout, cin, k, k), jnp.float32)
             * (2.0 / fan_in) ** 0.5)
        # keep weights bf16-representable so the f32 reference and the bf16-MXU
        # kernels see bit-identical parameters
        w = w.astype(jnp.bfloat16).astype(jnp.float32)
        params.append({"w": w,
                       "gamma": jnp.ones((cout,), jnp.float32),
                       "beta": jnp.zeros((cout,), jnp.float32)})
    return params


# ----------------------------------------------------------------------------
if __name__ == "__main__":
    # Small BasicConvNet: two stride-1 3x3 conv+BN+ReLU layers followed by a
    # strided 1x1 conv+BN+ReLU downsample.  (Conv bias omitted: it cancels exactly
    # under training-mode BN.)
    CONV_CONFIG = ConvConfig(
        in_channels=(4, 32, 64),
        out_channels=(32, 64, 64),
        k=(3, 3, 1),
        s=(1, 1, 2),
        p=(1, 1, 0),
        normalize=(True, True, True),
        activation=("relu", "relu", "relu"),
        pooling=(None, None, None))

    key = jax.random.PRNGKey(0)
    k_x, k_p = jax.random.split(key)
    N, CIN, H, W = 2, 4, 16, 16

    x = jax.random.normal(k_x, (N, CIN, H, W), jnp.float32)
    x = x.astype(jnp.bfloat16).astype(jnp.float32)      # bf16-representable input
    params = make_params(k_p, CONV_CONFIG)

    fwd = jax.jit(lambda xv, pv: basic_convnet_forward(xv, pv, CONV_CONFIG))
    out = jax.block_until_ready(fwd(x, params))

    ref = basic_convnet_reference(x, params, CONV_CONFIG)
    assert out.shape == (N, CONV_CONFIG.out_channels[-1], H // 2, W // 2), out.shape
    max_err = float(jnp.max(jnp.abs(out - ref)))
    rel_err = float(jnp.linalg.norm(out - ref) / jnp.linalg.norm(ref))
    assert max_err < 1e-1 and rel_err < 3e-2, (max_err, rel_err)
    print("KERNEL_OK")
</pallas_src>

<mosaic_0001>
module attributes {stable_mosaic.version = 11 : i64} {
  func.func @_conv3x3_fused_kernel(%arg0: i32, %arg1: memref<1x18x18x128xbf16, #tpu.memory_space<vmem>>, %arg2: memref<1x128xf32, #tpu.memory_space<vmem>>, %arg3: memref<1x128xf32, #tpu.memory_space<vmem>>, %arg4: memref<9x128x128xbf16, #tpu.memory_space<vmem>>, %arg5: memref<1x16x16x128xbf16, #tpu.memory_space<vmem>>, %arg6: memref<1x2x128xf32, #tpu.memory_space<vmem>>) attributes {dimension_semantics = [#tpu.dimension_semantics<parallel>], iteration_bounds = array<i64: 2>, scalar_prefetch = 0 : i64, scratch_operands = 0 : i64, tpu.core_type = #tpu.core_type<tc>, window_params = [{transform_indices = @transform_0, window_bounds = array<i64: 1, 18, 18, 128>}, {pipeline_mode = #tpu.pipeline_mode<synchronous>, transform_indices = @transform_1, window_bounds = array<i64: 1, 128>}, {pipeline_mode = #tpu.pipeline_mode<synchronous>, transform_indices = @transform_2, window_bounds = array<i64: 1, 128>}, {pipeline_mode = #tpu.pipeline_mode<synchronous>, transform_indices = @transform_3, window_bounds = array<i64: 9, 128, 128>}, {transform_indices = @transform_4, window_bounds = array<i64: 1, 16, 16, 128>}, {transform_indices = @transform_5, window_bounds = array<i64: 1, 2, 128>}]} {
    %c0 = arith.constant 0 : index
    %c0_0 = arith.constant 0 : index
    %c0_1 = arith.constant 0 : index
    %c0_2 = arith.constant 0 : index
    %0 = vector.load %arg1[%c0, %c0_0, %c0_1, %c0_2] : memref<1x18x18x128xbf16, #tpu.memory_space<vmem>>, vector<1x18x18x128xbf16>
    %1 = vector.shape_cast %0 : vector<1x18x18x128xbf16> to vector<18x18x128xbf16>
    %2 = arith.extf %1 : vector<18x18x128xbf16> to vector<18x18x128xf32>
    %c0_3 = arith.constant 0 : index
    %c0_4 = arith.constant 0 : index
    %3 = vector.load %arg2[%c0_3, %c0_4] : memref<1x128xf32, #tpu.memory_space<vmem>>, vector<1x128xf32>
    %4 = vector.shape_cast %3 : vector<1x128xf32> to vector<1x1x128xf32>
    %5 = vector.broadcast %4 : vector<1x1x128xf32> to vector<18x18x128xf32>
    %6 = arith.mulf %2, %5 : vector<18x18x128xf32>
    %c0_5 = arith.constant 0 : index
    %c0_6 = arith.constant 0 : index
    %7 = vector.load %arg3[%c0_5, %c0_6] : memref<1x128xf32, #tpu.memory_space<vmem>>, vector<1x128xf32>
    %8 = vector.shape_cast %7 : vector<1x128xf32> to vector<1x1x128xf32>
    %9 = vector.broadcast %8 : vector<1x1x128xf32> to vector<18x18x128xf32>
    %10 = arith.addf %6, %9 : vector<18x18x128xf32>
    %cst = arith.constant 0.000000e+00 : f32
    %11 = vector.broadcast %cst : f32 to vector<18x18x128xf32>
    %12 = arith.maximumf %10, %11 : vector<18x18x128xf32>
    %13 = tpu.iota {dimensions = array<i32: 0>} : vector<18x18x128xi32>
    %14 = tpu.iota {dimensions = array<i32: 1>} : vector<18x18x128xi32>
    %c1_i32 = arith.constant 1 : i32
    %15 = vector.broadcast %c1_i32 : i32 to vector<18x18x128xi32>
    %16 = arith.cmpi sge, %13, %15 : vector<18x18x128xi32>
    %c17_i32 = arith.constant 17 : i32
    %17 = vector.broadcast %c17_i32 : i32 to vector<18x18x128xi32>
    %18 = arith.cmpi slt, %13, %17 : vector<18x18x128xi32>
    %19 = arith.andi %16, %18 : vector<18x18x128xi1>
    %c1_i32_7 = arith.constant 1 : i32
    %20 = vector.broadcast %c1_i32_7 : i32 to vector<18x18x128xi32>
    %21 = arith.cmpi sge, %14, %20 : vector<18x18x128xi32>
    %22 = arith.andi %19, %21 : vector<18x18x128xi1>
    %c17_i32_8 = arith.constant 17 : i32
    %23 = vector.broadcast %c17_i32_8 : i32 to vector<18x18x128xi32>
    %24 = arith.cmpi slt, %14, %23 : vector<18x18x128xi32>
    %25 = arith.andi %22, %24 : vector<18x18x128xi1>
    %cst_9 = arith.constant 0.000000e+00 : f32
    %26 = vector.broadcast %cst_9 : f32 to vector<18x18x128xf32>
    %27 = arith.select %25, %12, %26 : vector<18x18x128xi1>, vector<18x18x128xf32>
    %cst_10 = arith.constant 0.000000e+00 : f32
    %28 = vector.broadcast %cst_10 : f32 to vector<256x128xf32>
    %29 = vector.extract_strided_slice %27 {offsets = [0, 0, 0], sizes = [16, 16, 128], strides = [1, 1, 1]} : vector<18x18x128xf32> to vector<16x16x128xf32>
    %30 = vector.shape_cast %29 : vector<16x16x128xf32> to vector<256x128xf32>
    %31 = arith.truncf %30 : vector<256x128xf32> to vector<256x128xbf16>
    %c0_11 = arith.constant 0 : index
    %c0_12 = arith.constant 0 : index
    %c0_13 = arith.constant 0 : index
    %32 = vector.load %arg4[%c0_11, %c0_12, %c0_13] : memref<9x128x128xbf16, #tpu.memory_space<vmem>>, vector<1x128x128xbf16>
    %33 = vector.shape_cast %32 : vector<1x128x128xbf16> to vector<128x128xbf16>
    %cst_14 = arith.constant dense<0.000000e+00> : vector<256x128xf32>
    %34 = tpu.matmul %31, %33, %cst_14 {dimension_numbers = #tpu.dot_dimension_numbers<[1], [0], [0], [1], [0, 0, 1, 1], [], []>} : vector<256x128xbf16>, vector<128x128xbf16>, vector<256x128xf32> -> vector<256x128xf32>
    %35 = arith.addf %28, %34 : vector<256x128xf32>
    %36 = vector.extract_strided_slice %27 {offsets = [0, 1, 0], sizes = [16, 16, 128], strides = [1, 1, 1]} : vector<18x18x128xf32> to vector<16x16x128xf32>
    %37 = vector.shape_cast %36 : vector<16x16x128xf32> to vector<256x128xf32>
    %38 = arith.truncf %37 : vector<256x128xf32> to vector<256x128xbf16>
    %c1 = arith.constant 1 : index
    %c0_15 = arith.constant 0 : index
    %c0_16 = arith.constant 0 : index
    %39 = vector.load %arg4[%c1, %c0_15, %c0_16] : memref<9x128x128xbf16, #tpu.memory_space<vmem>>, vector<1x128x128xbf16>
    %40 = vector.shape_cast %39 : vector<1x128x128xbf16> to vector<128x128xbf16>
    %cst_17 = arith.constant dense<0.000000e+00> : vector<256x128xf32>
    %41 = tpu.matmul %38, %40, %cst_17 {dimension_numbers = #tpu.dot_dimension_numbers<[1], [0], [0], [1], [0, 0, 1, 1], [], []>} : vector<256x128xbf16>, vector<128x128xbf16>, vector<256x128xf32> -> vector<256x128xf32>
    %42 = arith.addf %35, %41 : vector<256x128xf32>
    %43 = vector.extract_strided_slice %27 {offsets = [0, 2, 0], sizes = [16, 16, 128], strides = [1, 1, 1]} : vector<18x18x128xf32> to vector<16x16x128xf32>
    %44 = vector.shape_cast %43 : vector<16x16x128xf32> to vector<256x128xf32>
    %45 = arith.truncf %44 : vector<256x128xf32> to vector<256x128xbf16>
    %c2 = arith.constant 2 : index
    %c0_18 = arith.constant 0 : index
    %c0_19 = arith.constant 0 : index
    %46 = vector.load %arg4[%c2, %c0_18, %c0_19] : memref<9x128x128xbf16, #tpu.memory_space<vmem>>, vector<1x128x128xbf16>
    %47 = vector.shape_cast %46 : vector<1x128x128xbf16> to vector<128x128xbf16>
    %cst_20 = arith.constant dense<0.000000e+00> : vector<256x128xf32>
    %48 = tpu.matmul %45, %47, %cst_20 {dimension_numbers = #tpu.dot_dimension_numbers<[1], [0], [0], [1], [0, 0, 1, 1], [], []>} : vector<256x128xbf16>, vector<128x128xbf16>, vector<256x128xf32> -> vector<256x128xf32>
    %49 = arith.addf %42, %48 : vector<256x128xf32>
    %50 = vector.extract_strided_slice %27 {offsets = [1, 0, 0], sizes = [16, 16, 128], strides = [1, 1, 1]} : vector<18x18x128xf32> to vector<16x16x128xf32>
    %51 = vector.shape_cast %50 : vector<16x16x128xf32> to vector<256x128xf32>
    %52 = arith.truncf %51 : vector<256x128xf32> to vector<256x128xbf16>
    %c3 = arith.constant 3 : index
    %c0_21 = arith.constant 0 : index
    %c0_22 = arith.constant 0 : index
    %53 = vector.load %arg4[%c3, %c0_21, %c0_22] : memref<9x128x128xbf16, #tpu.memory_space<vmem>>, vector<1x128x128xbf16>
    %54 = vector.shape_cast %53 : vector<1x128x128xbf16> to vector<128x128xbf16>
    %cst_23 = arith.constant dense<0.000000e+00> : vector<256x128xf32>
    %55 = tpu.matmul %52, %54, %cst_23 {dimension_numbers = #tpu.dot_dimension_numbers<[1], [0], [0], [1], [0, 0, 1, 1], [], []>} : vector<256x128xbf16>, vector<128x128xbf16>, vector<256x128xf32> -> vector<256x128xf32>
    %56 = arith.addf %49, %55 : vector<256x128xf32>
    %57 = vector.extract_strided_slice %27 {offsets = [1, 1, 0], sizes = [16, 16, 128], strides = [1, 1, 1]} : vector<18x18x128xf32> to vector<16x16x128xf32>
    %58 = vector.shape_cast %57 : vector<16x16x128xf32> to vector<256x128xf32>
    %59 = arith.truncf %58 : vector<256x128xf32> to vector<256x128xbf16>
    %c4 = arith.constant 4 : index
    %c0_24 = arith.constant 0 : index
    %c0_25 = arith.constant 0 : index
    %60 = vector.load %arg4[%c4, %c0_24, %c0_25] : memref<9x128x128xbf16, #tpu.memory_space<vmem>>, vector<1x128x128xbf16>
    %61 = vector.shape_cast %60 : vector<1x128x128xbf16> to vector<128x128xbf16>
    %cst_26 = arith.constant dense<0.000000e+00> : vector<256x128xf32>
    %62 = tpu.matmul %59, %61, %cst_26 {dimension_numbers = #tpu.dot_dimension_numbers<[1], [0], [0], [1], [0, 0, 1, 1], [], []>} : vector<256x128xbf16>, vector<128x128xbf16>, vector<256x128xf32> -> vector<256x128xf32>
    %63 = arith.addf %56, %62 : vector<256x128xf32>
    %64 = vector.extract_strided_slice %27 {offsets = [1, 2, 0], sizes = [16, 16, 128], strides = [1, 1, 1]} : vector<18x18x128xf32> to vector<16x16x128xf32>
    %65 = vector.shape_cast %64 : vector<16x16x128xf32> to vector<256x128xf32>
    %66 = arith.truncf %65 : vector<256x128xf32> to vector<256x128xbf16>
    %c5 = arith.constant 5 : index
    %c0_27 = arith.constant 0 : index
    %c0_28 = arith.constant 0 : index
    %67 = vector.load %arg4[%c5, %c0_27, %c0_28] : memref<9x128x128xbf16, #tpu.memory_space<vmem>>, vector<1x128x128xbf16>
    %68 = vector.shape_cast %67 : vector<1x128x128xbf16> to vector<128x128xbf16>
    %cst_29 = arith.constant dense<0.000000e+00> : vector<256x128xf32>
    %69 = tpu.matmul %66, %68, %cst_29 {dimension_numbers = #tpu.dot_dimension_numbers<[1], [0], [0], [1], [0, 0, 1, 1], [], []>} : vector<256x128xbf16>, vector<128x128xbf16>, vector<256x128xf32> -> vector<256x128xf32>
    %70 = arith.addf %63, %69 : vector<256x128xf32>
    %71 = vector.extract_strided_slice %27 {offsets = [2, 0, 0], sizes = [16, 16, 128], strides = [1, 1, 1]} : vector<18x18x128xf32> to vector<16x16x128xf32>
    %72 = vector.shape_cast %71 : vector<16x16x128xf32> to vector<256x128xf32>
    %73 = arith.truncf %72 : vector<256x128xf32> to vector<256x128xbf16>
    %c6 = arith.constant 6 : index
    %c0_30 = arith.constant 0 : index
    %c0_31 = arith.constant 0 : index
    %74 = vector.load %arg4[%c6, %c0_30, %c0_31] : memref<9x128x128xbf16, #tpu.memory_space<vmem>>, vector<1x128x128xbf16>
    %75 = vector.shape_cast %74 : vector<1x128x128xbf16> to vector<128x128xbf16>
    %cst_32 = arith.constant dense<0.000000e+00> : vector<256x128xf32>
    %76 = tpu.matmul %73, %75, %cst_32 {dimension_numbers = #tpu.dot_dimension_numbers<[1], [0], [0], [1], [0, 0, 1, 1], [], []>} : vector<256x128xbf16>, vector<128x128xbf16>, vector<256x128xf32> -> vector<256x128xf32>
    %77 = arith.addf %70, %76 : vector<256x128xf32>
    %78 = vector.extract_strided_slice %27 {offsets = [2, 1, 0], sizes = [16, 16, 128], strides = [1, 1, 1]} : vector<18x18x128xf32> to vector<16x16x128xf32>
    %79 = vector.shape_cast %78 : vector<16x16x128xf32> to vector<256x128xf32>
    %80 = arith.truncf %79 : vector<256x128xf32> to vector<256x128xbf16>
    %c7 = arith.constant 7 : index
    %c0_33 = arith.constant 0 : index
    %c0_34 = arith.constant 0 : index
    %81 = vector.load %arg4[%c7, %c0_33, %c0_34] : memref<9x128x128xbf16, #tpu.memory_space<vmem>>, vector<1x128x128xbf16>
    %82 = vector.shape_cast %81 : vector<1x128x128xbf16> to vector<128x128xbf16>
    %cst_35 = arith.constant dense<0.000000e+00> : vector<256x128xf32>
    %83 = tpu.matmul %80, %82, %cst_35 {dimension_numbers = #tpu.dot_dimension_numbers<[1], [0], [0], [1], [0, 0, 1, 1], [], []>} : vector<256x128xbf16>, vector<128x128xbf16>, vector<256x128xf32> -> vector<256x128xf32>
    %84 = arith.addf %77, %83 : vector<256x128xf32>
    %85 = vector.extract_strided_slice %27 {offsets = [2, 2, 0], sizes = [16, 16, 128], strides = [1, 1, 1]} : vector<18x18x128xf32> to vector<16x16x128xf32>
    %86 = vector.shape_cast %85 : vector<16x16x128xf32> to vector<256x128xf32>
    %87 = arith.truncf %86 : vector<256x128xf32> to vector<256x128xbf16>
    %c8 = arith.constant 8 : index
    %c0_36 = arith.constant 0 : index
    %c0_37 = arith.constant 0 : index
    %88 = vector.load %arg4[%c8, %c0_36, %c0_37] : memref<9x128x128xbf16, #tpu.memory_space<vmem>>, vector<1x128x128xbf16>
    %89 = vector.shape_cast %88 : vector<1x128x128xbf16> to vector<128x128xbf16>
    %cst_38 = arith.constant dense<0.000000e+00> : vector<256x128xf32>
    %90 = tpu.matmul %87, %89, %cst_38 {dimension_numbers = #tpu.dot_dimension_numbers<[1], [0], [0], [1], [0, 0, 1, 1], [], []>} : vector<256x128xbf16>, vector<128x128xbf16>, vector<256x128xf32> -> vector<256x128xf32>
    %91 = arith.addf %84, %90 : vector<256x128xf32>
    %92 = vector.shape_cast %91 : vector<256x128xf32> to vector<1x16x16x128xf32>
    %93 = arith.truncf %92 : vector<1x16x16x128xf32> to vector<1x16x16x128xbf16>
    %c0_39 = arith.constant 0 : index
    %c0_40 = arith.constant 0 : index
    %c0_41 = arith.constant 0 : index
    %c0_42 = arith.constant 0 : index
    %94 = vector.load %arg5[%c0_39, %c0_40, %c0_41, %c0_42] : memref<1x16x16x128xbf16, #tpu.memory_space<vmem>>, vector<1x16x16x128xbf16>
    tpu.vector_store %arg5[%c0_39, %c0_40, %c0_41, %c0_42], %93 {strides = array<i32>} : memref<1x16x16x128xbf16, #tpu.memory_space<vmem>>, vector<1x16x16x128xbf16>,
    %cst_43 = arith.constant dense<0.000000e+00> : vector<128xf32>
    %95 = vector.multi_reduction <add>, %91, %cst_43 [0] : vector<256x128xf32> to vector<128xf32>
    %96 = vector.shape_cast %95 : vector<128xf32> to vector<1x128xf32>
    %97 = arith.mulf %91, %91 : vector<256x128xf32>
    %cst_44 = arith.constant dense<0.000000e+00> : vector<128xf32>
    %98 = vector.multi_reduction <add>, %97, %cst_44 [0] : vector<256x128xf32> to vector<128xf32>
    %99 = vector.shape_cast %98 : vector<128xf32> to vector<1x128xf32>
    %100 = tpu.concatenate %96, %99 in 0 : vector<1x128xf32>, vector<1x128xf32> -> vector<2x128xf32>
    %101 = vector.shape_cast %100 : vector<2x128xf32> to vector<1x2x128xf32>
    %c0_45 = arith.constant 0 : index
    %c0_46 = arith.constant 0 : index
    %c0_47 = arith.constant 0 : index
    %102 = vector.load %arg6[%c0_45, %c0_46, %c0_47] : memref<1x2x128xf32, #tpu.memory_space<vmem>>, vector<1x2x128xf32>
    tpu.vector_store %arg6[%c0_45, %c0_46, %c0_47], %101 {strides = array<i32>} : memref<1x2x128xf32, #tpu.memory_space<vmem>>, vector<1x2x128xf32>,
    return
  }
  func.func @transform_0(%arg0: i32) -> (i32, i32, i32, i32) {
    %c0_i32 = arith.constant 0 : i32
    %c0_i32_0 = arith.constant 0 : i32
    %c0_i32_1 = arith.constant 0 : i32
    %c0_i32_2 = arith.constant 0 : i32
    return %arg0, %c0_i32, %c0_i32_0, %c0_i32_1 : i32, i32, i32, i32
  }
  func.func @transform_1(%arg0: i32) -> (i32, i32) {
    %c0_i32 = arith.constant 0 : i32
    %c0_i32_0 = arith.constant 0 : i32
    %c0_i32_1 = arith.constant 0 : i32
    return %c0_i32, %c0_i32_0 : i32, i32
  }
  func.func @transform_2(%arg0: i32) -> (i32, i32) {
    %c0_i32 = arith.constant 0 : i32
    %c0_i32_0 = arith.constant 0 : i32
    %c0_i32_1 = arith.constant 0 : i32
    return %c0_i32, %c0_i32_0 : i32, i32
  }
  func.func @transform_3(%arg0: i32) -> (i32, i32, i32) {
    %c0_i32 = arith.constant 0 : i32
    %c0_i32_0 = arith.constant 0 : i32
    %c0_i32_1 = arith.constant 0 : i32
    %c0_i32_2 = arith.constant 0 : i32
    return %c0_i32, %c0_i32_0, %c0_i32_1 : i32, i32, i32
  }
  func.func @transform_4(%arg0: i32) -> (i32, i32, i32, i32) {
    %c0_i32 = arith.constant 0 : i32
    %c0_i32_0 = arith.constant 0 : i32
    %c0_i32_1 = arith.constant 0 : i32
    %c0_i32_2 = arith.constant 0 : i32
    return %arg0, %c0_i32, %c0_i32_0, %c0_i32_1 : i32, i32, i32, i32
  }
  func.func @transform_5(%arg0: i32) -> (i32, i32, i32) {
    %c0_i32 = arith.constant 0 : i32
    %c0_i32_0 = arith.constant 0 : i32
    %c0_i32_1 = arith.constant 0 : i32
    return %arg0, %c0_i32, %c0_i32_0 : i32, i32, i32
  }
}

module attributes {stable_mosaic.version = 11 : i64} {
  func.func @_conv3x3_fused_kernel(%arg0: i32, %arg1: memref<1x18x18x128xbf16, #tpu.memory_space<vmem>>, %arg2: memref<1x128xf32, #tpu.memory_space<vmem>>, %arg3: memref<1x128xf32, #tpu.memory_space<vmem>>, %arg4: memref<9x128x128xbf16, #tpu.memory_space<vmem>>, %arg5: memref<1x16x16x128xbf16, #tpu.memory_space<vmem>>, %arg6: memref<1x2x128xf32, #tpu.memory_space<vmem>>) attributes {dimension_semantics = [#tpu.dimension_semantics<parallel>], iteration_bounds = array<i64: 2>, scalar_prefetch = 0 : i64, scratch_operands = 0 : i64, tpu.core_type = #tpu.core_type<tc>, window_params = [{transform_indices = @transform_0, window_bounds = array<i64: 1, 18, 18, 128>}, {pipeline_mode = #tpu.pipeline_mode<synchronous>, transform_indices = @transform_1, window_bounds = array<i64: 1, 128>}, {pipeline_mode = #tpu.pipeline_mode<synchronous>, transform_indices = @transform_2, window_bounds = array<i64: 1, 128>}, {pipeline_mode = #tpu.pipeline_mode<synchronous>, transform_indices = @transform_3, window_bounds = array<i64: 9, 128, 128>}, {transform_indices = @transform_4, window_bounds = array<i64: 1, 16, 16, 128>}, {transform_indices = @transform_5, window_bounds = array<i64: 1, 2, 128>}]} {
    %c0 = arith.constant 0 : index
    %c0_0 = arith.constant 0 : index
    %c0_1 = arith.constant 0 : index
    %c0_2 = arith.constant 0 : index
    %0 = vector.load %arg1[%c0, %c0_0, %c0_1, %c0_2] : memref<1x18x18x128xbf16, #tpu.memory_space<vmem>>, vector<1x18x18x128xbf16>
    %1 = vector.shape_cast %0 : vector<1x18x18x128xbf16> to vector<18x18x128xbf16>
    %2 = arith.extf %1 : vector<18x18x128xbf16> to vector<18x18x128xf32>
    %cst = arith.constant 0.000000e+00 : f32
    %3 = vector.broadcast %cst : f32 to vector<256x128xf32>
    %4 = vector.extract_strided_slice %2 {offsets = [0, 0, 0], sizes = [16, 16, 128], strides = [1, 1, 1]} : vector<18x18x128xf32> to vector<16x16x128xf32>
    %5 = vector.shape_cast %4 : vector<16x16x128xf32> to vector<256x128xf32>
    %6 = arith.truncf %5 : vector<256x128xf32> to vector<256x128xbf16>
    %c0_3 = arith.constant 0 : index
    %c0_4 = arith.constant 0 : index
    %c0_5 = arith.constant 0 : index
    %7 = vector.load %arg4[%c0_3, %c0_4, %c0_5] : memref<9x128x128xbf16, #tpu.memory_space<vmem>>, vector<1x128x128xbf16>
    %8 = vector.shape_cast %7 : vector<1x128x128xbf16> to vector<128x128xbf16>
    %cst_6 = arith.constant dense<0.000000e+00> : vector<256x128xf32>
    %9 = tpu.matmul %6, %8, %cst_6 {dimension_numbers = #tpu.dot_dimension_numbers<[1], [0], [0], [1], [0, 0, 1, 1], [], []>} : vector<256x128xbf16>, vector<128x128xbf16>, vector<256x128xf32> -> vector<256x128xf32>
    %10 = arith.addf %3, %9 : vector<256x128xf32>
    %11 = vector.extract_strided_slice %2 {offsets = [0, 1, 0], sizes = [16, 16, 128], strides = [1, 1, 1]} : vector<18x18x128xf32> to vector<16x16x128xf32>
    %12 = vector.shape_cast %11 : vector<16x16x128xf32> to vector<256x128xf32>
    %13 = arith.truncf %12 : vector<256x128xf32> to vector<256x128xbf16>
    %c1 = arith.constant 1 : index
    %c0_7 = arith.constant 0 : index
    %c0_8 = arith.constant 0 : index
    %14 = vector.load %arg4[%c1, %c0_7, %c0_8] : memref<9x128x128xbf16, #tpu.memory_space<vmem>>, vector<1x128x128xbf16>
    %15 = vector.shape_cast %14 : vector<1x128x128xbf16> to vector<128x128xbf16>
    %cst_9 = arith.constant dense<0.000000e+00> : vector<256x128xf32>
    %16 = tpu.matmul %13, %15, %cst_9 {dimension_numbers = #tpu.dot_dimension_numbers<[1], [0], [0], [1], [0, 0, 1, 1], [], []>} : vector<256x128xbf16>, vector<128x128xbf16>, vector<256x128xf32> -> vector<256x128xf32>
    %17 = arith.addf %10, %16 : vector<256x128xf32>
    %18 = vector.extract_strided_slice %2 {offsets = [0, 2, 0], sizes = [16, 16, 128], strides = [1, 1, 1]} : vector<18x18x128xf32> to vector<16x16x128xf32>
    %19 = vector.shape_cast %18 : vector<16x16x128xf32> to vector<256x128xf32>
    %20 = arith.truncf %19 : vector<256x128xf32> to vector<256x128xbf16>
    %c2 = arith.constant 2 : index
    %c0_10 = arith.constant 0 : index
    %c0_11 = arith.constant 0 : index
    %21 = vector.load %arg4[%c2, %c0_10, %c0_11] : memref<9x128x128xbf16, #tpu.memory_space<vmem>>, vector<1x128x128xbf16>
    %22 = vector.shape_cast %21 : vector<1x128x128xbf16> to vector<128x128xbf16>
    %cst_12 = arith.constant dense<0.000000e+00> : vector<256x128xf32>
    %23 = tpu.matmul %20, %22, %cst_12 {dimension_numbers = #tpu.dot_dimension_numbers<[1], [0], [0], [1], [0, 0, 1, 1], [], []>} : vector<256x128xbf16>, vector<128x128xbf16>, vector<256x128xf32> -> vector<256x128xf32>
    %24 = arith.addf %17, %23 : vector<256x128xf32>
    %25 = vector.extract_strided_slice %2 {offsets = [1, 0, 0], sizes = [16, 16, 128], strides = [1, 1, 1]} : vector<18x18x128xf32> to vector<16x16x128xf32>
    %26 = vector.shape_cast %25 : vector<16x16x128xf32> to vector<256x128xf32>
    %27 = arith.truncf %26 : vector<256x128xf32> to vector<256x128xbf16>
    %c3 = arith.constant 3 : index
    %c0_13 = arith.constant 0 : index
    %c0_14 = arith.constant 0 : index
    %28 = vector.load %arg4[%c3, %c0_13, %c0_14] : memref<9x128x128xbf16, #tpu.memory_space<vmem>>, vector<1x128x128xbf16>
    %29 = vector.shape_cast %28 : vector<1x128x128xbf16> to vector<128x128xbf16>
    %cst_15 = arith.constant dense<0.000000e+00> : vector<256x128xf32>
    %30 = tpu.matmul %27, %29, %cst_15 {dimension_numbers = #tpu.dot_dimension_numbers<[1], [0], [0], [1], [0, 0, 1, 1], [], []>} : vector<256x128xbf16>, vector<128x128xbf16>, vector<256x128xf32> -> vector<256x128xf32>
    %31 = arith.addf %24, %30 : vector<256x128xf32>
    %32 = vector.extract_strided_slice %2 {offsets = [1, 1, 0], sizes = [16, 16, 128], strides = [1, 1, 1]} : vector<18x18x128xf32> to vector<16x16x128xf32>
    %33 = vector.shape_cast %32 : vector<16x16x128xf32> to vector<256x128xf32>
    %34 = arith.truncf %33 : vector<256x128xf32> to vector<256x128xbf16>
    %c4 = arith.constant 4 : index
    %c0_16 = arith.constant 0 : index
    %c0_17 = arith.constant 0 : index
    %35 = vector.load %arg4[%c4, %c0_16, %c0_17] : memref<9x128x128xbf16, #tpu.memory_space<vmem>>, vector<1x128x128xbf16>
    %36 = vector.shape_cast %35 : vector<1x128x128xbf16> to vector<128x128xbf16>
    %cst_18 = arith.constant dense<0.000000e+00> : vector<256x128xf32>
    %37 = tpu.matmul %34, %36, %cst_18 {dimension_numbers = #tpu.dot_dimension_numbers<[1], [0], [0], [1], [0, 0, 1, 1], [], []>} : vector<256x128xbf16>, vector<128x128xbf16>, vector<256x128xf32> -> vector<256x128xf32>
    %38 = arith.addf %31, %37 : vector<256x128xf32>
    %39 = vector.extract_strided_slice %2 {offsets = [1, 2, 0], sizes = [16, 16, 128], strides = [1, 1, 1]} : vector<18x18x128xf32> to vector<16x16x128xf32>
    %40 = vector.shape_cast %39 : vector<16x16x128xf32> to vector<256x128xf32>
    %41 = arith.truncf %40 : vector<256x128xf32> to vector<256x128xbf16>
    %c5 = arith.constant 5 : index
    %c0_19 = arith.constant 0 : index
    %c0_20 = arith.constant 0 : index
    %42 = vector.load %arg4[%c5, %c0_19, %c0_20] : memref<9x128x128xbf16, #tpu.memory_space<vmem>>, vector<1x128x128xbf16>
    %43 = vector.shape_cast %42 : vector<1x128x128xbf16> to vector<128x128xbf16>
    %cst_21 = arith.constant dense<0.000000e+00> : vector<256x128xf32>
    %44 = tpu.matmul %41, %43, %cst_21 {dimension_numbers = #tpu.dot_dimension_numbers<[1], [0], [0], [1], [0, 0, 1, 1], [], []>} : vector<256x128xbf16>, vector<128x128xbf16>, vector<256x128xf32> -> vector<256x128xf32>
    %45 = arith.addf %38, %44 : vector<256x128xf32>
    %46 = vector.extract_strided_slice %2 {offsets = [2, 0, 0], sizes = [16, 16, 128], strides = [1, 1, 1]} : vector<18x18x128xf32> to vector<16x16x128xf32>
    %47 = vector.shape_cast %46 : vector<16x16x128xf32> to vector<256x128xf32>
    %48 = arith.truncf %47 : vector<256x128xf32> to vector<256x128xbf16>
    %c6 = arith.constant 6 : index
    %c0_22 = arith.constant 0 : index
    %c0_23 = arith.constant 0 : index
    %49 = vector.load %arg4[%c6, %c0_22, %c0_23] : memref<9x128x128xbf16, #tpu.memory_space<vmem>>, vector<1x128x128xbf16>
    %50 = vector.shape_cast %49 : vector<1x128x128xbf16> to vector<128x128xbf16>
    %cst_24 = arith.constant dense<0.000000e+00> : vector<256x128xf32>
    %51 = tpu.matmul %48, %50, %cst_24 {dimension_numbers = #tpu.dot_dimension_numbers<[1], [0], [0], [1], [0, 0, 1, 1], [], []>} : vector<256x128xbf16>, vector<128x128xbf16>, vector<256x128xf32> -> vector<256x128xf32>
    %52 = arith.addf %45, %51 : vector<256x128xf32>
    %53 = vector.extract_strided_slice %2 {offsets = [2, 1, 0], sizes = [16, 16, 128], strides = [1, 1, 1]} : vector<18x18x128xf32> to vector<16x16x128xf32>
    %54 = vector.shape_cast %53 : vector<16x16x128xf32> to vector<256x128xf32>
    %55 = arith.truncf %54 : vector<256x128xf32> to vector<256x128xbf16>
    %c7 = arith.constant 7 : index
    %c0_25 = arith.constant 0 : index
    %c0_26 = arith.constant 0 : index
    %56 = vector.load %arg4[%c7, %c0_25, %c0_26] : memref<9x128x128xbf16, #tpu.memory_space<vmem>>, vector<1x128x128xbf16>
    %57 = vector.shape_cast %56 : vector<1x128x128xbf16> to vector<128x128xbf16>
    %cst_27 = arith.constant dense<0.000000e+00> : vector<256x128xf32>
    %58 = tpu.matmul %55, %57, %cst_27 {dimension_numbers = #tpu.dot_dimension_numbers<[1], [0], [0], [1], [0, 0, 1, 1], [], []>} : vector<256x128xbf16>, vector<128x128xbf16>, vector<256x128xf32> -> vector<256x128xf32>
    %59 = arith.addf %52, %58 : vector<256x128xf32>
    %60 = vector.extract_strided_slice %2 {offsets = [2, 2, 0], sizes = [16, 16, 128], strides = [1, 1, 1]} : vector<18x18x128xf32> to vector<16x16x128xf32>
    %61 = vector.shape_cast %60 : vector<16x16x128xf32> to vector<256x128xf32>
    %62 = arith.truncf %61 : vector<256x128xf32> to vector<256x128xbf16>
    %c8 = arith.constant 8 : index
    %c0_28 = arith.constant 0 : index
    %c0_29 = arith.constant 0 : index
    %63 = vector.load %arg4[%c8, %c0_28, %c0_29] : memref<9x128x128xbf16, #tpu.memory_space<vmem>>, vector<1x128x128xbf16>
    %64 = vector.shape_cast %63 : vector<1x128x128xbf16> to vector<128x128xbf16>
    %cst_30 = arith.constant dense<0.000000e+00> : vector<256x128xf32>
    %65 = tpu.matmul %62, %64, %cst_30 {dimension_numbers = #tpu.dot_dimension_numbers<[1], [0], [0], [1], [0, 0, 1, 1], [], []>} : vector<256x128xbf16>, vector<128x128xbf16>, vector<256x128xf32> -> vector<256x128xf32>
    %66 = arith.addf %59, %65 : vector<256x128xf32>
    %67 = vector.shape_cast %66 : vector<256x128xf32> to vector<1x16x16x128xf32>
    %68 = arith.truncf %67 : vector<1x16x16x128xf32> to vector<1x16x16x128xbf16>
    %c0_31 = arith.constant 0 : index
    %c0_32 = arith.constant 0 : index
    %c0_33 = arith.constant 0 : index
    %c0_34 = arith.constant 0 : index
    %69 = vector.load %arg5[%c0_31, %c0_32, %c0_33, %c0_34] : memref<1x16x16x128xbf16, #tpu.memory_space<vmem>>, vector<1x16x16x128xbf16>
    tpu.vector_store %arg5[%c0_31, %c0_32, %c0_33, %c0_34], %68 {strides = array<i32>} : memref<1x16x16x128xbf16, #tpu.memory_space<vmem>>, vector<1x16x16x128xbf16>,
    %cst_35 = arith.constant dense<0.000000e+00> : vector<128xf32>
    %70 = vector.multi_reduction <add>, %66, %cst_35 [0] : vector<256x128xf32> to vector<128xf32>
    %71 = vector.shape_cast %70 : vector<128xf32> to vector<1x128xf32>
    %72 = arith.mulf %66, %66 : vector<256x128xf32>
    %cst_36 = arith.constant dense<0.000000e+00> : vector<128xf32>
    %73 = vector.multi_reduction <add>, %72, %cst_36 [0] : vector<256x128xf32> to vector<128xf32>
    %74 = vector.shape_cast %73 : vector<128xf32> to vector<1x128xf32>
    %75 = tpu.concatenate %71, %74 in 0 : vector<1x128xf32>, vector<1x128xf32> -> vector<2x128xf32>
    %76 = vector.shape_cast %75 : vector<2x128xf32> to vector<1x2x128xf32>
    %c0_37 = arith.constant 0 : index
    %c0_38 = arith.constant 0 : index
    %c0_39 = arith.constant 0 : index
    %77 = vector.load %arg6[%c0_37, %c0_38, %c0_39] : memref<1x2x128xf32, #tpu.memory_space<vmem>>, vector<1x2x128xf32>
    tpu.vector_store %arg6[%c0_37, %c0_38, %c0_39], %76 {strides = array<i32>} : memref<1x2x128xf32, #tpu.memory_space<vmem>>, vector<1x2x128xf32>,
    return
  }
  func.func @transform_0(%arg0: i32) -> (i32, i32, i32, i32) {
    %c0_i32 = arith.constant 0 : i32
    %c0_i32_0 = arith.constant 0 : i32
    %c0_i32_1 = arith.constant 0 : i32
    %c0_i32_2 = arith.constant 0 : i32
    return %arg0, %c0_i32, %c0_i32_0, %c0_i32_1 : i32, i32, i32, i32
  }
  func.func @transform_1(%arg0: i32) -> (i32, i32) {
    %c0_i32 = arith.constant 0 : i32
    %c0_i32_0 = arith.constant 0 : i32
    %c0_i32_1 = arith.constant 0 : i32
    return %c0_i32, %c0_i32_0 : i32, i32
  }
  func.func @transform_2(%arg0: i32) -> (i32, i32) {
    %c0_i32 = arith.constant 0 : i32
    %c0_i32_0 = arith.constant 0 : i32
    %c0_i32_1 = arith.constant 0 : i32
    return %c0_i32, %c0_i32_0 : i32, i32
  }
  func.func @transform_3(%arg0: i32) -> (i32, i32, i32) {
    %c0_i32 = arith.constant 0 : i32
    %c0_i32_0 = arith.constant 0 : i32
    %c0_i32_1 = arith.constant 0 : i32
    %c0_i32_2 = arith.constant 0 : i32
    return %c0_i32, %c0_i32_0, %c0_i32_1 : i32, i32, i32
  }
  func.func @transform_4(%arg0: i32) -> (i32, i32, i32, i32) {
    %c0_i32 = arith.constant 0 : i32
    %c0_i32_0 = arith.constant 0 : i32
    %c0_i32_1 = arith.constant 0 : i32
    %c0_i32_2 = arith.constant 0 : i32
    return %arg0, %c0_i32, %c0_i32_0, %c0_i32_1 : i32, i32, i32, i32
  }
  func.func @transform_5(%arg0: i32) -> (i32, i32, i32) {
    %c0_i32 = arith.constant 0 : i32
    %c0_i32_0 = arith.constant 0 : i32
    %c0_i32_1 = arith.constant 0 : i32
    return %arg0, %c0_i32, %c0_i32_0 : i32, i32, i32
  }
}

module attributes {stable_mosaic.version = 11 : i64} {
  func.func @_bn_act_kernel(%arg0: i32, %arg1: memref<128x128xbf16, #tpu.memory_space<vmem>>, %arg2: memref<1x128xf32, #tpu.memory_space<vmem>>, %arg3: memref<1x128xf32, #tpu.memory_space<vmem>>, %arg4: memref<128x128xf32, #tpu.memory_space<vmem>>) attributes {dimension_semantics = [#tpu.dimension_semantics<parallel>], iteration_bounds = array<i64: 1>, scalar_prefetch = 0 : i64, scratch_operands = 0 : i64, tpu.core_type = #tpu.core_type<tc>, window_params = [{transform_indices = @transform_0, window_bounds = array<i64: 128, 128>}, {pipeline_mode = #tpu.pipeline_mode<synchronous>, transform_indices = @transform_1, window_bounds = array<i64: 1, 128>}, {pipeline_mode = #tpu.pipeline_mode<synchronous>, transform_indices = @transform_2, window_bounds = array<i64: 1, 128>}, {transform_indices = @transform_3, window_bounds = array<i64: 128, 128>}]} {
    %c0 = arith.constant 0 : index
    %c0_0 = arith.constant 0 : index
    %0 = vector.load %arg1[%c0, %c0_0] : memref<128x128xbf16, #tpu.memory_space<vmem>>, vector<128x128xbf16>
    %1 = arith.extf %0 : vector<128x128xbf16> to vector<128x128xf32>
    %c0_1 = arith.constant 0 : index
    %c0_2 = arith.constant 0 : index
    %2 = vector.load %arg2[%c0_1, %c0_2] : memref<1x128xf32, #tpu.memory_space<vmem>>, vector<1x128xf32>
    %3 = vector.broadcast %2 : vector<1x128xf32> to vector<128x128xf32>
    %4 = arith.mulf %1, %3 : vector<128x128xf32>
    %c0_3 = arith.constant 0 : index
    %c0_4 = arith.constant 0 : index
    %5 = vector.load %arg3[%c0_3, %c0_4] : memref<1x128xf32, #tpu.memory_space<vmem>>, vector<1x128xf32>
    %6 = vector.broadcast %5 : vector<1x128xf32> to vector<128x128xf32>
    %7 = arith.addf %4, %6 : vector<128x128xf32>
    %cst = arith.constant 0.000000e+00 : f32
    %8 = vector.broadcast %cst : f32 to vector<128x128xf32>
    %9 = arith.maximumf %7, %8 : vector<128x128xf32>
    %c0_5 = arith.constant 0 : index
    %c0_6 = arith.constant 0 : index
    %10 = vector.load %arg4[%c0_5, %c0_6] : memref<128x128xf32, #tpu.memory_space<vmem>>, vector<128x128xf32>
    tpu.vector_store %arg4[%c0_5, %c0_6], %9 {strides = array<i32>} : memref<128x128xf32, #tpu.memory_space<vmem>>, vector<128x128xf32>,
    return
  }
  func.func @transform_0(%arg0: i32) -> (i32, i32) {
    %c0_i32 = arith.constant 0 : i32
    %c0_i32_0 = arith.constant 0 : i32
    return %arg0, %c0_i32 : i32, i32
  }
  func.func @transform_1(%arg0: i32) -> (i32, i32) {
    %c0_i32 = arith.constant 0 : i32
    %c0_i32_0 = arith.constant 0 : i32
    %c0_i32_1 = arith.constant 0 : i32
    return %c0_i32, %c0_i32_0 : i32, i32
  }
  func.func @transform_2(%arg0: i32) -> (i32, i32) {
    %c0_i32 = arith.constant 0 : i32
    %c0_i32_0 = arith.constant 0 : i32
    %c0_i32_1 = arith.constant 0 : i32
    return %c0_i32, %c0_i32_0 : i32, i32
  }
  func.func @transform_3(%arg0: i32) -> (i32, i32) {
    %c0_i32 = arith.constant 0 : i32
    %c0_i32_0 = arith.constant 0 : i32
    return %arg0, %c0_i32 : i32, i32
  }
}

module attributes {stable_mosaic.version = 11 : i64} {
  func.func @_conv1x1_fused_kernel(%arg0: i32, %arg1: memref<128x128xbf16, #tpu.memory_space<vmem>>, %arg2: memref<1x128xf32, #tpu.memory_space<vmem>>, %arg3: memref<1x128xf32, #tpu.memory_space<vmem>>, %arg4: memref<128x128xbf16, #tpu.memory_space<vmem>>, %arg5: memref<128x128xbf16, #tpu.memory_space<vmem>>, %arg6: memref<1x2x128xf32, #tpu.memory_space<vmem>>) attributes {dimension_semantics = [#tpu.dimension_semantics<parallel>], iteration_bounds = array<i64: 1>, scalar_prefetch = 0 : i64, scratch_operands = 0 : i64, tpu.core_type = #tpu.core_type<tc>, window_params = [{transform_indices = @transform_0, window_bounds = array<i64: 128, 128>}, {pipeline_mode = #tpu.pipeline_mode<synchronous>, transform_indices = @transform_1, window_bounds = array<i64: 1, 128>}, {pipeline_mode = #tpu.pipeline_mode<synchronous>, transform_indices = @transform_2, window_bounds = array<i64: 1, 128>}, {pipeline_mode = #tpu.pipeline_mode<synchronous>, transform_indices = @transform_3, window_bounds = array<i64: 128, 128>}, {transform_indices = @transform_4, window_bounds = array<i64: 128, 128>}, {transform_indices = @transform_5, window_bounds = array<i64: 1, 2, 128>}]} {
    %c0 = arith.constant 0 : index
    %c0_0 = arith.constant 0 : index
    %0 = vector.load %arg1[%c0, %c0_0] : memref<128x128xbf16, #tpu.memory_space<vmem>>, vector<128x128xbf16>
    %1 = arith.extf %0 : vector<128x128xbf16> to vector<128x128xf32>
    %c0_1 = arith.constant 0 : index
    %c0_2 = arith.constant 0 : index
    %2 = vector.load %arg2[%c0_1, %c0_2] : memref<1x128xf32, #tpu.memory_space<vmem>>, vector<1x128xf32>
    %3 = vector.broadcast %2 : vector<1x128xf32> to vector<128x128xf32>
    %4 = arith.mulf %1, %3 : vector<128x128xf32>
    %c0_3 = arith.constant 0 : index
    %c0_4 = arith.constant 0 : index
    %5 = vector.load %arg3[%c0_3, %c0_4] : memref<1x128xf32, #tpu.memory_space<vmem>>, vector<1x128xf32>
    %6 = vector.broadcast %5 : vector<1x128xf32> to vector<128x128xf32>
    %7 = arith.addf %4, %6 : vector<128x128xf32>
    %cst = arith.constant 0.000000e+00 : f32
    %8 = vector.broadcast %cst : f32 to vector<128x128xf32>
    %9 = arith.maximumf %7, %8 : vector<128x128xf32>
    %10 = arith.truncf %9 : vector<128x128xf32> to vector<128x128xbf16>
    %c0_5 = arith.constant 0 : index
    %c0_6 = arith.constant 0 : index
    %11 = vector.load %arg4[%c0_5, %c0_6] : memref<128x128xbf16, #tpu.memory_space<vmem>>, vector<128x128xbf16>
    %cst_7 = arith.constant dense<0.000000e+00> : vector<128x128xf32>
    %12 = tpu.matmul %10, %11, %cst_7 {dimension_numbers = #tpu.dot_dimension_numbers<[1], [0], [0], [1], [0, 0, 1, 1], [], []>} : vector<128x128xbf16>, vector<128x128xbf16>, vector<128x128xf32> -> vector<128x128xf32>
    %13 = arith.truncf %12 : vector<128x128xf32> to vector<128x128xbf16>
    %c0_8 = arith.constant 0 : index
    %c0_9 = arith.constant 0 : index
    %14 = vector.load %arg5[%c0_8, %c0_9] : memref<128x128xbf16, #tpu.memory_space<vmem>>, vector<128x128xbf16>
    tpu.vector_store %arg5[%c0_8, %c0_9], %13 {strides = array<i32>} : memref<128x128xbf16, #tpu.memory_space<vmem>>, vector<128x128xbf16>,
    %cst_10 = arith.constant dense<0.000000e+00> : vector<128xf32>
    %15 = vector.multi_reduction <add>, %12, %cst_10 [0] : vector<128x128xf32> to vector<128xf32>
    %16 = vector.shape_cast %15 : vector<128xf32> to vector<1x128xf32>
    %17 = arith.mulf %12, %12 : vector<128x128xf32>
    %cst_11 = arith.constant dense<0.000000e+00> : vector<128xf32>
    %18 = vector.multi_reduction <add>, %17, %cst_11 [0] : vector<128x128xf32> to vector<128xf32>
    %19 = vector.shape_cast %18 : vector<128xf32> to vector<1x128xf32>
    %20 = tpu.concatenate %16, %19 in 0 : vector<1x128xf32>, vector<1x128xf32> -> vector<2x128xf32>
    %21 = vector.shape_cast %20 : vector<2x128xf32> to vector<1x2x128xf32>
    %c0_12 = arith.constant 0 : index
    %c0_13 = arith.constant 0 : index
    %c0_14 = arith.constant 0 : index
    %22 = vector.load %arg6[%c0_12, %c0_13, %c0_14] : memref<1x2x128xf32, #tpu.memory_space<vmem>>, vector<1x2x128xf32>
    tpu.vector_store %arg6[%c0_12, %c0_13, %c0_14], %21 {strides = array<i32>} : memref<1x2x128xf32, #tpu.memory_space<vmem>>, vector<1x2x128xf32>,
    return
  }
  func.func @transform_0(%arg0: i32) -> (i32, i32) {
    %c0_i32 = arith.constant 0 : i32
    %c0_i32_0 = arith.constant 0 : i32
    return %arg0, %c0_i32 : i32, i32
  }
  func.func @transform_1(%arg0: i32) -> (i32, i32) {
    %c0_i32 = arith.constant 0 : i32
    %c0_i32_0 = arith.constant 0 : i32
    %c0_i32_1 = arith.constant 0 : i32
    return %c0_i32, %c0_i32_0 : i32, i32
  }
  func.func @transform_2(%arg0: i32) -> (i32, i32) {
    %c0_i32 = arith.constant 0 : i32
    %c0_i32_0 = arith.constant 0 : i32
    %c0_i32_1 = arith.constant 0 : i32
    return %c0_i32, %c0_i32_0 : i32, i32
  }
  func.func @transform_3(%arg0: i32) -> (i32, i32) {
    %c0_i32 = arith.constant 0 : i32
    %c0_i32_0 = arith.constant 0 : i32
    %c0_i32_1 = arith.constant 0 : i32
    return %c0_i32, %c0_i32_0 : i32, i32
  }
  func.func @transform_4(%arg0: i32) -> (i32, i32) {
    %c0_i32 = arith.constant 0 : i32
    %c0_i32_0 = arith.constant 0 : i32
    return %arg0, %c0_i32 : i32, i32
  }
  func.func @transform_5(%arg0: i32) -> (i32, i32, i32) {
    %c0_i32 = arith.constant 0 : i32
    %c0_i32_0 = arith.constant 0 : i32
    %c0_i32_1 = arith.constant 0 : i32
    return %arg0, %c0_i32, %c0_i32_0 : i32, i32, i32
  }
}

</mosaic_0001>

<llo_original>
// kernel: _lambda_.7
$region0: #{_lambda_.7}
  #allocation0 [shape = 'u32[]', space=smem, size = 0x4, offset = 0x4, fixed_abs, tag = 'smem constant byte address 0x4 - core index']
  #allocation1 [shape = 'u32[72,128]{1,0:T(1,128)}', space=vmem, size = 0x9000, scoped, tag = 'internal scratch']
  %s0 = inlined_call_operand.vmem [shape: bf16[128,128], index: 0, kind: input, shape index: {}]
  %s1 = inlined_call_operand.vmem [shape: f32[1,128], index: 1, kind: input, shape index: {}]
  %s2 = inlined_call_operand.vmem [shape: f32[1,128], index: 2, kind: input, shape index: {}]
  %s3 = inlined_call_operand.vmem [shape: f32[128,128], index: 3, kind: output, shape index: {}]
  %s4 = sld [smem:[#allocation0]]
  $region22: #{_lambda_.7} parent=0
    _
  %s6 = ssub.s32 1, %s4
  %s7 = scalar_select 0, %s6, %s4
  // Predicated region
  $region2: #{_lambda_.7} parent=0 // pred_check
    _
  $region3: #{_lambda_.7} parent=0 // pred_check_branch
    %9 = sbr.rel (0) target = $region5
  $region4: #{_lambda_.7} parent=0 // pred_region
    _
  $region5: #{_lambda_.7} parent=0 // pred_fallthru
    _
  // Predicated region
  $region6: #{_lambda_.7} parent=0 // pred_check
    _
  $region7: #{_lambda_.7} parent=0 // pred_check_branch
    %11 = sbr.rel (0) target = $region9
  $region8: #{_lambda_.7} parent=0 // pred_region
    _
  $region9: #{_lambda_.7} parent=0 // pred_fallthru
    _
  // Predicated region
  $region10: #{_lambda_.7} parent=0 // pred_check
    _
  $region11: #{_lambda_.7} parent=0 // pred_check_branch
    %13 = sbr.rel (0) target = $region13
  $region12: #{_lambda_.7} parent=0 // pred_region
    _
  $region13: #{_lambda_.7} parent=0 // pred_fallthru
    _
  %v14 = vld [vmem:[%s0] sm:$0xf]
  %v15 = vld [vmem:[%s0 + $0x4] sm:$0xf]
  %v16 = vld [vmem:[%s0 + $0x8] sm:$0xf]
  %v17 = vld [vmem:[%s0 + $0xc] sm:$0xf]
  %v18 = vld [vmem:[%s0 + $0x10] sm:$0xf]
  %v19 = vld [vmem:[%s0 + $0x14] sm:$0xf]
  %v20 = vld [vmem:[%s0 + $0x18] sm:$0xf]
  %v21 = vld [vmem:[%s0 + $0x1c] sm:$0xf]
  %v22 = vld [vmem:[%s0 + $0x20] sm:$0xf]
  %v23 = vld [vmem:[%s0 + $0x24] sm:$0xf]
  %v24 = vld [vmem:[%s0 + $0x28] sm:$0xf]
  %v25 = vld [vmem:[%s0 + $0x2c] sm:$0xf]
  %v26 = vld [vmem:[%s0 + $0x30] sm:$0xf]
  %v27 = vld [vmem:[%s0 + $0x34] sm:$0xf]
  %v28 = vld [vmem:[%s0 + $0x38] sm:$0xf]
  %v29 = vld [vmem:[%s0 + $0x3c] sm:$0xf]
  %v30 = vunpack.c.l.bf16 %v14
  %v31 = vunpack.c.l.bf16 %v15
  %v32 = vunpack.c.l.bf16 %v16
  %v33 = vunpack.c.l.bf16 %v17
  %v34 = vunpack.c.l.bf16 %v18
  %v35 = vunpack.c.l.bf16 %v19
  %v36 = vunpack.c.l.bf16 %v20
  %v37 = vunpack.c.l.bf16 %v21
  %v38 = vunpack.c.l.bf16 %v22
  %v39 = vunpack.c.l.bf16 %v23
  %v40 = vunpack.c.l.bf16 %v24
  %v41 = vunpack.c.l.bf16 %v25
  %v42 = vunpack.c.l.bf16 %v26
  %v43 = vunpack.c.l.bf16 %v27
  %v44 = vunpack.c.l.bf16 %v28
  %v45 = vunpack.c.l.bf16 %v29
  %v46 = vld [vmem:[%s1] sm:$0x1]
  %v48 = vperm.slane %v46, 0
  %v50 = vmul.f32 %v30, %v48
  %v51 = vmul.f32 %v31, %v48
  %v52 = vmul.f32 %v32, %v48
  %v53 = vmul.f32 %v33, %v48
  %v54 = vmul.f32 %v34, %v48
  %v55 = vmul.f32 %v35, %v48
  %v56 = vmul.f32 %v36, %v48
  %v57 = vmul.f32 %v37, %v48
  %v58 = vmul.f32 %v38, %v48
  %v59 = vmul.f32 %v39, %v48
  %v60 = vmul.f32 %v40, %v48
  %v61 = vmul.f32 %v41, %v48
  %v62 = vmul.f32 %v42, %v48
  %v63 = vmul.f32 %v43, %v48
  %v64 = vmul.f32 %v44, %v48
  %v65 = vmul.f32 %v45, %v48
  %v66 = vld [vmem:[%s2] sm:$0x1]
  %v68 = vperm.slane %v66, 0
  %v70 = vadd.f32 %v50, %v68
  %v71 = vadd.f32 %v51, %v68
  %v72 = vadd.f32 %v52, %v68
  %v73 = vadd.f32 %v53, %v68
  %v74 = vadd.f32 %v54, %v68
  %v75 = vadd.f32 %v55, %v68
  %v76 = vadd.f32 %v56, %v68
  %v77 = vadd.f32 %v57, %v68
  %v78 = vadd.f32 %v58, %v68
  %v79 = vadd.f32 %v59, %v68
  %v80 = vadd.f32 %v60, %v68
  %v81 = vadd.f32 %v61, %v68
  %v82 = vadd.f32 %v62, %v68
  %v83 = vadd.f32 %v63, %v68
  %v84 = vadd.f32 %v64, %v68
  %v85 = vadd.f32 %v65, %v68
  %v86 = vmax.f32 %v70, 0.0
  %v87 = vmax.f32 %v71, 0.0
  %v88 = vmax.f32 %v72, 0.0
  %v89 = vmax.f32 %v73, 0.0
  %v90 = vmax.f32 %v74, 0.0
  %v91 = vmax.f32 %v75, 0.0
  %v92 = vmax.f32 %v76, 0.0
  %v93 = vmax.f32 %v77, 0.0
  %v94 = vmax.f32 %v78, 0.0
  %v95 = vmax.f32 %v79, 0.0
  %v96 = vmax.f32 %v80, 0.0
  %v97 = vmax.f32 %v81, 0.0
  %v98 = vmax.f32 %v82, 0.0
  %v99 = vmax.f32 %v83, 0.0
  %v100 = vmax.f32 %v84, 0.0
  %v101 = vmax.f32 %v85, 0.0
  %102 = vst [vmem:[%s3] sm:$0xff] %v86
  %103 = vst [vmem:[%s3 + $0x8] sm:$0xff] %v87
  %104 = vst [vmem:[%s3 + $0x10] sm:$0xff] %v88
  %105 = vst [vmem:[%s3 + $0x18] sm:$0xff] %v89
  %106 = vst [vmem:[%s3 + $0x20] sm:$0xff] %v90
  %107 = vst [vmem:[%s3 + $0x28] sm:$0xff] %v91
  %108 = vst [vmem:[%s3 + $0x30] sm:$0xff] %v92
  %109 = vst [vmem:[%s3 + $0x38] sm:$0xff] %v93
  %110 = vst [vmem:[%s3 + $0x40] sm:$0xff] %v94
  %111 = vst [vmem:[%s3 + $0x48] sm:$0xff] %v95
  %112 = vst [vmem:[%s3 + $0x50] sm:$0xff] %v96
  %113 = vst [vmem:[%s3 + $0x58] sm:$0xff] %v97
  %114 = vst [vmem:[%s3 + $0x60] sm:$0xff] %v98
  %115 = vst [vmem:[%s3 + $0x68] sm:$0xff] %v99
  %116 = vst [vmem:[%s3 + $0x70] sm:$0xff] %v100
  %117 = vst [vmem:[%s3 + $0x78] sm:$0xff] %v101
  // Predicated region
  $region14: #{_lambda_.7} parent=0 // pred_check
    _
  $region15: #{_lambda_.7} parent=0 // pred_check_branch
    %119 = sbr.rel (0) target = $region17
  $region16: #{_lambda_.7} parent=0 // pred_region
    _
  $region17: #{_lambda_.7} parent=0 // pred_fallthru
    _
  // Predicated region
  $region18: #{_lambda_.7} parent=0 // pred_check
    _
  $region19: #{_lambda_.7} parent=0 // pred_check_branch
    %121 = sbr.rel (0) target = $region21
  $region20: #{_lambda_.7} parent=0 // pred_region
    _
  $region21: #{_lambda_.7} parent=0 // pred_fallthru
    _

// kernel: _lambda_.6
$region0: #{_lambda_.6}
  #allocation0 [shape = 'u32[]', space=smem, size = 0x4, offset = 0x4, fixed_abs, tag = 'smem constant byte address 0x4 - core index']
  #allocation1 [shape = 'u32[72,128]{1,0:T(1,128)}', space=vmem, size = 0x9000, scoped, tag = 'internal scratch']
  %s0 = inlined_call_operand.vmem [shape: bf16[128,128], index: 0, kind: input, shape index: {}]
  %s1 = inlined_call_operand.vmem [shape: f32[1,128], index: 1, kind: input, shape index: {}]
  %s2 = inlined_call_operand.vmem [shape: f32[1,128], index: 2, kind: input, shape index: {}]
  %s3 = inlined_call_operand.vmem [shape: bf16[128,128], index: 3, kind: input, shape index: {}]
  %s4 = inlined_call_operand.vmem [shape: bf16[128,128], index: 4, kind: output, shape index: {0}]
  %s5 = inlined_call_operand.vmem [shape: f32[1,2,128], index: 5, kind: output, shape index: {1}]
  %6 = xla_tuple %s4, %s5
  %s7 = sld [smem:[#allocation0]]
  $region34: #{_lambda_.6} parent=0
    _
  %s9 = ssub.s32 1, %s7
  %s10 = scalar_select 0, %s9, %s7
  // Predicated region
  $region2: #{_lambda_.6} parent=0 // pred_check
    _
  $region3: #{_lambda_.6} parent=0 // pred_check_branch
    %12 = sbr.rel (0) target = $region5
  $region4: #{_lambda_.6} parent=0 // pred_region
    _
  $region5: #{_lambda_.6} parent=0 // pred_fallthru
    _
  // Predicated region
  $region6: #{_lambda_.6} parent=0 // pred_check
    _
  $region7: #{_lambda_.6} parent=0 // pred_check_branch
    %14 = sbr.rel (0) target = $region9
  $region8: #{_lambda_.6} parent=0 // pred_region
    _
  $region9: #{_lambda_.6} parent=0 // pred_fallthru
    _
  // Predicated region
  $region10: #{_lambda_.6} parent=0 // pred_check
    _
  $region11: #{_lambda_.6} parent=0 // pred_check_branch
    %16 = sbr.rel (0) target = $region13
  $region12: #{_lambda_.6} parent=0 // pred_region
    _
  $region13: #{_lambda_.6} parent=0 // pred_fallthru
    _
  // Predicated region
  $region14: #{_lambda_.6} parent=0 // pred_check
    _
  $region15: #{_lambda_.6} parent=0 // pred_check_branch
    %18 = sbr.rel (0) target = $region17
  $region16: #{_lambda_.6} parent=0 // pred_region
    _
  $region17: #{_lambda_.6} parent=0 // pred_fallthru
    _
  %v19 = vld [vmem:[%s0] sm:$0xf]
  %v20 = vld [vmem:[%s0 + $0x4] sm:$0xf]
  %v21 = vld [vmem:[%s0 + $0x8] sm:$0xf]
  %v22 = vld [vmem:[%s0 + $0xc] sm:$0xf]
  %v23 = vld [vmem:[%s0 + $0x10] sm:$0xf]
  %v24 = vld [vmem:[%s0 + $0x14] sm:$0xf]
  %v25 = vld [vmem:[%s0 + $0x18] sm:$0xf]
  %v26 = vld [vmem:[%s0 + $0x1c] sm:$0xf]
  %v27 = vld [vmem:[%s0 + $0x20] sm:$0xf]
  %v28 = vld [vmem:[%s0 + $0x24] sm:$0xf]
  %v29 = vld [vmem:[%s0 + $0x28] sm:$0xf]
  %v30 = vld [vmem:[%s0 + $0x2c] sm:$0xf]
  %v31 = vld [vmem:[%s0 + $0x30] sm:$0xf]
  %v32 = vld [vmem:[%s0 + $0x34] sm:$0xf]
  %v33 = vld [vmem:[%s0 + $0x38] sm:$0xf]
  %v34 = vld [vmem:[%s0 + $0x3c] sm:$0xf]
  %v35 = vunpack.c.l.bf16 %v19
  %v36 = vunpack.c.l.bf16 %v20
  %v37 = vunpack.c.l.bf16 %v21
  %v38 = vunpack.c.l.bf16 %v22
  %v39 = vunpack.c.l.bf16 %v23
  %v40 = vunpack.c.l.bf16 %v24
  %v41 = vunpack.c.l.bf16 %v25
  %v42 = vunpack.c.l.bf16 %v26
  %v43 = vunpack.c.l.bf16 %v27
  %v44 = vunpack.c.l.bf16 %v28
  %v45 = vunpack.c.l.bf16 %v29
  %v46 = vunpack.c.l.bf16 %v30
  %v47 = vunpack.c.l.bf16 %v31
  %v48 = vunpack.c.l.bf16 %v32
  %v49 = vunpack.c.l.bf16 %v33
  %v50 = vunpack.c.l.bf16 %v34
  %v51 = vld [vmem:[%s1] sm:$0x1]
  %v53 = vperm.slane %v51, 0
  %v55 = vmul.f32 %v35, %v53
  %v56 = vmul.f32 %v36, %v53
  %v57 = vmul.f32 %v37, %v53
  %v58 = vmul.f32 %v38, %v53
  %v59 = vmul.f32 %v39, %v53
  %v60 = vmul.f32 %v40, %v53
  %v61 = vmul.f32 %v41, %v53
  %v62 = vmul.f32 %v42, %v53
  %v63 = vmul.f32 %v43, %v53
  %v64 = vmul.f32 %v44, %v53
  %v65 = vmul.f32 %v45, %v53
  %v66 = vmul.f32 %v46, %v53
  %v67 = vmul.f32 %v47, %v53
  %v68 = vmul.f32 %v48, %v53
  %v69 = vmul.f32 %v49, %v53
  %v70 = vmul.f32 %v50, %v53
  %v71 = vld [vmem:[%s2] sm:$0x1]
  %v73 = vperm.slane %v71, 0
  %v75 = vadd.f32 %v55, %v73
  %v76 = vadd.f32 %v56, %v73
  %v77 = vadd.f32 %v57, %v73
  %v78 = vadd.f32 %v58, %v73
  %v79 = vadd.f32 %v59, %v73
  %v80 = vadd.f32 %v60, %v73
  %v81 = vadd.f32 %v61, %v73
  %v82 = vadd.f32 %v62, %v73
  %v83 = vadd.f32 %v63, %v73
  %v84 = vadd.f32 %v64, %v73
  %v85 = vadd.f32 %v65, %v73
  %v86 = vadd.f32 %v66, %v73
  %v87 = vadd.f32 %v67, %v73
  %v88 = vadd.f32 %v68, %v73
  %v89 = vadd.f32 %v69, %v73
  %v90 = vadd.f32 %v70, %v73
  %v91 = vmax.f32 %v75, 0.0
  %v92 = vmax.f32 %v76, 0.0
  %v93 = vmax.f32 %v77, 0.0
  %v94 = vmax.f32 %v78, 0.0
  %v95 = vmax.f32 %v79, 0.0
  %v96 = vmax.f32 %v80, 0.0
  %v97 = vmax.f32 %v81, 0.0
  %v98 = vmax.f32 %v82, 0.0
  %v99 = vmax.f32 %v83, 0.0
  %v100 = vmax.f32 %v84, 0.0
  %v101 = vmax.f32 %v85, 0.0
  %v102 = vmax.f32 %v86, 0.0
  %v103 = vmax.f32 %v87, 0.0
  %v104 = vmax.f32 %v88, 0.0
  %v105 = vmax.f32 %v89, 0.0
  %v106 = vmax.f32 %v90, 0.0
  %v107 = vpack.c.bf16 %v92, %v91
  %v108 = vpack.c.bf16 %v94, %v93
  %v109 = vpack.c.bf16 %v96, %v95
  %v110 = vpack.c.bf16 %v98, %v97
  %v111 = vpack.c.bf16 %v100, %v99
  %v112 = vpack.c.bf16 %v102, %v101
  %v113 = vpack.c.bf16 %v104, %v103
  %v114 = vpack.c.bf16 %v106, %v105
  %v115 = vld [vmem:[%s3] sm:$0xf]
  %v116 = vld [vmem:[%s3 + $0x4] sm:$0xf]
  %v117 = vld [vmem:[%s3 + $0x8] sm:$0xf]
  %v118 = vld [vmem:[%s3 + $0xc] sm:$0xf]
  %v119 = vld [vmem:[%s3 + $0x10] sm:$0xf]
  %v120 = vld [vmem:[%s3 + $0x14] sm:$0xf]
  %v121 = vld [vmem:[%s3 + $0x18] sm:$0xf]
  %v122 = vld [vmem:[%s3 + $0x1c] sm:$0xf]
  %v123 = vld [vmem:[%s3 + $0x20] sm:$0xf]
  %v124 = vld [vmem:[%s3 + $0x24] sm:$0xf]
  %v125 = vld [vmem:[%s3 + $0x28] sm:$0xf]
  %v126 = vld [vmem:[%s3 + $0x2c] sm:$0xf]
  %v127 = vld [vmem:[%s3 + $0x30] sm:$0xf]
  %v128 = vld [vmem:[%s3 + $0x34] sm:$0xf]
  %v129 = vld [vmem:[%s3 + $0x38] sm:$0xf]
  %v130 = vld [vmem:[%s3 + $0x3c] sm:$0xf]
  %v147 = vunpack.c.l.b16 %v115
  %v148 = vunpack.c.l.b16 %v116
  %v149 = vunpack.c.l.b16 %v117
  %v150 = vunpack.c.l.b16 %v118
  %v151 = vunpack.c.l.b16 %v119
  %v152 = vunpack.c.l.b16 %v120
  %v153 = vunpack.c.l.b16 %v121
  %v154 = vunpack.c.l.b16 %v122
  %v155 = vunpack.c.l.b16 %v123
  %v156 = vunpack.c.l.b16 %v124
  %v157 = vunpack.c.l.b16 %v125
  %v158 = vunpack.c.l.b16 %v126
  %v159 = vunpack.c.l.b16 %v127
  %v160 = vunpack.c.l.b16 %v128
  %v161 = vunpack.c.l.b16 %v129
  %v162 = vunpack.c.l.b16 %v130
  %v163 = vpack.c.b16 %v148, %v147
  %v164 = vpack.c.b16 %v150, %v149
  %v165 = vpack.c.b16 %v152, %v151
  %v166 = vpack.c.b16 %v154, %v153
  %v167 = vpack.c.b16 %v156, %v155
  %v168 = vpack.c.b16 %v158, %v157
  %v169 = vpack.c.b16 %v160, %v159
  %v170 = vpack.c.b16 %v162, %v161
  %179 = vmatpush.bf16.msra.mxu0 %v170
  %180 = vmatpush.bf16.msra.mxu0 %v169
  %181 = vmatpush.bf16.msra.mxu0 %v168
  %182 = vmatpush.bf16.msra.mxu0 %v167
  %183 = vmatpush.bf16.msra.mxu0 %v166
  %184 = vmatpush.bf16.msra.mxu0 %v165
  %185 = vmatpush.bf16.msra.mxu0 %v164
  %186 = vmatpush.bf16.msra.mxu0 %v163
  %187 = vmatmul.bf16.gmra.mxu0 %v107
  %v188 = vpop.f32.mrf.mxu0
  %v189 = vadd.f32 0.0, %v188
  %v190 = vpop.f32.mrf.mxu0
  %v191 = vadd.f32 0.0, %v190
  %192 = vmatmul.bf16.gmra.mxu0 %v108
  %v193 = vpop.f32.mrf.mxu0
  %v194 = vadd.f32 0.0, %v193
  %v195 = vpop.f32.mrf.mxu0
  %v196 = vadd.f32 0.0, %v195
  %197 = vmatmul.bf16.gmra.mxu0 %v109
  %v198 = vpop.f32.mrf.mxu0
  %v199 = vadd.f32 0.0, %v198
  %v200 = vpop.f32.mrf.mxu0
  %v201 = vadd.f32 0.0, %v200
  %202 = vmatmul.bf16.gmra.mxu0 %v110
  %v203 = vpop.f32.mrf.mxu0
  %v204 = vadd.f32 0.0, %v203
  %v205 = vpop.f32.mrf.mxu0
  %v206 = vadd.f32 0.0, %v205
  %207 = vmatmul.bf16.gmra.mxu0 %v111
  %v208 = vpop.f32.mrf.mxu0
  %v209 = vadd.f32 0.0, %v208
  %v210 = vpop.f32.mrf.mxu0
  %v211 = vadd.f32 0.0, %v210
  %212 = vmatmul.bf16.gmra.mxu0 %v112
  %v213 = vpop.f32.mrf.mxu0
  %v214 = vadd.f32 0.0, %v213
  %v215 = vpop.f32.mrf.mxu0
  %v216 = vadd.f32 0.0, %v215
  %217 = vmatmul.bf16.gmra.mxu0 %v113
  %v218 = vpop.f32.mrf.mxu0
  %v219 = vadd.f32 0.0, %v218
  %v220 = vpop.f32.mrf.mxu0
  %v221 = vadd.f32 0.0, %v220
  %222 = vmatmul.bf16.gmra.mxu0 %v114
  %v223 = vpop.f32.mrf.mxu0
  %v224 = vadd.f32 0.0, %v223
  %v225 = vpop.f32.mrf.mxu0
  %v226 = vadd.f32 0.0, %v225
  %227 = vdwg.mxu0
  %v228 = vpack.c.bf16 %v189, %v189
  %v229 = vpack.c.bf16 %v191, %v191
  %v230 = vpack.c.bf16 %v194, %v194
  %v231 = vpack.c.bf16 %v196, %v196
  %v232 = vpack.c.bf16 %v199, %v199
  %v233 = vpack.c.bf16 %v201, %v201
  %v234 = vpack.c.bf16 %v204, %v204
  %v235 = vpack.c.bf16 %v206, %v206
  %v236 = vpack.c.bf16 %v209, %v209
  %v237 = vpack.c.bf16 %v211, %v211
  %v238 = vpack.c.bf16 %v214, %v214
  %v239 = vpack.c.bf16 %v216, %v216
  %v240 = vpack.c.bf16 %v219, %v219
  %v241 = vpack.c.bf16 %v221, %v221
  %v242 = vpack.c.bf16 %v224, %v224
  %v243 = vpack.c.bf16 %v226, %v226
  %244 = vst [vmem:[%s4] sm:$0xf] %v228
  %245 = vst [vmem:[%s4 + $0x4] sm:$0xf] %v229
  %246 = vst [vmem:[%s4 + $0x8] sm:$0xf] %v230
  %247 = vst [vmem:[%s4 + $0xc] sm:$0xf] %v231
  %248 = vst [vmem:[%s4 + $0x10] sm:$0xf] %v232
  %249 = vst [vmem:[%s4 + $0x14] sm:$0xf] %v233
  %250 = vst [vmem:[%s4 + $0x18] sm:$0xf] %v234
  %251 = vst [vmem:[%s4 + $0x1c] sm:$0xf] %v235
  %252 = vst [vmem:[%s4 + $0x20] sm:$0xf] %v236
  %253 = vst [vmem:[%s4 + $0x24] sm:$0xf] %v237
  %254 = vst [vmem:[%s4 + $0x28] sm:$0xf] %v238
  %255 = vst [vmem:[%s4 + $0x2c] sm:$0xf] %v239
  %256 = vst [vmem:[%s4 + $0x30] sm:$0xf] %v240
  %257 = vst [vmem:[%s4 + $0x34] sm:$0xf] %v241
  %258 = vst [vmem:[%s4 + $0x38] sm:$0xf] %v242
  %259 = vst [vmem:[%s4 + $0x3c] sm:$0xf] %v243
  %v260 = vadd.f32 %v189, %v191
  %v261 = vadd.f32 %v260, %v194
  %v262 = vadd.f32 %v261, %v196
  %v263 = vadd.f32 %v262, %v199
  %v264 = vadd.f32 %v263, %v201
  %v265 = vadd.f32 %v264, %v204
  %v266 = vadd.f32 %v265, %v206
  %v267 = vadd.f32 %v266, %v209
  %v268 = vadd.f32 %v267, %v211
  %v269 = vadd.f32 %v268, %v214
  %v270 = vadd.f32 %v269, %v216
  %v271 = vadd.f32 %v270, %v219
  %v272 = vadd.f32 %v271, %v221
  %v273 = vadd.f32 %v272, %v224
  %v274 = vadd.f32 %v273, %v226
  %v275 = vrot.slane %v274, 4
  %v276 = vadd.f32 %v274, %v275
  %v277 = vrot.slane %v276, 2
  %v278 = vadd.f32 %v276, %v277
  %v279 = vrot.slane %v278, 1
  %v280 = vadd.f32 %v278, %v279
  %v281 = vmul.f32 %v189, %v189
  %v282 = vmul.f32 %v191, %v191
  %v283 = vmul.f32 %v194, %v194
  %v284 = vmul.f32 %v196, %v196
  %v285 = vmul.f32 %v199, %v199
  %v286 = vmul.f32 %v201, %v201
  %v287 = vmul.f32 %v204, %v204
  %v288 = vmul.f32 %v206, %v206
  %v289 = vmul.f32 %v209, %v209
  %v290 = vmul.f32 %v211, %v211
  %v291 = vmul.f32 %v214, %v214
  %v292 = vmul.f32 %v216, %v216
  %v293 = vmul.f32 %v219, %v219
  %v294 = vmul.f32 %v221, %v221
  %v295 = vmul.f32 %v224, %v224
  %v296 = vmul.f32 %v226, %v226
  %v297 = vadd.f32 %v281, %v282
  %v298 = vadd.f32 %v297, %v283
  %v299 = vadd.f32 %v298, %v284
  %v300 = vadd.f32 %v299, %v285
  %v301 = vadd.f32 %v300, %v286
  %v302 = vadd.f32 %v301, %v287
  %v303 = vadd.f32 %v302, %v288
  %v304 = vadd.f32 %v303, %v289
  %v305 = vadd.f32 %v304, %v290
  %v306 = vadd.f32 %v305, %v291
  %v307 = vadd.f32 %v306, %v292
  %v308 = vadd.f32 %v307, %v293
  %v309 = vadd.f32 %v308, %v294
  %v310 = vadd.f32 %v309, %v295
  %v311 = vadd.f32 %v310, %v296
  %v312 = vrot.slane %v311, 4
  %v313 = vadd.f32 %v311, %v312
  %v314 = vrot.slane %v313, 2
  %v315 = vadd.f32 %v313, %v314
  %v316 = vrot.slane %v315, 1
  %v317 = vadd.f32 %v315, %v316
  %vm318 = vcmask 1040384
  %v319 = vsel %vm318, %v280, %v317
  %320 = vst [vmem:[%s5] sm:$0x3] %v319
  // Predicated region
  $region18: #{_lambda_.6} parent=0 // pred_check
    _
  $region19: #{_lambda_.6} parent=0 // pred_check_branch
    %322 = sbr.rel (0) target = $region21
  $region20: #{_lambda_.6} parent=0 // pred_region
    _
  $region21: #{_lambda_.6} parent=0 // pred_fallthru
    _
  // Predicated region
  $region22: #{_lambda_.6} parent=0 // pred_check
    _
  $region23: #{_lambda_.6} parent=0 // pred_check_branch
    %324 = sbr.rel (0) target = $region25
  $region24: #{_lambda_.6} parent=0 // pred_region
    _
  $region25: #{_lambda_.6} parent=0 // pred_fallthru
    _
  // Predicated region
  $region26: #{_lambda_.6} parent=0 // pred_check
    _
  $region27: #{_lambda_.6} parent=0 // pred_check_branch
    %326 = sbr.rel (0) target = $region29
  $region28: #{_lambda_.6} parent=0 // pred_region
    _
  $region29: #{_lambda_.6} parent=0 // pred_fallthru
    _
  // Predicated region
  $region30: #{_lambda_.6} parent=0 // pred_check
    _
  $region31: #{_lambda_.6} parent=0 // pred_check_branch
    %328 = sbr.rel (0) target = $region33
  $region32: #{_lambda_.6} parent=0 // pred_region
    _
  $region33: #{_lambda_.6} parent=0 // pred_fallthru
    _

// kernel: _lambda_.4
$region0: #{_lambda_.4}
  #allocation0 [shape = 'u32[]', space=smem, size = 0x4, offset = 0x4, fixed_abs, tag = 'smem constant byte address 0x4 - core index']
  #allocation1 [shape = 'u32[72,128]{1,0:T(1,128)}', space=vmem, size = 0x9000, scoped, tag = 'internal scratch']
  %s0 = inlined_call_operand.vmem [shape: bf16[2,18,18,128], index: 0, kind: input, shape index: {}]
  %s1 = inlined_call_operand.vmem [shape: f32[1,128], index: 1, kind: input, shape index: {}]
  %s2 = inlined_call_operand.vmem [shape: f32[1,128], index: 2, kind: input, shape index: {}]
  %s3 = inlined_call_operand.vmem [shape: bf16[9,128,128], index: 3, kind: input, shape index: {}]
  %s4 = inlined_call_operand.vmem [shape: bf16[2,16,16,128], index: 4, kind: output, shape index: {0}]
  %s5 = inlined_call_operand.vmem [shape: f32[2,2,128], index: 5, kind: output, shape index: {1}]
  %6 = xla_tuple %s4, %s5
  %s7 = sld [smem:[#allocation0]]
  $region57: #{_lambda_.4} parent=0
    _
  %s9 = ssub.s32 1, %s7
  %s10 = scalar_select 0, %s9, %s7
  loop: start=0, step=1, limit=4
  $region2: #{_lambda_.4} parent=0 // loop_pre_header
    _
  $region3: #{_lambda_.4} parent=0 // loop_header
    %s12 = sphi 0, %s16
    %p13 = scmp.ge.s32.totalorder %s12, 4
    %s22 = sphi 0, %s24
    %s25 = sphi 0, %s22
    %s26 = sphi 0, %s25
    %s42 = sphi 0, %s26
    %s46 = sphi 0, %s46
    %s48 = sphi 0, %s46
    %s49 = sphi 0, %s48
    %s63 = sphi 0, %s49
    %s67 = sphi 0, %s67
    %s69 = sphi 0, %s67
    %s70 = sphi 0, %s69
    %s84 = sphi 0, %s70
    %s88 = sphi 0, %s88
    %s90 = sphi 0, %s88
    %s91 = sphi 0, %s90
    %s105 = sphi 0, %s91
    %s111 = sphi 0, %s113
    %s114 = sphi 0, %s111
    %s115 = sphi 0, %s114
    %s131 = sphi 0, %s115
    %s137 = sphi 0, %s139
    %s140 = sphi 0, %s137
    %s141 = sphi 0, %s140
    %s157 = sphi 0, %s141
  $region4: #{_lambda_.4} parent=0 // loop_header_branch
    %15 = sbr.rel (%p13) target = $region8
  $region5: #{_lambda_.4} parent=0 // loop_body
    %s17 = ssub.s32 %s12, 1
    %s18 = ssub.s32 %s12, 2
    %s19 = sadd.s32 %s12, 1
    %s20 = ssub.s32 %s12, %s19
    %p21 = scmp.eq.s32.totalorder %s20, 0
    %s23 = sadd.s32 %s22, 1
    %s24 = scalar_select %p21, %s22, %s23
    %p27 = pneg %p21
    %p28 = scmp.eq.s32.totalorder %s12, 1
    %p29 = por %p27, %p28
    %p30 = scmp.ne.s32.totalorder %s22, %s25
    %p31 = scmp.eq.s32.totalorder %s12, 0
    %p32 = por %p30, %p31
    %p33 = scmp.ne.s32.totalorder %s22, %s25
    %p34 = scmp.eq.s32.totalorder %s17, 1
    %p35 = por %p33, %p34
    %p36 = scmp.ne.s32.totalorder %s25, %s26
    %p37 = scmp.eq.s32.totalorder %s17, 0
    %p38 = por %p36, %p37
    %p39 = scmp.ne.s32.totalorder %s25, %s26
    %p40 = scmp.eq.s32.totalorder %s18, 1
    %p41 = por %p39, %p40
    %p43 = scmp.ne.s32.totalorder %s26, %s42
    %p44 = scmp.eq.s32.totalorder %s18, 0
    %p45 = por %p43, %p44
    %s47 = sadd.s32 %s46, 1
    %p50 = scmp.eq.s32.totalorder %s12, 1
    %p51 = scmp.ne.s32.totalorder %s46, %s48
    %p52 = scmp.eq.s32.totalorder %s12, 0
    %p53 = por %p51, %p52
    %p54 = scmp.ne.s32.totalorder %s46, %s48
    %p55 = scmp.eq.s32.totalorder %s17, 1
    %p56 = por %p54, %p55
    %p57 = scmp.ne.s32.totalorder %s48, %s49
    %p58 = scmp.eq.s32.totalorder %s17, 0
    %p59 = por %p57, %p58
    %p60 = scmp.ne.s32.totalorder %s48, %s49
    %p61 = scmp.eq.s32.totalorder %s18, 1
    %p62 = por %p60, %p61
    %p64 = scmp.ne.s32.totalorder %s49, %s63
    %p65 = scmp.eq.s32.totalorder %s18, 0
    %p66 = por %p64, %p65
    %s68 = sadd.s32 %s67, 1
    %p71 = scmp.eq.s32.totalorder %s12, 1
    %p72 = scmp.ne.s32.totalorder %s67, %s69
    %p73 = scmp.eq.s32.totalorder %s12, 0
    %p74 = por %p72, %p73
    %p75 = scmp.ne.s32.totalorder %s67, %s69
    %p76 = scmp.eq.s32.totalorder %s17, 1
    %p77 = por %p75, %p76
    %p78 = scmp.ne.s32.totalorder %s69, %s70
    %p79 = scmp.eq.s32.totalorder %s17, 0
    %p80 = por %p78, %p79
    %p81 = scmp.ne.s32.totalorder %s69, %s70
    %p82 = scmp.eq.s32.totalorder %s18, 1
    %p83 = por %p81, %p82
    %p85 = scmp.ne.s32.totalorder %s70, %s84
    %p86 = scmp.eq.s32.totalorder %s18, 0
    %p87 = por %p85, %p86
    %s89 = sadd.s32 %s88, 1
    %p92 = scmp.eq.s32.totalorder %s12, 1
    %p93 = scmp.ne.s32.totalorder %s88, %s90
    %p94 = scmp.eq.s32.totalorder %s12, 0
    %p95 = por %p93, %p94
    %p96 = scmp.ne.s32.totalorder %s88, %s90
    %p97 = scmp.eq.s32.totalorder %s17, 1
    %p98 = por %p96, %p97
    %p99 = scmp.ne.s32.totalorder %s90, %s91
    %p100 = scmp.eq.s32.totalorder %s17, 0
    %p101 = por %p99, %p100
    %p102 = scmp.ne.s32.totalorder %s90, %s91
    %p103 = scmp.eq.s32.totalorder %s18, 1
    %p104 = por %p102, %p103
    %p106 = scmp.ne.s32.totalorder %s91, %s105
    %p107 = scmp.eq.s32.totalorder %s18, 0
    %p108 = por %p106, %p107
    %s109 = ssub.s32 %s12, %s19
    %p110 = scmp.eq.s32.totalorder %s109, 0
    %s112 = sadd.s32 %s111, 1
    %s113 = scalar_select %p110, %s111, %s112
    %p116 = pneg %p110
    %p117 = scmp.eq.s32.totalorder %s12, 1
    %p118 = por %p116, %p117
    %p119 = scmp.ne.s32.totalorder %s111, %s114
    %p120 = scmp.eq.s32.totalorder %s12, 0
    %p121 = por %p119, %p120
    %p122 = scmp.ne.s32.totalorder %s111, %s114
    %p123 = scmp.eq.s32.totalorder %s17, 1
    %p124 = por %p122, %p123
    %p125 = scmp.ne.s32.totalorder %s114, %s115
    %p126 = scmp.eq.s32.totalorder %s17, 0
    %p127 = por %p125, %p126
    %p128 = scmp.ne.s32.totalorder %s114, %s115
    %p129 = scmp.eq.s32.totalorder %s18, 1
    %p130 = por %p128, %p129
    %p132 = scmp.ne.s32.totalorder %s115, %s131
    %p133 = scmp.eq.s32.totalorder %s18, 0
    %p134 = por %p132, %p133
    %s135 = ssub.s32 %s12, %s19
    %p136 = scmp.eq.s32.totalorder %s135, 0
    %s138 = sadd.s32 %s137, 1
    %s139 = scalar_select %p136, %s137, %s138
    %p142 = pneg %p136
    %p143 = scmp.eq.s32.totalorder %s12, 1
    %p144 = por %p142, %p143
    %p145 = scmp.ne.s32.totalorder %s137, %s140
    %p146 = scmp.eq.s32.totalorder %s12, 0
    %p147 = por %p145, %p146
    %p148 = scmp.ne.s32.totalorder %s137, %s140
    %p149 = scmp.eq.s32.totalorder %s17, 1
    %p150 = por %p148, %p149
    %p151 = scmp.ne.s32.totalorder %s140, %s141
    %p152 = scmp.eq.s32.totalorder %s17, 0
    %p153 = por %p151, %p152
    %p154 = scmp.ne.s32.totalorder %s140, %s141
    %p155 = scmp.eq.s32.totalorder %s18, 1
    %p156 = por %p154, %p155
    %p158 = scmp.ne.s32.totalorder %s141, %s157
    %p159 = scmp.eq.s32.totalorder %s18, 0
    %p160 = por %p158, %p159
    %p161 = scmp.le.s32.totalorder 1, %s12
    %p162 = scmp.lt.s32.totalorder %s12, 3
    %p163 = pnand %p161, %p162
    %p164 = pneg %p163
    // Predicated region
    $region9: #{_lambda_.4} parent=5 // pred_check
      _
    $region10: #{_lambda_.4} parent=5 // pred_check_branch
      %166 = sbr.rel (%p163) target = $region12
    $region11: #{_lambda_.4} parent=5 // pred_region
      %s167 = ssub.s32 %s12, 1
      // Predicated region
      $region13: #{_lambda_.4} parent=11 // pred_check
        %p168 = pneg %p59
      $region14: #{_lambda_.4} parent=11 // pred_check_branch
        %170 = sbr.rel (%p168) target = $region16
      $region15: #{_lambda_.4} parent=11 // pred_region
        _
      $region16: #{_lambda_.4} parent=11 // pred_fallthru
        _
      // Predicated region
      $region17: #{_lambda_.4} parent=11 // pred_check
        %p171 = pneg %p80
      $region18: #{_lambda_.4} parent=11 // pred_check_branch
        %173 = sbr.rel (%p171) target = $region20
      $region19: #{_lambda_.4} parent=11 // pred_region
        _
      $region20: #{_lambda_.4} parent=11 // pred_fallthru
        _
      // Predicated region
      $region21: #{_lambda_.4} parent=11 // pred_check
        %p174 = pneg %p101
      $region22: #{_lambda_.4} parent=11 // pred_check_branch
        %176 = sbr.rel (%p174) target = $region24
      $region23: #{_lambda_.4} parent=11 // pred_region
        _
      $region24: #{_lambda_.4} parent=11 // pred_fallthru
        _
    $region12: #{_lambda_.4} parent=5 // pred_fallthru
      _
    %p177 = scmp.lt.s32.totalorder %s12, 2
    // Predicated region
    $region25: #{_lambda_.4} parent=5 // pred_check
      %p178 = pneg %p177
    $region26: #{_lambda_.4} parent=5 // pred_check_branch
      %180 = sbr.rel (%p178) target = $region28
    $region27: #{_lambda_.4} parent=5 // pred_region
      // Predicated region
      $region29: #{_lambda_.4} parent=27 // pred_check
        %p181 = pneg %p32
      $region30: #{_lambda_.4} parent=27 // pred_check_branch
        %183 = sbr.rel (%p181) target = $region32
      $region31: #{_lambda_.4} parent=27 // pred_region
        %p184 = scmp.lt.s32.totalorder %s12, 1
        %s185 = scalar_select %p184, %s12, 1
        %s186 = smul.addr %s185, 54
        %s187 = smul.addr %s186, 4
        %s188 = scalar_lea.vmem %s0, %s187
      $region32: #{_lambda_.4} parent=27 // pred_fallthru
        _
    $region28: #{_lambda_.4} parent=5 // pred_fallthru
      _
    %p189 = scmp.le.s32.totalorder 1, %s12
    %p190 = scmp.lt.s32.totalorder %s12, 3
    %p191 = pnand %p189, %p190
    %p192 = pneg %p191
    // Predicated region
    $region33: #{_lambda_.4} parent=5 // pred_check
      _
    $region34: #{_lambda_.4} parent=5 // pred_check_branch
      %194 = sbr.rel (%p191) target = $region36
    $region35: #{_lambda_.4} parent=5 // pred_region
      %s195 = ssub.s32 %s12, 1
      %p196 = scmp.lt.s32.totalorder %s17, 1
      %s197 = scalar_select %p196, %s17, 1
      %s198 = smul.addr %s197, 54
      %s199 = smul.addr %s198, 4
      %s200 = scalar_lea.vmem %s0, %s199
      %p201 = pneg %p38
      %p202 = pneg %p35
      %p203 = pneg %p59
      %p204 = pneg %p56
      %p205 = pneg %p80
      %p206 = pneg %p77
      %p207 = pneg %p101
      %p208 = pneg %p98
      %p209 = pneg %p127
      %p210 = pneg %p124
      %p211 = scmp.lt.s32.totalorder %s17, 1
      %s212 = scalar_select %p211, %s17, 1
      %s213 = smul.addr %s212, 32
      %s214 = smul.addr %s213, 4
      %s215 = scalar_lea.vmem %s4, %s214
      %p216 = pneg %p153
      %p217 = pneg %p150
      %p218 = scmp.lt.s32.totalorder %s17, 1
      %s219 = scalar_select %p218, %s17, 1
      %s220 = smul.addr %s219, 2
      %s221 = scalar_lea.vmem %s5, %s220
      %p222 = scmp.lt.s32.totalorder %s17, 1
      %s223 = scalar_select %p222, %s17, 1
      %s224 = smul.addr %s223, 54
      %s225 = smul.addr %s224, 4
      %s226 = scalar_lea.vmem %s0, %s225
      %p227 = scmp.lt.s32.totalorder %s17, 1
      %s228 = scalar_select %p227, %s17, 1
      %s229 = smul.addr %s228, 32
      %s230 = smul.addr %s229, 4
      %s231 = scalar_lea.vmem %s4, %s230
      %p232 = scmp.lt.s32.totalorder %s17, 1
      %s233 = scalar_select %p232, %s17, 1
      %s234 = smul.addr %s233, 2
      %s235 = scalar_lea.vmem %s5, %s234
      %v236 = vld [vmem:[%s226] sm:$0xf]
      %v237 = vld [vmem:[%s226 + $0x4] sm:$0xf]
      %v238 = vld [vmem:[%s226 + $0x8] sm:$0x1]
      %v239 = vld [vmem:[%s226 + $0xc] sm:$0xf]
      %v240 = vld [vmem:[%s226 + $0x10] sm:$0xf]
      %v241 = vld [vmem:[%s226 + $0x14] sm:$0x1]
      %v242 = vld [vmem:[%s226 + $0x18] sm:$0xf]
      %v243 = vld [vmem:[%s226 + $0x1c] sm:$0xf]
      %v244 = vld [vmem:[%s226 + $0x20] sm:$0x1]
      %v245 = vld [vmem:[%s226 + $0x24] sm:$0xf]
      %v246 = vld [vmem:[%s226 + $0x28] sm:$0xf]
      %v247 = vld [vmem:[%s226 + $0x2c] sm:$0x1]
      %v248 = vld [vmem:[%s226 + $0x30] sm:$0xf]
      %v249 = vld [vmem:[%s226 + $0x34] sm:$0xf]
      %v250 = vld [vmem:[%s226 + $0x38] sm:$0x1]
      %v251 = vld [vmem:[%s226 + $0x3c] sm:$0xf]
      %v252 = vld [vmem:[%s226 + $0x40] sm:$0xf]
      %v253 = vld [vmem:[%s226 + $0x44] sm:$0x1]
      %v254 = vld [vmem:[%s226 + $0x48] sm:$0xf]
      %v255 = vld [vmem:[%s226 + $0x4c] sm:$0xf]
      %v256 = vld [vmem:[%s226 + $0x50] sm:$0x1]
      %v257 = vld [vmem:[%s226 + $0x54] sm:$0xf]
      %v258 = vld [vmem:[%s226 + $0x58] sm:$0xf]
      %v259 = vld [vmem:[%s226 + $0x5c] sm:$0x1]
      %v260 = vld [vmem:[%s226 + $0x60] sm:$0xf]
      %v261 = vld [vmem:[%s226 + $0x64] sm:$0xf]
      %v262 = vld [vmem:[%s226 + $0x68] sm:$0x1]
      %v263 = vld [vmem:[%s226 + $0x6c] sm:$0xf]
      %v264 = vld [vmem:[%s226 + $0x70] sm:$0xf]
      %v265 = vld [vmem:[%s226 + $0x74] sm:$0x1]
      %v266 = vld [vmem:[%s226 + $0x78] sm:$0xf]
      %v267 = vld [vmem:[%s226 + $0x7c] sm:$0xf]
      %v268 = vld [vmem:[%s226 + $0x80] sm:$0x1]
      %v269 = vld [vmem:[%s226 + $0x84] sm:$0xf]
      %v270 = vld [vmem:[%s226 + $0x88] sm:$0xf]
      %v271 = vld [vmem:[%s226 + $0x8c] sm:$0x1]
      %v272 = vld [vmem:[%s226 + $0x90] sm:$0xf]
      %v273 = vld [vmem:[%s226 + $0x94] sm:$0xf]
      %v274 = vld [vmem:[%s226 + $0x98] sm:$0x1]
      %v275 = vld [vmem:[%s226 + $0x9c] sm:$0xf]
      %v276 = vld [vmem:[%s226 + $0xa0] sm:$0xf]
      %v277 = vld [vmem:[%s226 + $0xa4] sm:$0x1]
      %v278 = vld [vmem:[%s226 + $0xa8] sm:$0xf]
      %v279 = vld [vmem:[%s226 + $0xac] sm:$0xf]
      %v280 = vld [vmem:[%s226 + $0xb0] sm:$0x1]
      %v281 = vld [vmem:[%s226 + $0xb4] sm:$0xf]
      %v282 = vld [vmem:[%s226 + $0xb8] sm:$0xf]
      %v283 = vld [vmem:[%s226 + $0xbc] sm:$0x1]
      %v284 = vld [vmem:[%s226 + $0xc0] sm:$0xf]
      %v285 = vld [vmem:[%s226 + $0xc4] sm:$0xf]
      %v286 = vld [vmem:[%s226 + $0xc8] sm:$0x1]
      %v287 = vld [vmem:[%s226 + $0xcc] sm:$0xf]
      %v288 = vld [vmem:[%s226 + $0xd0] sm:$0xf]
      %v289 = vld [vmem:[%s226 + $0xd4] sm:$0x1]
      %v290 = vunpack.c.l.bf16 %v236
      %v291 = vunpack.c.l.bf16 %v237
      %v292 = vunpack.c.l.bf16 %v238
      %v293 = vunpack.c.l.bf16 %v239
      %v294 = vunpack.c.l.bf16 %v240
      %v295 = vunpack.c.l.bf16 %v241
      %v296 = vunpack.c.l.bf16 %v242
      %v297 = vunpack.c.l.bf16 %v243
      %v298 = vunpack.c.l.bf16 %v244
      %v299 = vunpack.c.l.bf16 %v245
      %v300 = vunpack.c.l.bf16 %v246
      %v301 = vunpack.c.l.bf16 %v247
      %v302 = vunpack.c.l.bf16 %v248
      %v303 = vunpack.c.l.bf16 %v249
      %v304 = vunpack.c.l.bf16 %v250
      %v305 = vunpack.c.l.bf16 %v251
      %v306 = vunpack.c.l.bf16 %v252
      %v307 = vunpack.c.l.bf16 %v253
      %v308 = vunpack.c.l.bf16 %v254
      %v309 = vunpack.c.l.bf16 %v255
      %v310 = vunpack.c.l.bf16 %v256
      %v311 = vunpack.c.l.bf16 %v257
      %v312 = vunpack.c.l.bf16 %v258
      %v313 = vunpack.c.l.bf16 %v259
      %v314 = vunpack.c.l.bf16 %v260
      %v315 = vunpack.c.l.bf16 %v261
      %v316 = vunpack.c.l.bf16 %v262
      %v317 = vunpack.c.l.bf16 %v263
      %v318 = vunpack.c.l.bf16 %v264
      %v319 = vunpack.c.l.bf16 %v265
      %v320 = vunpack.c.l.bf16 %v266
      %v321 = vunpack.c.l.bf16 %v267
      %v322 = vunpack.c.l.bf16 %v268
      %v323 = vunpack.c.l.bf16 %v269
      %v324 = vunpack.c.l.bf16 %v270
      %v325 = vunpack.c.l.bf16 %v271
      %v326 = vunpack.c.l.bf16 %v272
      %v327 = vunpack.c.l.bf16 %v273
      %v328 = vunpack.c.l.bf16 %v274
      %v329 = vunpack.c.l.bf16 %v275
      %v330 = vunpack.c.l.bf16 %v276
      %v331 = vunpack.c.l.bf16 %v277
      %v332 = vunpack.c.l.bf16 %v278
      %v333 = vunpack.c.l.bf16 %v279
      %v334 = vunpack.c.l.bf16 %v280
      %v335 = vunpack.c.l.bf16 %v281
      %v336 = vunpack.c.l.bf16 %v282
      %v337 = vunpack.c.l.bf16 %v283
      %v338 = vunpack.c.l.bf16 %v284
      %v339 = vunpack.c.l.bf16 %v285
      %v340 = vunpack.c.l.bf16 %v286
      %v341 = vunpack.c.l.bf16 %v287
      %v342 = vunpack.c.l.bf16 %v288
      %v343 = vunpack.c.l.bf16 %v289
      %v344 = vpack.c.bf16 %v291, %v290
      %v345 = vpack.c.bf16 %v294, %v293
      %v346 = vpack.c.bf16 %v297, %v296
      %v347 = vpack.c.bf16 %v300, %v299
      %v348 = vpack.c.bf16 %v303, %v302
      %v349 = vpack.c.bf16 %v306, %v305
      %v350 = vpack.c.bf16 %v309, %v308
      %v351 = vpack.c.bf16 %v312, %v311
      %v352 = vpack.c.bf16 %v315, %v314
      %v353 = vpack.c.bf16 %v318, %v317
      %v354 = vpack.c.bf16 %v321, %v320
      %v355 = vpack.c.bf16 %v324, %v323
      %v356 = vpack.c.bf16 %v327, %v326
      %v357 = vpack.c.bf16 %v330, %v329
      %v358 = vpack.c.bf16 %v333, %v332
      %v359 = vpack.c.bf16 %v336, %v335
      %v360 = vld [vmem:[%s3] sm:$0xf]
      %v361 = vld [vmem:[%s3 + $0x4] sm:$0xf]
      %v362 = vld [vmem:[%s3 + $0x8] sm:$0xf]
      %v363 = vld [vmem:[%s3 + $0xc] sm:$0xf]
      %v364 = vld [vmem:[%s3 + $0x10] sm:$0xf]
      %v365 = vld [vmem:[%s3 + $0x14] sm:$0xf]
      %v366 = vld [vmem:[%s3 + $0x18] sm:$0xf]
      %v367 = vld [vmem:[%s3 + $0x1c] sm:$0xf]
      %v368 = vld [vmem:[%s3 + $0x20] sm:$0xf]
      %v369 = vld [vmem:[%s3 + $0x24] sm:$0xf]
      %v370 = vld [vmem:[%s3 + $0x28] sm:$0xf]
      %v371 = vld [vmem:[%s3 + $0x2c] sm:$0xf]
      %v372 = vld [vmem:[%s3 + $0x30] sm:$0xf]
      %v373 = vld [vmem:[%s3 + $0x34] sm:$0xf]
      %v374 = vld [vmem:[%s3 + $0x38] sm:$0xf]
      %v375 = vld [vmem:[%s3 + $0x3c] sm:$0xf]
      %vm424 = vcmask 1046528
      %v425 = vrot.slane %v290, 1
      %v426 = vrot.slane %v291, 1
      %v427 = vsel %vm424, %v425, %v426
      %v428 = vrot.slane %v292, 1
      %v429 = vsel %vm424, %v426, %v428
      %v430 = vrot.slane %v293, 1
      %v431 = vrot.slane %v294, 1
      %v432 = vsel %vm424, %v430, %v431
      %v433 = vrot.slane %v295, 1
      %v434 = vsel %vm424, %v431, %v433
      %v435 = vrot.slane %v296, 1
      %v436 = vrot.slane %v297, 1
      %v437 = vsel %vm424, %v435, %v436
      %v438 = vrot.slane %v298, 1
      %v439 = vsel %vm424, %v436, %v438
      %v440 = vrot.slane %v299, 1
      %v441 = vrot.slane %v300, 1
      %v442 = vsel %vm424, %v440, %v441
      %v443 = vrot.slane %v301, 1
      %v444 = vsel %vm424, %v441, %v443
      %v445 = vrot.slane %v302, 1
      %v446 = vrot.slane %v303, 1
      %v447 = vsel %vm424, %v445, %v446
      %v448 = vrot.slane %v304, 1
      %v449 = vsel %vm424, %v446, %v448
      %v450 = vrot.slane %v305, 1
      %v451 = vrot.slane %v306, 1
      %v452 = vsel %vm424, %v450, %v451
      %v453 = vrot.slane %v307, 1
      %v454 = vsel %vm424, %v451, %v453
      %v455 = vrot.slane %v308, 1
      %v456 = vrot.slane %v309, 1
      %v457 = vsel %vm424, %v455, %v456
      %v458 = vrot.slane %v310, 1
      %v459 = vsel %vm424, %v456, %v458
      %v460 = vrot.slane %v311, 1
      %v461 = vrot.slane %v312, 1
      %v462 = vsel %vm424, %v460, %v461
      %v463 = vrot.slane %v313, 1
      %v464 = vsel %vm424, %v461, %v463
      %v465 = vrot.slane %v314, 1
      %v466 = vrot.slane %v315, 1
      %v467 = vsel %vm424, %v465, %v466
      %v468 = vrot.slane %v316, 1
      %v469 = vsel %vm424, %v466, %v468
      %v470 = vrot.slane %v317, 1
      %v471 = vrot.slane %v318, 1
      %v472 = vsel %vm424, %v470, %v471
      %v473 = vrot.slane %v319, 1
      %v474 = vsel %vm424, %v471, %v473
      %v475 = vrot.slane %v320, 1
      %v476 = vrot.slane %v321, 1
      %v477 = vsel %vm424, %v475, %v476
      %v478 = vrot.slane %v322, 1
      %v479 = vsel %vm424, %v476, %v478
      %v480 = vrot.slane %v323, 1
      %v481 = vrot.slane %v324, 1
      %v482 = vsel %vm424, %v480, %v481
      %v483 = vrot.slane %v325, 1
      %v484 = vsel %vm424, %v481, %v483
      %v485 = vrot.slane %v326, 1
      %v486 = vrot.slane %v327, 1
      %v487 = vsel %vm424, %v485, %v486
      %v488 = vrot.slane %v328, 1
      %v489 = vsel %vm424, %v486, %v488
      %v490 = vrot.slane %v329, 1
      %v491 = vrot.slane %v330, 1
      %v492 = vsel %vm424, %v490, %v491
      %v493 = vrot.slane %v331, 1
      %v494 = vsel %vm424, %v491, %v493
      %v495 = vrot.slane %v332, 1
      %v496 = vrot.slane %v333, 1
      %v497 = vsel %vm424, %v495, %v496
      %v498 = vrot.slane %v334, 1
      %v499 = vsel %vm424, %v496, %v498
      %v500 = vrot.slane %v335, 1
      %v501 = vrot.slane %v336, 1
      %v502 = vsel %vm424, %v500, %v501
      %v503 = vrot.slane %v337, 1
      %v504 = vsel %vm424, %v501, %v503
      %v537 = vpack.c.bf16 %v429, %v427
      %v538 = vpack.c.bf16 %v434, %v432
      %v539 = vpack.c.bf16 %v439, %v437
      %v540 = vpack.c.bf16 %v444, %v442
      %v541 = vpack.c.bf16 %v449, %v447
      %v542 = vpack.c.bf16 %v454, %v452
      %v543 = vpack.c.bf16 %v459, %v457
      %v544 = vpack.c.bf16 %v464, %v462
      %v545 = vpack.c.bf16 %v469, %v467
      %v546 = vpack.c.bf16 %v474, %v472
      %v547 = vpack.c.bf16 %v479, %v477
      %v548 = vpack.c.bf16 %v484, %v482
      %v549 = vpack.c.bf16 %v489, %v487
      %v550 = vpack.c.bf16 %v494, %v492
      %v551 = vpack.c.bf16 %v499, %v497
      %v552 = vpack.c.bf16 %v504, %v502
      %s553 = scalar_lea.vmem %s3, 64
      %v554 = vld [vmem:[%s553] sm:$0xf]
      %v555 = vld [vmem:[%s553 + $0x4] sm:$0xf]
      %v556 = vld [vmem:[%s553 + $0x8] sm:$0xf]
      %v557 = vld [vmem:[%s553 + $0xc] sm:$0xf]
      %v558 = vld [vmem:[%s553 + $0x10] sm:$0xf]
      %v559 = vld [vmem:[%s553 + $0x14] sm:$0xf]
      %v560 = vld [vmem:[%s553 + $0x18] sm:$0xf]
      %v561 = vld [vmem:[%s553 + $0x1c] sm:$0xf]
      %v562 = vld [vmem:[%s553 + $0x20] sm:$0xf]
      %v563 = vld [vmem:[%s553 + $0x24] sm:$0xf]
      %v564 = vld [vmem:[%s553 + $0x28] sm:$0xf]
      %v565 = vld [vmem:[%s553 + $0x2c] sm:$0xf]
      %v566 = vld [vmem:[%s553 + $0x30] sm:$0xf]
      %v567 = vld [vmem:[%s553 + $0x34] sm:$0xf]
      %v568 = vld [vmem:[%s553 + $0x38] sm:$0xf]
      %v569 = vld [vmem:[%s553 + $0x3c] sm:$0xf]
      %v586 = vunpack.c.l.b16 %v554
      %v587 = vunpack.c.l.b16 %v555
      %v588 = vunpack.c.l.b16 %v556
      %v589 = vunpack.c.l.b16 %v557
      %v590 = vunpack.c.l.b16 %v558
      %v591 = vunpack.c.l.b16 %v559
      %v592 = vunpack.c.l.b16 %v560
      %v593 = vunpack.c.l.b16 %v561
      %v594 = vunpack.c.l.b16 %v562
      %v595 = vunpack.c.l.b16 %v563
      %v596 = vunpack.c.l.b16 %v564
      %v597 = vunpack.c.l.b16 %v565
      %v598 = vunpack.c.l.b16 %v566
      %v599 = vunpack.c.l.b16 %v567
      %v600 = vunpack.c.l.b16 %v568
      %v601 = vunpack.c.l.b16 %v569
      %v602 = vpack.c.b16 %v587, %v586
      %v603 = vpack.c.b16 %v589, %v588
      %v604 = vpack.c.b16 %v591, %v590
      %v605 = vpack.c.b16 %v593, %v592
      %v606 = vpack.c.b16 %v595, %v594
      %v607 = vpack.c.b16 %v597, %v596
      %v608 = vpack.c.b16 %v599, %v598
      %v609 = vpack.c.b16 %v601, %v600
      %618 = vmatpush.bf16.msra.mxu0 %v609
      %619 = vmatpush.bf16.msra.mxu0 %v608
      %620 = vmatpush.bf16.msra.mxu0 %v607
      %621 = vmatpush.bf16.msra.mxu0 %v606
      %622 = vmatpush.bf16.msra.mxu0 %v605
      %623 = vmatpush.bf16.msra.mxu0 %v604
      %624 = vmatpush.bf16.msra.mxu0 %v603
      %625 = vmatpush.bf16.msra.mxu0 %v602
      %626 = vmatmul.bf16.gmra.mxu0 %v537
      %v627 = vpop.f32.mrf.mxu0
      %v628 = vadd.f32 0.0, %v627
      %v629 = vpop.f32.mrf.mxu0
      %v630 = vadd.f32 0.0, %v629
      %631 = vmatmul.bf16.gmra.mxu0 %v538
      %v632 = vpop.f32.mrf.mxu0
      %v633 = vadd.f32 0.0, %v632
      %v634 = vpop.f32.mrf.mxu0
      %v635 = vadd.f32 0.0, %v634
      %636 = vmatmul.bf16.gmra.mxu0 %v539
      %v637 = vpop.f32.mrf.mxu0
      %v638 = vadd.f32 0.0, %v637
      %v639 = vpop.f32.mrf.mxu0
      %v640 = vadd.f32 0.0, %v639
      %641 = vmatmul.bf16.gmra.mxu0 %v540
      %v642 = vpop.f32.mrf.mxu0
      %v643 = vadd.f32 0.0, %v642
      %v644 = vpop.f32.mrf.mxu0
      %v645 = vadd.f32 0.0, %v644
      %646 = vmatmul.bf16.gmra.mxu0 %v541
      %v647 = vpop.f32.mrf.mxu0
      %v648 = vadd.f32 0.0, %v647
      %v649 = vpop.f32.mrf.mxu0
      %v650 = vadd.f32 0.0, %v649
      %651 = vmatmul.bf16.gmra.mxu0 %v542
      %v652 = vpop.f32.mrf.mxu0
      %v653 = vadd.f32 0.0, %v652
      %v654 = vpop.f32.mrf.mxu0
      %v655 = vadd.f32 0.0, %v654
      %656 = vmatmul.bf16.gmra.mxu0 %v543
      %v657 = vpop.f32.mrf.mxu0
      %v658 = vadd.f32 0.0, %v657
      %v659 = vpop.f32.mrf.mxu0
      %v660 = vadd.f32 0.0, %v659
      %661 = vmatmul.bf16.gmra.mxu0 %v544
      %v662 = vpop.f32.mrf.mxu0
      %v663 = vadd.f32 0.0, %v662
      %v664 = vpop.f32.mrf.mxu0
      %v665 = vadd.f32 0.0, %v664
      %666 = vmatmul.bf16.gmra.mxu0 %v545
      %v667 = vpop.f32.mrf.mxu0
      %v668 = vadd.f32 0.0, %v667
      %v669 = vpop.f32.mrf.mxu0
      %v670 = vadd.f32 0.0, %v669
      %671 = vmatmul.bf16.gmra.mxu0 %v546
      %v672 = vpop.f32.mrf.mxu0
      %v673 = vadd.f32 0.0, %v672
      %v674 = vpop.f32.mrf.mxu0
      %v675 = vadd.f32 0.0, %v674
      %676 = vmatmul.bf16.gmra.mxu0 %v547
      %v677 = vpop.f32.mrf.mxu0
      %v678 = vadd.f32 0.0, %v677
      %v679 = vpop.f32.mrf.mxu0
      %v680 = vadd.f32 0.0, %v679
      %681 = vmatmul.bf16.gmra.mxu0 %v548
      %v682 = vpop.f32.mrf.mxu0
      %v683 = vadd.f32 0.0, %v682
      %v684 = vpop.f32.mrf.mxu0
      %v685 = vadd.f32 0.0, %v684
      %686 = vmatmul.bf16.gmra.mxu0 %v549
      %v687 = vpop.f32.mrf.mxu0
      %v688 = vadd.f32 0.0, %v687
      %v689 = vpop.f32.mrf.mxu0
      %v690 = vadd.f32 0.0, %v689
      %691 = vmatmul.bf16.gmra.mxu0 %v550
      %v692 = vpop.f32.mrf.mxu0
      %v693 = vadd.f32 0.0, %v692
      %v694 = vpop.f32.mrf.mxu0
      %v695 = vadd.f32 0.0, %v694
      %696 = vmatmul.bf16.gmra.mxu0 %v551
      %v697 = vpop.f32.mrf.mxu0
      %v698 = vadd.f32 0.0, %v697
      %v699 = vpop.f32.mrf.mxu0
      %v700 = vadd.f32 0.0, %v699
      %701 = vmatmul.bf16.gmra.mxu0 %v552
      %v702 = vpop.f32.mrf.mxu0
      %v703 = vadd.f32 0.0, %v702
      %v704 = vpop.f32.mrf.mxu0
      %v705 = vadd.f32 0.0, %v704
      %706 = vdwg.mxu0
      %v723 = vunpack.c.l.b16 %v360
      %v724 = vunpack.c.l.b16 %v361
      %v725 = vunpack.c.l.b16 %v362
      %v726 = vunpack.c.l.b16 %v363
      %v727 = vunpack.c.l.b16 %v364
      %v728 = vunpack.c.l.b16 %v365
      %v729 = vunpack.c.l.b16 %v366
      %v730 = vunpack.c.l.b16 %v367
      %v731 = vunpack.c.l.b16 %v368
      %v732 = vunpack.c.l.b16 %v369
      %v733 = vunpack.c.l.b16 %v370
      %v734 = vunpack.c.l.b16 %v371
      %v735 = vunpack.c.l.b16 %v372
      %v736 = vunpack.c.l.b16 %v373
      %v737 = vunpack.c.l.b16 %v374
      %v738 = vunpack.c.l.b16 %v375
      %v739 = vpack.c.b16 %v724, %v723
      %v740 = vpack.c.b16 %v726, %v725
      %v741 = vpack.c.b16 %v728, %v727
      %v742 = vpack.c.b16 %v730, %v729
      %v743 = vpack.c.b16 %v732, %v731
      %v744 = vpack.c.b16 %v734, %v733
      %v745 = vpack.c.b16 %v736, %v735
      %v746 = vpack.c.b16 %v738, %v737
      %755 = vmatpush.bf16.msra.mxu0 %v746
      %756 = vmatpush.bf16.msra.mxu0 %v745
      %757 = vmatpush.bf16.msra.mxu0 %v744
      %758 = vmatpush.bf16.msra.mxu0 %v743
      %759 = vmatpush.bf16.msra.mxu0 %v742
      %760 = vmatpush.bf16.msra.mxu0 %v741
      %761 = vmatpush.bf16.msra.mxu0 %v740
      %762 = vmatpush.bf16.msra.mxu0 %v739
      %763 = vmatmul.bf16.gmra.mxu0 %v344
      %v764 = vpop.f32.mrf.mxu0
      %v765 = vadd.f32 %v628, %v764
      %v766 = vpop.f32.mrf.mxu0
      %v767 = vadd.f32 %v630, %v766
      %768 = vmatmul.bf16.gmra.mxu0 %v345
      %v769 = vpop.f32.mrf.mxu0
      %v770 = vadd.f32 %v633, %v769
      %v771 = vpop.f32.mrf.mxu0
      %v772 = vadd.f32 %v635, %v771
      %773 = vmatmul.bf16.gmra.mxu0 %v346
      %v774 = vpop.f32.mrf.mxu0
      %v775 = vadd.f32 %v638, %v774
      %v776 = vpop.f32.mrf.mxu0
      %v777 = vadd.f32 %v640, %v776
      %778 = vmatmul.bf16.gmra.mxu0 %v347
      %v779 = vpop.f32.mrf.mxu0
      %v780 = vadd.f32 %v643, %v779
      %v781 = vpop.f32.mrf.mxu0
      %v782 = vadd.f32 %v645, %v781
      %783 = vmatmul.bf16.gmra.mxu0 %v348
      %v784 = vpop.f32.mrf.mxu0
      %v785 = vadd.f32 %v648, %v784
      %v786 = vpop.f32.mrf.mxu0
      %v787 = vadd.f32 %v650, %v786
      %788 = vmatmul.bf16.gmra.mxu0 %v349
      %v789 = vpop.f32.mrf.mxu0
      %v790 = vadd.f32 %v653, %v789
      %v791 = vpop.f32.mrf.mxu0
      %v792 = vadd.f32 %v655, %v791
      %793 = vmatmul.bf16.gmra.mxu0 %v350
      %v794 = vpop.f32.mrf.mxu0
      %v795 = vadd.f32 %v658, %v794
      %v796 = vpop.f32.mrf.mxu0
      %v797 = vadd.f32 %v660, %v796
      %798 = vmatmul.bf16.gmra.mxu0 %v351
      %v799 = vpop.f32.mrf.mxu0
      %v800 = vadd.f32 %v663, %v799
      %v801 = vpop.f32.mrf.mxu0
      %v802 = vadd.f32 %v665, %v801
      %803 = vmatmul.bf16.gmra.mxu0 %v352
      %v804 = vpop.f32.mrf.mxu0
      %v805 = vadd.f32 %v668, %v804
      %v806 = vpop.f32.mrf.mxu0
      %v807 = vadd.f32 %v670, %v806
      %808 = vmatmul.bf16.gmra.mxu0 %v353
      %v809 = vpop.f32.mrf.mxu0
      %v810 = vadd.f32 %v673, %v809
      %v811 = vpop.f32.mrf.mxu0
      %v812 = vadd.f32 %v675, %v811
      %813 = vmatmul.bf16.gmra.mxu0 %v354
      %v814 = vpop.f32.mrf.mxu0
      %v815 = vadd.f32 %v678, %v814
      %v816 = vpop.f32.mrf.mxu0
      %v817 = vadd.f32 %v680, %v816
      %818 = vmatmul.bf16.gmra.mxu0 %v355
      %v819 = vpop.f32.mrf.mxu0
      %v820 = vadd.f32 %v683, %v819
      %v821 = vpop.f32.mrf.mxu0
      %v822 = vadd.f32 %v685, %v821
      %823 = vmatmul.bf16.gmra.mxu0 %v356
      %v824 = vpop.f32.mrf.mxu0
      %v825 = vadd.f32 %v688, %v824
      %v826 = vpop.f32.mrf.mxu0
      %v827 = vadd.f32 %v690, %v826
      %828 = vmatmul.bf16.gmra.mxu0 %v357
      %v829 = vpop.f32.mrf.mxu0
      %v830 = vadd.f32 %v693, %v829
      %v831 = vpop.f32.mrf.mxu0
      %v832 = vadd.f32 %v695, %v831
      %833 = vmatmul.bf16.gmra.mxu0 %v358
      %v834 = vpop.f32.mrf.mxu0
      %v835 = vadd.f32 %v698, %v834
      %v836 = vpop.f32.mrf.mxu0
      %v837 = vadd.f32 %v700, %v836
      %838 = vmatmul.bf16.gmra.mxu0 %v359
      %v839 = vpop.f32.mrf.mxu0
      %v840 = vadd.f32 %v703, %v839
      %v841 = vpop.f32.mrf.mxu0
      %v842 = vadd.f32 %v705, %v841
      %843 = vdwg.mxu0
      %vm844 = vcmask 1045504
      %v845 = vrot.slane %v290, 2
      %v846 = vrot.slane %v291, 2
      %v847 = vsel %vm844, %v845, %v846
      %v848 = vrot.slane %v292, 2
      %v849 = vsel %vm844, %v846, %v848
      %v850 = vrot.slane %v293, 2
      %v851 = vrot.slane %v294, 2
      %v852 = vsel %vm844, %v850, %v851
      %v853 = vrot.slane %v295, 2
      %v854 = vsel %vm844, %v851, %v853
      %v855 = vrot.slane %v296, 2
      %v856 = vrot.slane %v297, 2
      %v857 = vsel %vm844, %v855, %v856
      %v858 = vrot.slane %v298, 2
      %v859 = vsel %vm844, %v856, %v858
      %v860 = vrot.slane %v299, 2
      %v861 = vrot.slane %v300, 2
      %v862 = vsel %vm844, %v860, %v861
      %v863 = vrot.slane %v301, 2
      %v864 = vsel %vm844, %v861, %v863
      %v865 = vrot.slane %v302, 2
      %v866 = vrot.slane %v303, 2
      %v867 = vsel %vm844, %v865, %v866
      %v868 = vrot.slane %v304, 2
      %v869 = vsel %vm844, %v866, %v868
      %v870 = vrot.slane %v305, 2
      %v871 = vrot.slane %v306, 2
      %v872 = vsel %vm844, %v870, %v871
      %v873 = vrot.slane %v307, 2
      %v874 = vsel %vm844, %v871, %v873
      %v875 = vrot.slane %v308, 2
      %v876 = vrot.slane %v309, 2
      %v877 = vsel %vm844, %v875, %v876
      %v878 = vrot.slane %v310, 2
      %v879 = vsel %vm844, %v876, %v878
      %v880 = vrot.slane %v311, 2
      %v881 = vrot.slane %v312, 2
      %v882 = vsel %vm844, %v880, %v881
      %v883 = vrot.slane %v313, 2
      %v884 = vsel %vm844, %v881, %v883
      %v885 = vrot.slane %v314, 2
      %v886 = vrot.slane %v315, 2
      %v887 = vsel %vm844, %v885, %v886
      %v888 = vrot.slane %v316, 2
      %v889 = vsel %vm844, %v886, %v888
      %v890 = vrot.slane %v317, 2
      %v891 = vrot.slane %v318, 2
      %v892 = vsel %vm844, %v890, %v891
      %v893 = vrot.slane %v319, 2
      %v894 = vsel %vm844, %v891, %v893
      %v895 = vrot.slane %v320, 2
      %v896 = vrot.slane %v321, 2
      %v897 = vsel %vm844, %v895, %v896
      %v898 = vrot.slane %v322, 2
      %v899 = vsel %vm844, %v896, %v898
      %v900 = vrot.slane %v323, 2
      %v901 = vrot.slane %v324, 2
      %v902 = vsel %vm844, %v900, %v901
      %v903 = vrot.slane %v325, 2
      %v904 = vsel %vm844, %v901, %v903
      %v905 = vrot.slane %v326, 2
      %v906 = vrot.slane %v327, 2
      %v907 = vsel %vm844, %v905, %v906
      %v908 = vrot.slane %v328, 2
      %v909 = vsel %vm844, %v906, %v908
      %v910 = vrot.slane %v329, 2
      %v911 = vrot.slane %v330, 2
      %v912 = vsel %vm844, %v910, %v911
      %v913 = vrot.slane %v331, 2
      %v914 = vsel %vm844, %v911, %v913
      %v915 = vrot.slane %v332, 2
      %v916 = vrot.slane %v333, 2
      %v917 = vsel %vm844, %v915, %v916
      %v918 = vrot.slane %v334, 2
      %v919 = vsel %vm844, %v916, %v918
      %v920 = vrot.slane %v335, 2
      %v921 = vrot.slane %v336, 2
      %v922 = vsel %vm844, %v920, %v921
      %v923 = vrot.slane %v337, 2
      %v924 = vsel %vm844, %v921, %v923
      %v957 = vpack.c.bf16 %v849, %v847
      %v958 = vpack.c.bf16 %v854, %v852
      %v959 = vpack.c.bf16 %v859, %v857
      %v960 = vpack.c.bf16 %v864, %v862
      %v961 = vpack.c.bf16 %v869, %v867
      %v962 = vpack.c.bf16 %v874, %v872
      %v963 = vpack.c.bf16 %v879, %v877
      %v964 = vpack.c.bf16 %v884, %v882
      %v965 = vpack.c.bf16 %v889, %v887
      %v966 = vpack.c.bf16 %v894, %v892
      %v967 = vpack.c.bf16 %v899, %v897
      %v968 = vpack.c.bf16 %v904, %v902
      %v969 = vpack.c.bf16 %v909, %v907
      %v970 = vpack.c.bf16 %v914, %v912
      %v971 = vpack.c.bf16 %v919, %v917
      %v972 = vpack.c.bf16 %v924, %v922
      %s973 = scalar_lea.vmem %s3, 128
      %v974 = vld [vmem:[%s973] sm:$0xf]
      %v975 = vld [vmem:[%s973 + $0x4] sm:$0xf]
      %v976 = vld [vmem:[%s973 + $0x8] sm:$0xf]
      %v977 = vld [vmem:[%s973 + $0xc] sm:$0xf]
      %v978 = vld [vmem:[%s973 + $0x10] sm:$0xf]
      %v979 = vld [vmem:[%s973 + $0x14] sm:$0xf]
      %v980 = vld [vmem:[%s973 + $0x18] sm:$0xf]
      %v981 = vld [vmem:[%s973 + $0x1c] sm:$0xf]
      %v982 = vld [vmem:[%s973 + $0x20] sm:$0xf]
      %v983 = vld [vmem:[%s973 + $0x24] sm:$0xf]
      %v984 = vld [vmem:[%s973 + $0x28] sm:$0xf]
      %v985 = vld [vmem:[%s973 + $0x2c] sm:$0xf]
      %v986 = vld [vmem:[%s973 + $0x30] sm:$0xf]
      %v987 = vld [vmem:[%s973 + $0x34] sm:$0xf]
      %v988 = vld [vmem:[%s973 + $0x38] sm:$0xf]
      %v989 = vld [vmem:[%s973 + $0x3c] sm:$0xf]
      %v1006 = vunpack.c.l.b16 %v974
      %v1007 = vunpack.c.l.b16 %v975
      %v1008 = vunpack.c.l.b16 %v976
      %v1009 = vunpack.c.l.b16 %v977
      %v1010 = vunpack.c.l.b16 %v978
      %v1011 = vunpack.c.l.b16 %v979
      %v1012 = vunpack.c.l.b16 %v980
      %v1013 = vunpack.c.l.b16 %v981
      %v1014 = vunpack.c.l.b16 %v982
      %v1015 = vunpack.c.l.b16 %v983
      %v1016 = vunpack.c.l.b16 %v984
      %v1017 = vunpack.c.l.b16 %v985
      %v1018 = vunpack.c.l.b16 %v986
      %v1019 = vunpack.c.l.b16 %v987
      %v1020 = vunpack.c.l.b16 %v988
      %v1021 = vunpack.c.l.b16 %v989
      %v1022 = vpack.c.b16 %v1007, %v1006
      %v1023 = vpack.c.b16 %v1009, %v1008
      %v1024 = vpack.c.b16 %v1011, %v1010
      %v1025 = vpack.c.b16 %v1013, %v1012
      %v1026 = vpack.c.b16 %v1015, %v1014
      %v1027 = vpack.c.b16 %v1017, %v1016
      %v1028 = vpack.c.b16 %v1019, %v1018
      %v1029 = vpack.c.b16 %v1021, %v1020
      %1038 = vmatpush.bf16.msra.mxu0 %v1029
      %1039 = vmatpush.bf16.msra.mxu0 %v1028
      %1040 = vmatpush.bf16.msra.mxu0 %v1027
      %1041 = vmatpush.bf16.msra.mxu0 %v1026
      %1042 = vmatpush.bf16.msra.mxu0 %v1025
      %1043 = vmatpush.bf16.msra.mxu0 %v1024
      %1044 = vmatpush.bf16.msra.mxu0 %v1023
      %1045 = vmatpush.bf16.msra.mxu0 %v1022
      %1046 = vmatmul.bf16.gmra.mxu0 %v957
      %v1047 = vpop.f32.mrf.mxu0
      %v1048 = vadd.f32 0.0, %v1047
      %v1049 = vpop.f32.mrf.mxu0
      %v1050 = vadd.f32 0.0, %v1049
      %1051 = vmatmul.bf16.gmra.mxu0 %v958
      %v1052 = vpop.f32.mrf.mxu0
      %v1053 = vadd.f32 0.0, %v1052
      %v1054 = vpop.f32.mrf.mxu0
      %v1055 = vadd.f32 0.0, %v1054
      %1056 = vmatmul.bf16.gmra.mxu0 %v959
      %v1057 = vpop.f32.mrf.mxu0
      %v1058 = vadd.f32 0.0, %v1057
      %v1059 = vpop.f32.mrf.mxu0
      %v1060 = vadd.f32 0.0, %v1059
      %1061 = vmatmul.bf16.gmra.mxu0 %v960
      %v1062 = vpop.f32.mrf.mxu0
      %v1063 = vadd.f32 0.0, %v1062
      %v1064 = vpop.f32.mrf.mxu0
      %v1065 = vadd.f32 0.0, %v1064
      %1066 = vmatmul.bf16.gmra.mxu0 %v961
      %v1067 = vpop.f32.mrf.mxu0
      %v1068 = vadd.f32 0.0, %v1067
      %v1069 = vpop.f32.mrf.mxu0
      %v1070 = vadd.f32 0.0, %v1069
      %1071 = vmatmul.bf16.gmra.mxu0 %v962
      %v1072 = vpop.f32.mrf.mxu0
      %v1073 = vadd.f32 0.0, %v1072
      %v1074 = vpop.f32.mrf.mxu0
      %v1075 = vadd.f32 0.0, %v1074
      %1076 = vmatmul.bf16.gmra.mxu0 %v963
      %v1077 = vpop.f32.mrf.mxu0
      %v1078 = vadd.f32 0.0, %v1077
      %v1079 = vpop.f32.mrf.mxu0
      %v1080 = vadd.f32 0.0, %v1079
      %1081 = vmatmul.bf16.gmra.mxu0 %v964
      %v1082 = vpop.f32.mrf.mxu0
      %v1083 = vadd.f32 0.0, %v1082
      %v1084 = vpop.f32.mrf.mxu0
      %v1085 = vadd.f32 0.0, %v1084
      %1086 = vmatmul.bf16.gmra.mxu0 %v965
      %v1087 = vpop.f32.mrf.mxu0
      %v1088 = vadd.f32 0.0, %v1087
      %v1089 = vpop.f32.mrf.mxu0
      %v1090 = vadd.f32 0.0, %v1089
      %1091 = vmatmul.bf16.gmra.mxu0 %v966
      %v1092 = vpop.f32.mrf.mxu0
      %v1093 = vadd.f32 0.0, %v1092
      %v1094 = vpop.f32.mrf.mxu0
      %v1095 = vadd.f32 0.0, %v1094
      %1096 = vmatmul.bf16.gmra.mxu0 %v967
      %v1097 = vpop.f32.mrf.mxu0
      %v1098 = vadd.f32 0.0, %v1097
      %v1099 = vpop.f32.mrf.mxu0
      %v1100 = vadd.f32 0.0, %v1099
      %1101 = vmatmul.bf16.gmra.mxu0 %v968
      %v1102 = vpop.f32.mrf.mxu0
      %v1103 = vadd.f32 0.0, %v1102
      %v1104 = vpop.f32.mrf.mxu0
      %v1105 = vadd.f32 0.0, %v1104
      %1106 = vmatmul.bf16.gmra.mxu0 %v969
      %v1107 = vpop.f32.mrf.mxu0
      %v1108 = vadd.f32 0.0, %v1107
      %v1109 = vpop.f32.mrf.mxu0
      %v1110 = vadd.f32 0.0, %v1109
      %1111 = vmatmul.bf16.gmra.mxu0 %v970
      %v1112 = vpop.f32.mrf.mxu0
      %v1113 = vadd.f32 0.0, %v1112
      %v1114 = vpop.f32.mrf.mxu0
      %v1115 = vadd.f32 0.0, %v1114
      %1116 = vmatmul.bf16.gmra.mxu0 %v971
      %v1117 = vpop.f32.mrf.mxu0
      %v1118 = vadd.f32 0.0, %v1117
      %v1119 = vpop.f32.mrf.mxu0
      %v1120 = vadd.f32 0.0, %v1119
      %1121 = vmatmul.bf16.gmra.mxu0 %v972
      %v1122 = vpop.f32.mrf.mxu0
      %v1123 = vadd.f32 0.0, %v1122
      %v1124 = vpop.f32.mrf.mxu0
      %v1125 = vadd.f32 0.0, %v1124
      %1126 = vdwg.mxu0
      %v1127 = vadd.f32 %v765, %v1048
      %v1128 = vadd.f32 %v767, %v1050
      %v1129 = vadd.f32 %v770, %v1053
      %v1130 = vadd.f32 %v772, %v1055
      %v1131 = vadd.f32 %v775, %v1058
      %v1132 = vadd.f32 %v777, %v1060
      %v1133 = vadd.f32 %v780, %v1063
      %v1134 = vadd.f32 %v782, %v1065
      %v1135 = vadd.f32 %v785, %v1068
      %v1136 = vadd.f32 %v787, %v1070
      %v1137 = vadd.f32 %v790, %v1073
      %v1138 = vadd.f32 %v792, %v1075
      %v1139 = vadd.f32 %v795, %v1078
      %v1140 = vadd.f32 %v797, %v1080
      %v1141 = vadd.f32 %v800, %v1083
      %v1142 = vadd.f32 %v802, %v1085
      %v1143 = vadd.f32 %v805, %v1088
      %v1144 = vadd.f32 %v807, %v1090
      %v1145 = vadd.f32 %v810, %v1093
      %v1146 = vadd.f32 %v812, %v1095
      %v1147 = vadd.f32 %v815, %v1098
      %v1148 = vadd.f32 %v817, %v1100
      %v1149 = vadd.f32 %v820, %v1103
      %v1150 = vadd.f32 %v822, %v1105
      %v1151 = vadd.f32 %v825, %v1108
      %v1152 = vadd.f32 %v827, %v1110
      %v1153 = vadd.f32 %v830, %v1113
      %v1154 = vadd.f32 %v832, %v1115
      %v1155 = vadd.f32 %v835, %v1118
      %v1156 = vadd.f32 %v837, %v1120
      %v1157 = vadd.f32 %v840, %v1123
      %v1158 = vadd.f32 %v842, %v1125
      %v1159 = vpack.c.bf16 %v339, %v338
      %s1160 = scalar_lea.vmem %s3, 192
      %v1161 = vld [vmem:[%s1160] sm:$0xf]
      %v1162 = vld [vmem:[%s1160 + $0x4] sm:$0xf]
      %v1163 = vld [vmem:[%s1160 + $0x8] sm:$0xf]
      %v1164 = vld [vmem:[%s1160 + $0xc] sm:$0xf]
      %v1165 = vld [vmem:[%s1160 + $0x10] sm:$0xf]
      %v1166 = vld [vmem:[%s1160 + $0x14] sm:$0xf]
      %v1167 = vld [vmem:[%s1160 + $0x18] sm:$0xf]
      %v1168 = vld [vmem:[%s1160 + $0x1c] sm:$0xf]
      %v1169 = vld [vmem:[%s1160 + $0x20] sm:$0xf]
      %v1170 = vld [vmem:[%s1160 + $0x24] sm:$0xf]
      %v1171 = vld [vmem:[%s1160 + $0x28] sm:$0xf]
      %v1172 = vld [vmem:[%s1160 + $0x2c] sm:$0xf]
      %v1173 = vld [vmem:[%s1160 + $0x30] sm:$0xf]
      %v1174 = vld [vmem:[%s1160 + $0x34] sm:$0xf]
      %v1175 = vld [vmem:[%s1160 + $0x38] sm:$0xf]
      %v1176 = vld [vmem:[%s1160 + $0x3c] sm:$0xf]
      %v1193 = vunpack.c.l.b16 %v1161
      %v1194 = vunpack.c.l.b16 %v1162
      %v1195 = vunpack.c.l.b16 %v1163
      %v1196 = vunpack.c.l.b16 %v1164
      %v1197 = vunpack.c.l.b16 %v1165
      %v1198 = vunpack.c.l.b16 %v1166
      %v1199 = vunpack.c.l.b16 %v1167
      %v1200 = vunpack.c.l.b16 %v1168
      %v1201 = vunpack.c.l.b16 %v1169
      %v1202 = vunpack.c.l.b16 %v1170
      %v1203 = vunpack.c.l.b16 %v1171
      %v1204 = vunpack.c.l.b16 %v1172
      %v1205 = vunpack.c.l.b16 %v1173
      %v1206 = vunpack.c.l.b16 %v1174
      %v1207 = vunpack.c.l.b16 %v1175
      %v1208 = vunpack.c.l.b16 %v1176
      %v1209 = vpack.c.b16 %v1194, %v1193
      %v1210 = vpack.c.b16 %v1196, %v1195
      %v1211 = vpack.c.b16 %v1198, %v1197
      %v1212 = vpack.c.b16 %v1200, %v1199
      %v1213 = vpack.c.b16 %v1202, %v1201
      %v1214 = vpack.c.b16 %v1204, %v1203
      %v1215 = vpack.c.b16 %v1206, %v1205
      %v1216 = vpack.c.b16 %v1208, %v1207
      %1225 = vmatpush.bf16.msra.mxu0 %v1216
      %1226 = vmatpush.bf16.msra.mxu0 %v1215
      %1227 = vmatpush.bf16.msra.mxu0 %v1214
      %1228 = vmatpush.bf16.msra.mxu0 %v1213
      %1229 = vmatpush.bf16.msra.mxu0 %v1212
      %1230 = vmatpush.bf16.msra.mxu0 %v1211
      %1231 = vmatpush.bf16.msra.mxu0 %v1210
      %1232 = vmatpush.bf16.msra.mxu0 %v1209
      %1233 = vmatmul.bf16.gmra.mxu0 %v345
      %v1234 = vpop.f32.mrf.mxu0
      %v1235 = vadd.f32 0.0, %v1234
      %v1236 = vpop.f32.mrf.mxu0
      %v1237 = vadd.f32 0.0, %v1236
      %1238 = vmatmul.bf16.gmra.mxu0 %v346
      %v1239 = vpop.f32.mrf.mxu0
      %v1240 = vadd.f32 0.0, %v1239
      %v1241 = vpop.f32.mrf.mxu0
      %v1242 = vadd.f32 0.0, %v1241
      %1243 = vmatmul.bf16.gmra.mxu0 %v347
      %v1244 = vpop.f32.mrf.mxu0
      %v1245 = vadd.f32 0.0, %v1244
      %v1246 = vpop.f32.mrf.mxu0
      %v1247 = vadd.f32 0.0, %v1246
      %1248 = vmatmul.bf16.gmra.mxu0 %v348
      %v1249 = vpop.f32.mrf.mxu0
      %v1250 = vadd.f32 0.0, %v1249
      %v1251 = vpop.f32.mrf.mxu0
      %v1252 = vadd.f32 0.0, %v1251
      %1253 = vmatmul.bf16.gmra.mxu0 %v349
      %v1254 = vpop.f32.mrf.mxu0
      %v1255 = vadd.f32 0.0, %v1254
      %v1256 = vpop.f32.mrf.mxu0
      %v1257 = vadd.f32 0.0, %v1256
      %1258 = vmatmul.bf16.gmra.mxu0 %v350
      %v1259 = vpop.f32.mrf.mxu0
      %v1260 = vadd.f32 0.0, %v1259
      %v1261 = vpop.f32.mrf.mxu0
      %v1262 = vadd.f32 0.0, %v1261
      %1263 = vmatmul.bf16.gmra.mxu0 %v351
      %v1264 = vpop.f32.mrf.mxu0
      %v1265 = vadd.f32 0.0, %v1264
      %v1266 = vpop.f32.mrf.mxu0
      %v1267 = vadd.f32 0.0, %v1266
      %1268 = vmatmul.bf16.gmra.mxu0 %v352
      %v1269 = vpop.f32.mrf.mxu0
      %v1270 = vadd.f32 0.0, %v1269
      %v1271 = vpop.f32.mrf.mxu0
      %v1272 = vadd.f32 0.0, %v1271
      %1273 = vmatmul.bf16.gmra.mxu0 %v353
      %v1274 = vpop.f32.mrf.mxu0
      %v1275 = vadd.f32 0.0, %v1274
      %v1276 = vpop.f32.mrf.mxu0
      %v1277 = vadd.f32 0.0, %v1276
      %1278 = vmatmul.bf16.gmra.mxu0 %v354
      %v1279 = vpop.f32.mrf.mxu0
      %v1280 = vadd.f32 0.0, %v1279
      %v1281 = vpop.f32.mrf.mxu0
      %v1282 = vadd.f32 0.0, %v1281
      %1283 = vmatmul.bf16.gmra.mxu0 %v355
      %v1284 = vpop.f32.mrf.mxu0
      %v1285 = vadd.f32 0.0, %v1284
      %v1286 = vpop.f32.mrf.mxu0
      %v1287 = vadd.f32 0.0, %v1286
      %1288 = vmatmul.bf16.gmra.mxu0 %v356
      %v1289 = vpop.f32.mrf.mxu0
      %v1290 = vadd.f32 0.0, %v1289
      %v1291 = vpop.f32.mrf.mxu0
      %v1292 = vadd.f32 0.0, %v1291
      %1293 = vmatmul.bf16.gmra.mxu0 %v357
      %v1294 = vpop.f32.mrf.mxu0
      %v1295 = vadd.f32 0.0, %v1294
      %v1296 = vpop.f32.mrf.mxu0
      %v1297 = vadd.f32 0.0, %v1296
      %1298 = vmatmul.bf16.gmra.mxu0 %v358
      %v1299 = vpop.f32.mrf.mxu0
      %v1300 = vadd.f32 0.0, %v1299
      %v1301 = vpop.f32.mrf.mxu0
      %v1302 = vadd.f32 0.0, %v1301
      %1303 = vmatmul.bf16.gmra.mxu0 %v359
      %v1304 = vpop.f32.mrf.mxu0
      %v1305 = vadd.f32 0.0, %v1304
      %v1306 = vpop.f32.mrf.mxu0
      %v1307 = vadd.f32 0.0, %v1306
      %1308 = vmatmul.bf16.gmra.mxu0 %v1159
      %v1309 = vpop.f32.mrf.mxu0
      %v1310 = vadd.f32 0.0, %v1309
      %v1311 = vpop.f32.mrf.mxu0
      %v1312 = vadd.f32 0.0, %v1311
      %1313 = vdwg.mxu0
      %v1314 = vadd.f32 %v1127, %v1235
      %v1315 = vadd.f32 %v1128, %v1237
      %v1316 = vadd.f32 %v1129, %v1240
      %v1317 = vadd.f32 %v1130, %v1242
      %v1318 = vadd.f32 %v1131, %v1245
      %v1319 = vadd.f32 %v1132, %v1247
      %v1320 = vadd.f32 %v1133, %v1250
      %v1321 = vadd.f32 %v1134, %v1252
      %v1322 = vadd.f32 %v1135, %v1255
      %v1323 = vadd.f32 %v1136, %v1257
      %v1324 = vadd.f32 %v1137, %v1260
      %v1325 = vadd.f32 %v1138, %v1262
      %v1326 = vadd.f32 %v1139, %v1265
      %v1327 = vadd.f32 %v1140, %v1267
      %v1328 = vadd.f32 %v1141, %v1270
      %v1329 = vadd.f32 %v1142, %v1272
      %v1330 = vadd.f32 %v1143, %v1275
      %v1331 = vadd.f32 %v1144, %v1277
      %v1332 = vadd.f32 %v1145, %v1280
      %v1333 = vadd.f32 %v1146, %v1282
      %v1334 = vadd.f32 %v1147, %v1285
      %v1335 = vadd.f32 %v1148, %v1287
      %v1336 = vadd.f32 %v1149, %v1290
      %v1337 = vadd.f32 %v1150, %v1292
      %v1338 = vadd.f32 %v1151, %v1295
      %v1339 = vadd.f32 %v1152, %v1297
      %v1340 = vadd.f32 %v1153, %v1300
      %v1341 = vadd.f32 %v1154, %v1302
      %v1342 = vadd.f32 %v1155, %v1305
      %v1343 = vadd.f32 %v1156, %v1307
      %v1344 = vadd.f32 %v1157, %v1310
      %v1345 = vadd.f32 %v1158, %v1312
      %v1349 = vrot.slane %v338, 1
      %v1350 = vrot.slane %v339, 1
      %v1351 = vsel %vm424, %v1349, %v1350
      %v1352 = vrot.slane %v340, 1
      %v1353 = vsel %vm424, %v1350, %v1352
      %v1356 = vpack.c.bf16 %v1353, %v1351
      %s1357 = scalar_lea.vmem %s3, 256
      %v1358 = vld [vmem:[%s1357] sm:$0xf]
      %v1359 = vld [vmem:[%s1357 + $0x4] sm:$0xf]
      %v1360 = vld [vmem:[%s1357 + $0x8] sm:$0xf]
      %v1361 = vld [vmem:[%s1357 + $0xc] sm:$0xf]
      %v1362 = vld [vmem:[%s1357 + $0x10] sm:$0xf]
      %v1363 = vld [vmem:[%s1357 + $0x14] sm:$0xf]
      %v1364 = vld [vmem:[%s1357 + $0x18] sm:$0xf]
      %v1365 = vld [vmem:[%s1357 + $0x1c] sm:$0xf]
      %v1366 = vld [vmem:[%s1357 + $0x20] sm:$0xf]
      %v1367 = vld [vmem:[%s1357 + $0x24] sm:$0xf]
      %v1368 = vld [vmem:[%s1357 + $0x28] sm:$0xf]
      %v1369 = vld [vmem:[%s1357 + $0x2c] sm:$0xf]
      %v1370 = vld [vmem:[%s1357 + $0x30] sm:$0xf]
      %v1371 = vld [vmem:[%s1357 + $0x34] sm:$0xf]
      %v1372 = vld [vmem:[%s1357 + $0x38] sm:$0xf]
      %v1373 = vld [vmem:[%s1357 + $0x3c] sm:$0xf]
      %v1390 = vunpack.c.l.b16 %v1358
      %v1391 = vunpack.c.l.b16 %v1359
      %v1392 = vunpack.c.l.b16 %v1360
      %v1393 = vunpack.c.l.b16 %v1361
      %v1394 = vunpack.c.l.b16 %v1362
      %v1395 = vunpack.c.l.b16 %v1363
      %v1396 = vunpack.c.l.b16 %v1364
      %v1397 = vunpack.c.l.b16 %v1365
      %v1398 = vunpack.c.l.b16 %v1366
      %v1399 = vunpack.c.l.b16 %v1367
      %v1400 = vunpack.c.l.b16 %v1368
      %v1401 = vunpack.c.l.b16 %v1369
      %v1402 = vunpack.c.l.b16 %v1370
      %v1403 = vunpack.c.l.b16 %v1371
      %v1404 = vunpack.c.l.b16 %v1372
      %v1405 = vunpack.c.l.b16 %v1373
      %v1406 = vpack.c.b16 %v1391, %v1390
      %v1407 = vpack.c.b16 %v1393, %v1392
      %v1408 = vpack.c.b16 %v1395, %v1394
      %v1409 = vpack.c.b16 %v1397, %v1396
      %v1410 = vpack.c.b16 %v1399, %v1398
      %v1411 = vpack.c.b16 %v1401, %v1400
      %v1412 = vpack.c.b16 %v1403, %v1402
      %v1413 = vpack.c.b16 %v1405, %v1404
      %1422 = vmatpush.bf16.msra.mxu0 %v1413
      %1423 = vmatpush.bf16.msra.mxu0 %v1412
      %1424 = vmatpush.bf16.msra.mxu0 %v1411
      %1425 = vmatpush.bf16.msra.mxu0 %v1410
      %1426 = vmatpush.bf16.msra.mxu0 %v1409
      %1427 = vmatpush.bf16.msra.mxu0 %v1408
      %1428 = vmatpush.bf16.msra.mxu0 %v1407
      %1429 = vmatpush.bf16.msra.mxu0 %v1406
      %1430 = vmatmul.bf16.gmra.mxu0 %v538
      %v1431 = vpop.f32.mrf.mxu0
      %v1432 = vadd.f32 0.0, %v1431
      %v1433 = vpop.f32.mrf.mxu0
      %v1434 = vadd.f32 0.0, %v1433
      %1435 = vmatmul.bf16.gmra.mxu0 %v539
      %v1436 = vpop.f32.mrf.mxu0
      %v1437 = vadd.f32 0.0, %v1436
      %v1438 = vpop.f32.mrf.mxu0
      %v1439 = vadd.f32 0.0, %v1438
      %1440 = vmatmul.bf16.gmra.mxu0 %v540
      %v1441 = vpop.f32.mrf.mxu0
      %v1442 = vadd.f32 0.0, %v1441
      %v1443 = vpop.f32.mrf.mxu0
      %v1444 = vadd.f32 0.0, %v1443
      %1445 = vmatmul.bf16.gmra.mxu0 %v541
      %v1446 = vpop.f32.mrf.mxu0
      %v1447 = vadd.f32 0.0, %v1446
      %v1448 = vpop.f32.mrf.mxu0
      %v1449 = vadd.f32 0.0, %v1448
      %1450 = vmatmul.bf16.gmra.mxu0 %v542
      %v1451 = vpop.f32.mrf.mxu0
      %v1452 = vadd.f32 0.0, %v1451
      %v1453 = vpop.f32.mrf.mxu0
      %v1454 = vadd.f32 0.0, %v1453
      %1455 = vmatmul.bf16.gmra.mxu0 %v543
      %v1456 = vpop.f32.mrf.mxu0
      %v1457 = vadd.f32 0.0, %v1456
      %v1458 = vpop.f32.mrf.mxu0
      %v1459 = vadd.f32 0.0, %v1458
      %1460 = vmatmul.bf16.gmra.mxu0 %v544
      %v1461 = vpop.f32.mrf.mxu0
      %v1462 = vadd.f32 0.0, %v1461
      %v1463 = vpop.f32.mrf.mxu0
      %v1464 = vadd.f32 0.0, %v1463
      %1465 = vmatmul.bf16.gmra.mxu0 %v545
      %v1466 = vpop.f32.mrf.mxu0
      %v1467 = vadd.f32 0.0, %v1466
      %v1468 = vpop.f32.mrf.mxu0
      %v1469 = vadd.f32 0.0, %v1468
      %1470 = vmatmul.bf16.gmra.mxu0 %v546
      %v1471 = vpop.f32.mrf.mxu0
      %v1472 = vadd.f32 0.0, %v1471
      %v1473 = vpop.f32.mrf.mxu0
      %v1474 = vadd.f32 0.0, %v1473
      %1475 = vmatmul.bf16.gmra.mxu0 %v547
      %v1476 = vpop.f32.mrf.mxu0
      %v1477 = vadd.f32 0.0, %v1476
      %v1478 = vpop.f32.mrf.mxu0
      %v1479 = vadd.f32 0.0, %v1478
      %1480 = vmatmul.bf16.gmra.mxu0 %v548
      %v1481 = vpop.f32.mrf.mxu0
      %v1482 = vadd.f32 0.0, %v1481
      %v1483 = vpop.f32.mrf.mxu0
      %v1484 = vadd.f32 0.0, %v1483
      %1485 = vmatmul.bf16.gmra.mxu0 %v549
      %v1486 = vpop.f32.mrf.mxu0
      %v1487 = vadd.f32 0.0, %v1486
      %v1488 = vpop.f32.mrf.mxu0
      %v1489 = vadd.f32 0.0, %v1488
      %1490 = vmatmul.bf16.gmra.mxu0 %v550
      %v1491 = vpop.f32.mrf.mxu0
      %v1492 = vadd.f32 0.0, %v1491
      %v1493 = vpop.f32.mrf.mxu0
      %v1494 = vadd.f32 0.0, %v1493
      %1495 = vmatmul.bf16.gmra.mxu0 %v551
      %v1496 = vpop.f32.mrf.mxu0
      %v1497 = vadd.f32 0.0, %v1496
      %v1498 = vpop.f32.mrf.mxu0
      %v1499 = vadd.f32 0.0, %v1498
      %1500 = vmatmul.bf16.gmra.mxu0 %v552
      %v1501 = vpop.f32.mrf.mxu0
      %v1502 = vadd.f32 0.0, %v1501
      %v1503 = vpop.f32.mrf.mxu0
      %v1504 = vadd.f32 0.0, %v1503
      %1505 = vmatmul.bf16.gmra.mxu0 %v1356
      %v1506 = vpop.f32.mrf.mxu0
      %v1507 = vadd.f32 0.0, %v1506
      %v1508 = vpop.f32.mrf.mxu0
      %v1509 = vadd.f32 0.0, %v1508
      %1510 = vdwg.mxu0
      %v1511 = vadd.f32 %v1314, %v1432
      %v1512 = vadd.f32 %v1315, %v1434
      %v1513 = vadd.f32 %v1316, %v1437
      %v1514 = vadd.f32 %v1317, %v1439
      %v1515 = vadd.f32 %v1318, %v1442
      %v1516 = vadd.f32 %v1319, %v1444
      %v1517 = vadd.f32 %v1320, %v1447
      %v1518 = vadd.f32 %v1321, %v1449
      %v1519 = vadd.f32 %v1322, %v1452
      %v1520 = vadd.f32 %v1323, %v1454
      %v1521 = vadd.f32 %v1324, %v1457
      %v1522 = vadd.f32 %v1325, %v1459
      %v1523 = vadd.f32 %v1326, %v1462
      %v1524 = vadd.f32 %v1327, %v1464
      %v1525 = vadd.f32 %v1328, %v1467
      %v1526 = vadd.f32 %v1329, %v1469
      %v1527 = vadd.f32 %v1330, %v1472
      %v1528 = vadd.f32 %v1331, %v1474
      %v1529 = vadd.f32 %v1332, %v1477
      %v1530 = vadd.f32 %v1333, %v1479
      %v1531 = vadd.f32 %v1334, %v1482
      %v1532 = vadd.f32 %v1335, %v1484
      %v1533 = vadd.f32 %v1336, %v1487
      %v1534 = vadd.f32 %v1337, %v1489
      %v1535 = vadd.f32 %v1338, %v1492
      %v1536 = vadd.f32 %v1339, %v1494
      %v1537 = vadd.f32 %v1340, %v1497
      %v1538 = vadd.f32 %v1341, %v1499
      %v1539 = vadd.f32 %v1342, %v1502
      %v1540 = vadd.f32 %v1343, %v1504
      %v1541 = vadd.f32 %v1344, %v1507
      %v1542 = vadd.f32 %v1345, %v1509
      %v1543 = vrot.slane %v338, 2
      %v1544 = vrot.slane %v339, 2
      %v1545 = vsel %vm844, %v1543, %v1544
      %v1546 = vrot.slane %v340, 2
      %v1547 = vsel %vm844, %v1544, %v1546
      %v1550 = vpack.c.bf16 %v1547, %v1545
      %s1551 = scalar_lea.vmem %s3, 320
      %v1552 = vld [vmem:[%s1551] sm:$0xf]
      %v1553 = vld [vmem:[%s1551 + $0x4] sm:$0xf]
      %v1554 = vld [vmem:[%s1551 + $0x8] sm:$0xf]
      %v1555 = vld [vmem:[%s1551 + $0xc] sm:$0xf]
      %v1556 = vld [vmem:[%s1551 + $0x10] sm:$0xf]
      %v1557 = vld [vmem:[%s1551 + $0x14] sm:$0xf]
      %v1558 = vld [vmem:[%s1551 + $0x18] sm:$0xf]
      %v1559 = vld [vmem:[%s1551 + $0x1c] sm:$0xf]
      %v1560 = vld [vmem:[%s1551 + $0x20] sm:$0xf]
      %v1561 = vld [vmem:[%s1551 + $0x24] sm:$0xf]
      %v1562 = vld [vmem:[%s1551 + $0x28] sm:$0xf]
      %v1563 = vld [vmem:[%s1551 + $0x2c] sm:$0xf]
      %v1564 = vld [vmem:[%s1551 + $0x30] sm:$0xf]
      %v1565 = vld [vmem:[%s1551 + $0x34] sm:$0xf]
      %v1566 = vld [vmem:[%s1551 + $0x38] sm:$0xf]
      %v1567 = vld [vmem:[%s1551 + $0x3c] sm:$0xf]
      %v1584 = vunpack.c.l.b16 %v1552
      %v1585 = vunpack.c.l.b16 %v1553
      %v1586 = vunpack.c.l.b16 %v1554
      %v1587 = vunpack.c.l.b16 %v1555
      %v1588 = vunpack.c.l.b16 %v1556
      %v1589 = vunpack.c.l.b16 %v1557
      %v1590 = vunpack.c.l.b16 %v1558
      %v1591 = vunpack.c.l.b16 %v1559
      %v1592 = vunpack.c.l.b16 %v1560
      %v1593 = vunpack.c.l.b16 %v1561
      %v1594 = vunpack.c.l.b16 %v1562
      %v1595 = vunpack.c.l.b16 %v1563
      %v1596 = vunpack.c.l.b16 %v1564
      %v1597 = vunpack.c.l.b16 %v1565
      %v1598 = vunpack.c.l.b16 %v1566
      %v1599 = vunpack.c.l.b16 %v1567
      %v1600 = vpack.c.b16 %v1585, %v1584
      %v1601 = vpack.c.b16 %v1587, %v1586
      %v1602 = vpack.c.b16 %v1589, %v1588
      %v1603 = vpack.c.b16 %v1591, %v1590
      %v1604 = vpack.c.b16 %v1593, %v1592
      %v1605 = vpack.c.b16 %v1595, %v1594
      %v1606 = vpack.c.b16 %v1597, %v1596
      %v1607 = vpack.c.b16 %v1599, %v1598
      %1616 = vmatpush.bf16.msra.mxu0 %v1607
      %1617 = vmatpush.bf16.msra.mxu0 %v1606
      %1618 = vmatpush.bf16.msra.mxu0 %v1605
      %1619 = vmatpush.bf16.msra.mxu0 %v1604
      %1620 = vmatpush.bf16.msra.mxu0 %v1603
      %1621 = vmatpush.bf16.msra.mxu0 %v1602
      %1622 = vmatpush.bf16.msra.mxu0 %v1601
      %1623 = vmatpush.bf16.msra.mxu0 %v1600
      %1624 = vmatmul.bf16.gmra.mxu0 %v958
      %v1625 = vpop.f32.mrf.mxu0
      %v1626 = vadd.f32 0.0, %v1625
      %v1627 = vpop.f32.mrf.mxu0
      %v1628 = vadd.f32 0.0, %v1627
      %1629 = vmatmul.bf16.gmra.mxu0 %v959
      %v1630 = vpop.f32.mrf.mxu0
      %v1631 = vadd.f32 0.0, %v1630
      %v1632 = vpop.f32.mrf.mxu0
      %v1633 = vadd.f32 0.0, %v1632
      %1634 = vmatmul.bf16.gmra.mxu0 %v960
      %v1635 = vpop.f32.mrf.mxu0
      %v1636 = vadd.f32 0.0, %v1635
      %v1637 = vpop.f32.mrf.mxu0
      %v1638 = vadd.f32 0.0, %v1637
      %1639 = vmatmul.bf16.gmra.mxu0 %v961
      %v1640 = vpop.f32.mrf.mxu0
      %v1641 = vadd.f32 0.0, %v1640
      %v1642 = vpop.f32.mrf.mxu0
      %v1643 = vadd.f32 0.0, %v1642
      %1644 = vmatmul.bf16.gmra.mxu0 %v962
      %v1645 = vpop.f32.mrf.mxu0
      %v1646 = vadd.f32 0.0, %v1645
      %v1647 = vpop.f32.mrf.mxu0
      %v1648 = vadd.f32 0.0, %v1647
      %1649 = vmatmul.bf16.gmra.mxu0 %v963
      %v1650 = vpop.f32.mrf.mxu0
      %v1651 = vadd.f32 0.0, %v1650
      %v1652 = vpop.f32.mrf.mxu0
      %v1653 = vadd.f32 0.0, %v1652
      %1654 = vmatmul.bf16.gmra.mxu0 %v964
      %v1655 = vpop.f32.mrf.mxu0
      %v1656 = vadd.f32 0.0, %v1655
      %v1657 = vpop.f32.mrf.mxu0
      %v1658 = vadd.f32 0.0, %v1657
      %1659 = vmatmul.bf16.gmra.mxu0 %v965
      %v1660 = vpop.f32.mrf.mxu0
      %v1661 = vadd.f32 0.0, %v1660
      %v1662 = vpop.f32.mrf.mxu0
      %v1663 = vadd.f32 0.0, %v1662
      %1664 = vmatmul.bf16.gmra.mxu0 %v966
      %v1665 = vpop.f32.mrf.mxu0
      %v1666 = vadd.f32 0.0, %v1665
      %v1667 = vpop.f32.mrf.mxu0
      %v1668 = vadd.f32 0.0, %v1667
      %1669 = vmatmul.bf16.gmra.mxu0 %v967
      %v1670 = vpop.f32.mrf.mxu0
      %v1671 = vadd.f32 0.0, %v1670
      %v1672 = vpop.f32.mrf.mxu0
      %v1673 = vadd.f32 0.0, %v1672
      %1674 = vmatmul.bf16.gmra.mxu0 %v968
      %v1675 = vpop.f32.mrf.mxu0
      %v1676 = vadd.f32 0.0, %v1675
      %v1677 = vpop.f32.mrf.mxu0
      %v1678 = vadd.f32 0.0, %v1677
      %1679 = vmatmul.bf16.gmra.mxu0 %v969
      %v1680 = vpop.f32.mrf.mxu0
      %v1681 = vadd.f32 0.0, %v1680
      %v1682 = vpop.f32.mrf.mxu0
      %v1683 = vadd.f32 0.0, %v1682
      %1684 = vmatmul.bf16.gmra.mxu0 %v970
      %v1685 = vpop.f32.mrf.mxu0
      %v1686 = vadd.f32 0.0, %v1685
      %v1687 = vpop.f32.mrf.mxu0
      %v1688 = vadd.f32 0.0, %v1687
      %1689 = vmatmul.bf16.gmra.mxu0 %v971
      %v1690 = vpop.f32.mrf.mxu0
      %v1691 = vadd.f32 0.0, %v1690
      %v1692 = vpop.f32.mrf.mxu0
      %v1693 = vadd.f32 0.0, %v1692
      %1694 = vmatmul.bf16.gmra.mxu0 %v972
      %v1695 = vpop.f32.mrf.mxu0
      %v1696 = vadd.f32 0.0, %v1695
      %v1697 = vpop.f32.mrf.mxu0
      %v1698 = vadd.f32 0.0, %v1697
      %1699 = vmatmul.bf16.gmra.mxu0 %v1550
      %v1700 = vpop.f32.mrf.mxu0
      %v1701 = vadd.f32 0.0, %v1700
      %v1702 = vpop.f32.mrf.mxu0
      %v1703 = vadd.f32 0.0, %v1702
      %1704 = vdwg.mxu0
      %v1705 = vadd.f32 %v1511, %v1626
      %v1706 = vadd.f32 %v1512, %v1628
      %v1707 = vadd.f32 %v1513, %v1631
      %v1708 = vadd.f32 %v1514, %v1633
      %v1709 = vadd.f32 %v1515, %v1636
      %v1710 = vadd.f32 %v1516, %v1638
      %v1711 = vadd.f32 %v1517, %v1641
      %v1712 = vadd.f32 %v1518, %v1643
      %v1713 = vadd.f32 %v1519, %v1646
      %v1714 = vadd.f32 %v1520, %v1648
      %v1715 = vadd.f32 %v1521, %v1651
      %v1716 = vadd.f32 %v1522, %v1653
      %v1717 = vadd.f32 %v1523, %v1656
      %v1718 = vadd.f32 %v1524, %v1658
      %v1719 = vadd.f32 %v1525, %v1661
      %v1720 = vadd.f32 %v1526, %v1663
      %v1721 = vadd.f32 %v1527, %v1666
      %v1722 = vadd.f32 %v1528, %v1668
      %v1723 = vadd.f32 %v1529, %v1671
      %v1724 = vadd.f32 %v1530, %v1673
      %v1725 = vadd.f32 %v1531, %v1676
      %v1726 = vadd.f32 %v1532, %v1678
      %v1727 = vadd.f32 %v1533, %v1681
      %v1728 = vadd.f32 %v1534, %v1683
      %v1729 = vadd.f32 %v1535, %v1686
      %v1730 = vadd.f32 %v1536, %v1688
      %v1731 = vadd.f32 %v1537, %v1691
      %v1732 = vadd.f32 %v1538, %v1693
      %v1733 = vadd.f32 %v1539, %v1696
      %v1734 = vadd.f32 %v1540, %v1698
      %v1735 = vadd.f32 %v1541, %v1701
      %v1736 = vadd.f32 %v1542, %v1703
      %v1737 = vpack.c.bf16 %v342, %v341
      %s1738 = scalar_lea.vmem %s3, 384
      %v1739 = vld [vmem:[%s1738] sm:$0xf]
      %v1740 = vld [vmem:[%s1738 + $0x4] sm:$0xf]
      %v1741 = vld [vmem:[%s1738 + $0x8] sm:$0xf]
      %v1742 = vld [vmem:[%s1738 + $0xc] sm:$0xf]
      %v1743 = vld [vmem:[%s1738 + $0x10] sm:$0xf]
      %v1744 = vld [vmem:[%s1738 + $0x14] sm:$0xf]
      %v1745 = vld [vmem:[%s1738 + $0x18] sm:$0xf]
      %v1746 = vld [vmem:[%s1738 + $0x1c] sm:$0xf]
      %v1747 = vld [vmem:[%s1738 + $0x20] sm:$0xf]
      %v1748 = vld [vmem:[%s1738 + $0x24] sm:$0xf]
      %v1749 = vld [vmem:[%s1738 + $0x28] sm:$0xf]
      %v1750 = vld [vmem:[%s1738 + $0x2c] sm:$0xf]
      %v1751 = vld [vmem:[%s1738 + $0x30] sm:$0xf]
      %v1752 = vld [vmem:[%s1738 + $0x34] sm:$0xf]
      %v1753 = vld [vmem:[%s1738 + $0x38] sm:$0xf]
      %v1754 = vld [vmem:[%s1738 + $0x3c] sm:$0xf]
      %v1771 = vunpack.c.l.b16 %v1739
      %v1772 = vunpack.c.l.b16 %v1740
      %v1773 = vunpack.c.l.b16 %v1741
      %v1774 = vunpack.c.l.b16 %v1742
      %v1775 = vunpack.c.l.b16 %v1743
      %v1776 = vunpack.c.l.b16 %v1744
      %v1777 = vunpack.c.l.b16 %v1745
      %v1778 = vunpack.c.l.b16 %v1746
      %v1779 = vunpack.c.l.b16 %v1747
      %v1780 = vunpack.c.l.b16 %v1748
      %v1781 = vunpack.c.l.b16 %v1749
      %v1782 = vunpack.c.l.b16 %v1750
      %v1783 = vunpack.c.l.b16 %v1751
      %v1784 = vunpack.c.l.b16 %v1752
      %v1785 = vunpack.c.l.b16 %v1753
      %v1786 = vunpack.c.l.b16 %v1754
      %v1787 = vpack.c.b16 %v1772, %v1771
      %v1788 = vpack.c.b16 %v1774, %v1773
      %v1789 = vpack.c.b16 %v1776, %v1775
      %v1790 = vpack.c.b16 %v1778, %v1777
      %v1791 = vpack.c.b16 %v1780, %v1779
      %v1792 = vpack.c.b16 %v1782, %v1781
      %v1793 = vpack.c.b16 %v1784, %v1783
      %v1794 = vpack.c.b16 %v1786, %v1785
      %1803 = vmatpush.bf16.msra.mxu0 %v1794
      %1804 = vmatpush.bf16.msra.mxu0 %v1793
      %1805 = vmatpush.bf16.msra.mxu0 %v1792
      %1806 = vmatpush.bf16.msra.mxu0 %v1791
      %1807 = vmatpush.bf16.msra.mxu0 %v1790
      %1808 = vmatpush.bf16.msra.mxu0 %v1789
      %1809 = vmatpush.bf16.msra.mxu0 %v1788
      %1810 = vmatpush.bf16.msra.mxu0 %v1787
      %1811 = vmatmul.bf16.gmra.mxu0 %v346
      %v1812 = vpop.f32.mrf.mxu0
      %v1813 = vadd.f32 0.0, %v1812
      %v1814 = vpop.f32.mrf.mxu0
      %v1815 = vadd.f32 0.0, %v1814
      %1816 = vmatmul.bf16.gmra.mxu0 %v347
      %v1817 = vpop.f32.mrf.mxu0
      %v1818 = vadd.f32 0.0, %v1817
      %v1819 = vpop.f32.mrf.mxu0
      %v1820 = vadd.f32 0.0, %v1819
      %1821 = vmatmul.bf16.gmra.mxu0 %v348
      %v1822 = vpop.f32.mrf.mxu0
      %v1823 = vadd.f32 0.0, %v1822
      %v1824 = vpop.f32.mrf.mxu0
      %v1825 = vadd.f32 0.0, %v1824
      %1826 = vmatmul.bf16.gmra.mxu0 %v349
      %v1827 = vpop.f32.mrf.mxu0
      %v1828 = vadd.f32 0.0, %v1827
      %v1829 = vpop.f32.mrf.mxu0
      %v1830 = vadd.f32 0.0, %v1829
      %1831 = vmatmul.bf16.gmra.mxu0 %v350
      %v1832 = vpop.f32.mrf.mxu0
      %v1833 = vadd.f32 0.0, %v1832
      %v1834 = vpop.f32.mrf.mxu0
      %v1835 = vadd.f32 0.0, %v1834
      %1836 = vmatmul.bf16.gmra.mxu0 %v351
      %v1837 = vpop.f32.mrf.mxu0
      %v1838 = vadd.f32 0.0, %v1837
      %v1839 = vpop.f32.mrf.mxu0
      %v1840 = vadd.f32 0.0, %v1839
      %1841 = vmatmul.bf16.gmra.mxu0 %v352
      %v1842 = vpop.f32.mrf.mxu0
      %v1843 = vadd.f32 0.0, %v1842
      %v1844 = vpop.f32.mrf.mxu0
      %v1845 = vadd.f32 0.0, %v1844
      %1846 = vmatmul.bf16.gmra.mxu0 %v353
      %v1847 = vpop.f32.mrf.mxu0
      %v1848 = vadd.f32 0.0, %v1847
      %v1849 = vpop.f32.mrf.mxu0
      %v1850 = vadd.f32 0.0, %v1849
      %1851 = vmatmul.bf16.gmra.mxu0 %v354
      %v1852 = vpop.f32.mrf.mxu0
      %v1853 = vadd.f32 0.0, %v1852
      %v1854 = vpop.f32.mrf.mxu0
      %v1855 = vadd.f32 0.0, %v1854
      %1856 = vmatmul.bf16.gmra.mxu0 %v355
      %v1857 = vpop.f32.mrf.mxu0
      %v1858 = vadd.f32 0.0, %v1857
      %v1859 = vpop.f32.mrf.mxu0
      %v1860 = vadd.f32 0.0, %v1859
      %1861 = vmatmul.bf16.gmra.mxu0 %v356
      %v1862 = vpop.f32.mrf.mxu0
      %v1863 = vadd.f32 0.0, %v1862
      %v1864 = vpop.f32.mrf.mxu0
      %v1865 = vadd.f32 0.0, %v1864
      %1866 = vmatmul.bf16.gmra.mxu0 %v357
      %v1867 = vpop.f32.mrf.mxu0
      %v1868 = vadd.f32 0.0, %v1867
      %v1869 = vpop.f32.mrf.mxu0
      %v1870 = vadd.f32 0.0, %v1869
      %1871 = vmatmul.bf16.gmra.mxu0 %v358
      %v1872 = vpop.f32.mrf.mxu0
      %v1873 = vadd.f32 0.0, %v1872
      %v1874 = vpop.f32.mrf.mxu0
      %v1875 = vadd.f32 0.0, %v1874
      %1876 = vmatmul.bf16.gmra.mxu0 %v359
      %v1877 = vpop.f32.mrf.mxu0
      %v1878 = vadd.f32 0.0, %v1877
      %v1879 = vpop.f32.mrf.mxu0
      %v1880 = vadd.f32 0.0, %v1879
      %1881 = vmatmul.bf16.gmra.mxu0 %v1159
      %v1882 = vpop.f32.mrf.mxu0
      %v1883 = vadd.f32 0.0, %v1882
      %v1884 = vpop.f32.mrf.mxu0
      %v1885 = vadd.f32 0.0, %v1884
      %1886 = vmatmul.bf16.gmra.mxu0 %v1737
      %v1887 = vpop.f32.mrf.mxu0
      %v1888 = vadd.f32 0.0, %v1887
      %v1889 = vpop.f32.mrf.mxu0
      %v1890 = vadd.f32 0.0, %v1889
      %1891 = vdwg.mxu0
      %v1892 = vadd.f32 %v1705, %v1813
      %v1893 = vadd.f32 %v1706, %v1815
      %v1894 = vadd.f32 %v1707, %v1818
      %v1895 = vadd.f32 %v1708, %v1820
      %v1896 = vadd.f32 %v1709, %v1823
      %v1897 = vadd.f32 %v1710, %v1825
      %v1898 = vadd.f32 %v1711, %v1828
      %v1899 = vadd.f32 %v1712, %v1830
      %v1900 = vadd.f32 %v1713, %v1833
      %v1901 = vadd.f32 %v1714, %v1835
      %v1902 = vadd.f32 %v1715, %v1838
      %v1903 = vadd.f32 %v1716, %v1840
      %v1904 = vadd.f32 %v1717, %v1843
      %v1905 = vadd.f32 %v1718, %v1845
      %v1906 = vadd.f32 %v1719, %v1848
      %v1907 = vadd.f32 %v1720, %v1850
      %v1908 = vadd.f32 %v1721, %v1853
      %v1909 = vadd.f32 %v1722, %v1855
      %v1910 = vadd.f32 %v1723, %v1858
      %v1911 = vadd.f32 %v1724, %v1860
      %v1912 = vadd.f32 %v1725, %v1863
      %v1913 = vadd.f32 %v1726, %v1865
      %v1914 = vadd.f32 %v1727, %v1868
      %v1915 = vadd.f32 %v1728, %v1870
      %v1916 = vadd.f32 %v1729, %v1873
      %v1917 = vadd.f32 %v1730, %v1875
      %v1918 = vadd.f32 %v1731, %v1878
      %v1919 = vadd.f32 %v1732, %v1880
      %v1920 = vadd.f32 %v1733, %v1883
      %v1921 = vadd.f32 %v1734, %v1885
      %v1922 = vadd.f32 %v1735, %v1888
      %v1923 = vadd.f32 %v1736, %v1890
      %v1927 = vrot.slane %v341, 1
      %v1928 = vrot.slane %v342, 1
      %v1929 = vsel %vm424, %v1927, %v1928
      %v1930 = vrot.slane %v343, 1
      %v1931 = vsel %vm424, %v1928, %v1930
      %v1934 = vpack.c.bf16 %v1931, %v1929
      %s1935 = scalar_lea.vmem %s3, 448
      %v1936 = vld [vmem:[%s1935] sm:$0xf]
      %v1937 = vld [vmem:[%s1935 + $0x4] sm:$0xf]
      %v1938 = vld [vmem:[%s1935 + $0x8] sm:$0xf]
      %v1939 = vld [vmem:[%s1935 + $0xc] sm:$0xf]
      %v1940 = vld [vmem:[%s1935 + $0x10] sm:$0xf]
      %v1941 = vld [vmem:[%s1935 + $0x14] sm:$0xf]
      %v1942 = vld [vmem:[%s1935 + $0x18] sm:$0xf]
      %v1943 = vld [vmem:[%s1935 + $0x1c] sm:$0xf]
      %v1944 = vld [vmem:[%s1935 + $0x20] sm:$0xf]
      %v1945 = vld [vmem:[%s1935 + $0x24] sm:$0xf]
      %v1946 = vld [vmem:[%s1935 + $0x28] sm:$0xf]
      %v1947 = vld [vmem:[%s1935 + $0x2c] sm:$0xf]
      %v1948 = vld [vmem:[%s1935 + $0x30] sm:$0xf]
      %v1949 = vld [vmem:[%s1935 + $0x34] sm:$0xf]
      %v1950 = vld [vmem:[%s1935 + $0x38] sm:$0xf]
      %v1951 = vld [vmem:[%s1935 + $0x3c] sm:$0xf]
      %v1968 = vunpack.c.l.b16 %v1936
      %v1969 = vunpack.c.l.b16 %v1937
      %v1970 = vunpack.c.l.b16 %v1938
      %v1971 = vunpack.c.l.b16 %v1939
      %v1972 = vunpack.c.l.b16 %v1940
      %v1973 = vunpack.c.l.b16 %v1941
      %v1974 = vunpack.c.l.b16 %v1942
      %v1975 = vunpack.c.l.b16 %v1943
      %v1976 = vunpack.c.l.b16 %v1944
      %v1977 = vunpack.c.l.b16 %v1945
      %v1978 = vunpack.c.l.b16 %v1946
      %v1979 = vunpack.c.l.b16 %v1947
      %v1980 = vunpack.c.l.b16 %v1948
      %v1981 = vunpack.c.l.b16 %v1949
      %v1982 = vunpack.c.l.b16 %v1950
      %v1983 = vunpack.c.l.b16 %v1951
      %v1984 = vpack.c.b16 %v1969, %v1968
      %v1985 = vpack.c.b16 %v1971, %v1970
      %v1986 = vpack.c.b16 %v1973, %v1972
      %v1987 = vpack.c.b16 %v1975, %v1974
      %v1988 = vpack.c.b16 %v1977, %v1976
      %v1989 = vpack.c.b16 %v1979, %v1978
      %v1990 = vpack.c.b16 %v1981, %v1980
      %v1991 = vpack.c.b16 %v1983, %v1982
      %2000 = vmatpush.bf16.msra.mxu0 %v1991
      %2001 = vmatpush.bf16.msra.mxu0 %v1990
      %2002 = vmatpush.bf16.msra.mxu0 %v1989
      %2003 = vmatpush.bf16.msra.mxu0 %v1988
      %2004 = vmatpush.bf16.msra.mxu0 %v1987
      %2005 = vmatpush.bf16.msra.mxu0 %v1986
      %2006 = vmatpush.bf16.msra.mxu0 %v1985
      %2007 = vmatpush.bf16.msra.mxu0 %v1984
      %2008 = vmatmul.bf16.gmra.mxu0 %v539
      %v2009 = vpop.f32.mrf.mxu0
      %v2010 = vadd.f32 0.0, %v2009
      %v2011 = vpop.f32.mrf.mxu0
      %v2012 = vadd.f32 0.0, %v2011
      %2013 = vmatmul.bf16.gmra.mxu0 %v540
      %v2014 = vpop.f32.mrf.mxu0
      %v2015 = vadd.f32 0.0, %v2014
      %v2016 = vpop.f32.mrf.mxu0
      %v2017 = vadd.f32 0.0, %v2016
      %2018 = vmatmul.bf16.gmra.mxu0 %v541
      %v2019 = vpop.f32.mrf.mxu0
      %v2020 = vadd.f32 0.0, %v2019
      %v2021 = vpop.f32.mrf.mxu0
      %v2022 = vadd.f32 0.0, %v2021
      %2023 = vmatmul.bf16.gmra.mxu0 %v542
      %v2024 = vpop.f32.mrf.mxu0
      %v2025 = vadd.f32 0.0, %v2024
      %v2026 = vpop.f32.mrf.mxu0
      %v2027 = vadd.f32 0.0, %v2026
      %2028 = vmatmul.bf16.gmra.mxu0 %v543
      %v2029 = vpop.f32.mrf.mxu0
      %v2030 = vadd.f32 0.0, %v2029
      %v2031 = vpop.f32.mrf.mxu0
      %v2032 = vadd.f32 0.0, %v2031
      %2033 = vmatmul.bf16.gmra.mxu0 %v544
      %v2034 = vpop.f32.mrf.mxu0
      %v2035 = vadd.f32 0.0, %v2034
      %v2036 = vpop.f32.mrf.mxu0
      %v2037 = vadd.f32 0.0, %v2036
      %2038 = vmatmul.bf16.gmra.mxu0 %v545
      %v2039 = vpop.f32.mrf.mxu0
      %v2040 = vadd.f32 0.0, %v2039
      %v2041 = vpop.f32.mrf.mxu0
      %v2042 = vadd.f32 0.0, %v2041
      %2043 = vmatmul.bf16.gmra.mxu0 %v546
      %v2044 = vpop.f32.mrf.mxu0
      %v2045 = vadd.f32 0.0, %v2044
      %v2046 = vpop.f32.mrf.mxu0
      %v2047 = vadd.f32 0.0, %v2046
      %2048 = vmatmul.bf16.gmra.mxu0 %v547
      %v2049 = vpop.f32.mrf.mxu0
      %v2050 = vadd.f32 0.0, %v2049
      %v2051 = vpop.f32.mrf.mxu0
      %v2052 = vadd.f32 0.0, %v2051
      %2053 = vmatmul.bf16.gmra.mxu0 %v548
      %v2054 = vpop.f32.mrf.mxu0
      %v2055 = vadd.f32 0.0, %v2054
      %v2056 = vpop.f32.mrf.mxu0
      %v2057 = vadd.f32 0.0, %v2056
      %2058 = vmatmul.bf16.gmra.mxu0 %v549
      %v2059 = vpop.f32.mrf.mxu0
      %v2060 = vadd.f32 0.0, %v2059
      %v2061 = vpop.f32.mrf.mxu0
      %v2062 = vadd.f32 0.0, %v2061
      %2063 = vmatmul.bf16.gmra.mxu0 %v550
      %v2064 = vpop.f32.mrf.mxu0
      %v2065 = vadd.f32 0.0, %v2064
      %v2066 = vpop.f32.mrf.mxu0
      %v2067 = vadd.f32 0.0, %v2066
      %2068 = vmatmul.bf16.gmra.mxu0 %v551
      %v2069 = vpop.f32.mrf.mxu0
      %v2070 = vadd.f32 0.0, %v2069
      %v2071 = vpop.f32.mrf.mxu0
      %v2072 = vadd.f32 0.0, %v2071
      %2073 = vmatmul.bf16.gmra.mxu0 %v552
      %v2074 = vpop.f32.mrf.mxu0
      %v2075 = vadd.f32 0.0, %v2074
      %v2076 = vpop.f32.mrf.mxu0
      %v2077 = vadd.f32 0.0, %v2076
      %2078 = vmatmul.bf16.gmra.mxu0 %v1356
      %v2079 = vpop.f32.mrf.mxu0
      %v2080 = vadd.f32 0.0, %v2079
      %v2081 = vpop.f32.mrf.mxu0
      %v2082 = vadd.f32 0.0, %v2081
      %2083 = vmatmul.bf16.gmra.mxu0 %v1934
      %v2084 = vpop.f32.mrf.mxu0
      %v2085 = vadd.f32 0.0, %v2084
      %v2086 = vpop.f32.mrf.mxu0
      %v2087 = vadd.f32 0.0, %v2086
      %2088 = vdwg.mxu0
      %v2089 = vadd.f32 %v1892, %v2010
      %v2090 = vadd.f32 %v1893, %v2012
      %v2091 = vadd.f32 %v1894, %v2015
      %v2092 = vadd.f32 %v1895, %v2017
      %v2093 = vadd.f32 %v1896, %v2020
      %v2094 = vadd.f32 %v1897, %v2022
      %v2095 = vadd.f32 %v1898, %v2025
      %v2096 = vadd.f32 %v1899, %v2027
      %v2097 = vadd.f32 %v1900, %v2030
      %v2098 = vadd.f32 %v1901, %v2032
      %v2099 = vadd.f32 %v1902, %v2035
      %v2100 = vadd.f32 %v1903, %v2037
      %v2101 = vadd.f32 %v1904, %v2040
      %v2102 = vadd.f32 %v1905, %v2042
      %v2103 = vadd.f32 %v1906, %v2045
      %v2104 = vadd.f32 %v1907, %v2047
      %v2105 = vadd.f32 %v1908, %v2050
      %v2106 = vadd.f32 %v1909, %v2052
      %v2107 = vadd.f32 %v1910, %v2055
      %v2108 = vadd.f32 %v1911, %v2057
      %v2109 = vadd.f32 %v1912, %v2060
      %v2110 = vadd.f32 %v1913, %v2062
      %v2111 = vadd.f32 %v1914, %v2065
      %v2112 = vadd.f32 %v1915, %v2067
      %v2113 = vadd.f32 %v1916, %v2070
      %v2114 = vadd.f32 %v1917, %v2072
      %v2115 = vadd.f32 %v1918, %v2075
      %v2116 = vadd.f32 %v1919, %v2077
      %v2117 = vadd.f32 %v1920, %v2080
      %v2118 = vadd.f32 %v1921, %v2082
      %v2119 = vadd.f32 %v1922, %v2085
      %v2120 = vadd.f32 %v1923, %v2087
      %v2121 = vrot.slane %v341, 2
      %v2122 = vrot.slane %v342, 2
      %v2123 = vsel %vm844, %v2121, %v2122
      %v2124 = vrot.slane %v343, 2
      %v2125 = vsel %vm844, %v2122, %v2124
      %v2128 = vpack.c.bf16 %v2125, %v2123
      %s2129 = scalar_lea.vmem %s3, 512
      %v2130 = vld [vmem:[%s2129] sm:$0xf]
      %v2131 = vld [vmem:[%s2129 + $0x4] sm:$0xf]
      %v2132 = vld [vmem:[%s2129 + $0x8] sm:$0xf]
      %v2133 = vld [vmem:[%s2129 + $0xc] sm:$0xf]
      %v2134 = vld [vmem:[%s2129 + $0x10] sm:$0xf]
      %v2135 = vld [vmem:[%s2129 + $0x14] sm:$0xf]
      %v2136 = vld [vmem:[%s2129 + $0x18] sm:$0xf]
      %v2137 = vld [vmem:[%s2129 + $0x1c] sm:$0xf]
      %v2138 = vld [vmem:[%s2129 + $0x20] sm:$0xf]
      %v2139 = vld [vmem:[%s2129 + $0x24] sm:$0xf]
      %v2140 = vld [vmem:[%s2129 + $0x28] sm:$0xf]
      %v2141 = vld [vmem:[%s2129 + $0x2c] sm:$0xf]
      %v2142 = vld [vmem:[%s2129 + $0x30] sm:$0xf]
      %v2143 = vld [vmem:[%s2129 + $0x34] sm:$0xf]
      %v2144 = vld [vmem:[%s2129 + $0x38] sm:$0xf]
      %v2145 = vld [vmem:[%s2129 + $0x3c] sm:$0xf]
      %v2162 = vunpack.c.l.b16 %v2130
      %v2163 = vunpack.c.l.b16 %v2131
      %v2164 = vunpack.c.l.b16 %v2132
      %v2165 = vunpack.c.l.b16 %v2133
      %v2166 = vunpack.c.l.b16 %v2134
      %v2167 = vunpack.c.l.b16 %v2135
      %v2168 = vunpack.c.l.b16 %v2136
      %v2169 = vunpack.c.l.b16 %v2137
      %v2170 = vunpack.c.l.b16 %v2138
      %v2171 = vunpack.c.l.b16 %v2139
      %v2172 = vunpack.c.l.b16 %v2140
      %v2173 = vunpack.c.l.b16 %v2141
      %v2174 = vunpack.c.l.b16 %v2142
      %v2175 = vunpack.c.l.b16 %v2143
      %v2176 = vunpack.c.l.b16 %v2144
      %v2177 = vunpack.c.l.b16 %v2145
      %v2178 = vpack.c.b16 %v2163, %v2162
      %v2179 = vpack.c.b16 %v2165, %v2164
      %v2180 = vpack.c.b16 %v2167, %v2166
      %v2181 = vpack.c.b16 %v2169, %v2168
      %v2182 = vpack.c.b16 %v2171, %v2170
      %v2183 = vpack.c.b16 %v2173, %v2172
      %v2184 = vpack.c.b16 %v2175, %v2174
      %v2185 = vpack.c.b16 %v2177, %v2176
      %2194 = vmatpush.bf16.msra.mxu0 %v2185
      %2195 = vmatpush.bf16.msra.mxu0 %v2184
      %2196 = vmatpush.bf16.msra.mxu0 %v2183
      %2197 = vmatpush.bf16.msra.mxu0 %v2182
      %2198 = vmatpush.bf16.msra.mxu0 %v2181
      %2199 = vmatpush.bf16.msra.mxu0 %v2180
      %2200 = vmatpush.bf16.msra.mxu0 %v2179
      %2201 = vmatpush.bf16.msra.mxu0 %v2178
      %2202 = vmatmul.bf16.gmra.mxu0 %v959
      %v2203 = vpop.f32.mrf.mxu0
      %v2204 = vadd.f32 0.0, %v2203
      %v2205 = vpop.f32.mrf.mxu0
      %v2206 = vadd.f32 0.0, %v2205
      %2207 = vmatmul.bf16.gmra.mxu0 %v960
      %v2208 = vpop.f32.mrf.mxu0
      %v2209 = vadd.f32 0.0, %v2208
      %v2210 = vpop.f32.mrf.mxu0
      %v2211 = vadd.f32 0.0, %v2210
      %2212 = vmatmul.bf16.gmra.mxu0 %v961
      %v2213 = vpop.f32.mrf.mxu0
      %v2214 = vadd.f32 0.0, %v2213
      %v2215 = vpop.f32.mrf.mxu0
      %v2216 = vadd.f32 0.0, %v2215
      %2217 = vmatmul.bf16.gmra.mxu0 %v962
      %v2218 = vpop.f32.mrf.mxu0
      %v2219 = vadd.f32 0.0, %v2218
      %v2220 = vpop.f32.mrf.mxu0
      %v2221 = vadd.f32 0.0, %v2220
      %2222 = vmatmul.bf16.gmra.mxu0 %v963
      %v2223 = vpop.f32.mrf.mxu0
      %v2224 = vadd.f32 0.0, %v2223
      %v2225 = vpop.f32.mrf.mxu0
      %v2226 = vadd.f32 0.0, %v2225
      %2227 = vmatmul.bf16.gmra.mxu0 %v964
      %v2228 = vpop.f32.mrf.mxu0
      %v2229 = vadd.f32 0.0, %v2228
      %v2230 = vpop.f32.mrf.mxu0
      %v2231 = vadd.f32 0.0, %v2230
      %2232 = vmatmul.bf16.gmra.mxu0 %v965
      %v2233 = vpop.f32.mrf.mxu0
      %v2234 = vadd.f32 0.0, %v2233
      %v2235 = vpop.f32.mrf.mxu0
      %v2236 = vadd.f32 0.0, %v2235
      %2237 = vmatmul.bf16.gmra.mxu0 %v966
      %v2238 = vpop.f32.mrf.mxu0
      %v2239 = vadd.f32 0.0, %v2238
      %v2240 = vpop.f32.mrf.mxu0
      %v2241 = vadd.f32 0.0, %v2240
      %2242 = vmatmul.bf16.gmra.mxu0 %v967
      %v2243 = vpop.f32.mrf.mxu0
      %v2244 = vadd.f32 0.0, %v2243
      %v2245 = vpop.f32.mrf.mxu0
      %v2246 = vadd.f32 0.0, %v2245
      %2247 = vmatmul.bf16.gmra.mxu0 %v968
      %v2248 = vpop.f32.mrf.mxu0
      %v2249 = vadd.f32 0.0, %v2248
      %v2250 = vpop.f32.mrf.mxu0
      %v2251 = vadd.f32 0.0, %v2250
      %2252 = vmatmul.bf16.gmra.mxu0 %v969
      %v2253 = vpop.f32.mrf.mxu0
      %v2254 = vadd.f32 0.0, %v2253
      %v2255 = vpop.f32.mrf.mxu0
      %v2256 = vadd.f32 0.0, %v2255
      %2257 = vmatmul.bf16.gmra.mxu0 %v970
      %v2258 = vpop.f32.mrf.mxu0
      %v2259 = vadd.f32 0.0, %v2258
      %v2260 = vpop.f32.mrf.mxu0
      %v2261 = vadd.f32 0.0, %v2260
      %2262 = vmatmul.bf16.gmra.mxu0 %v971
      %v2263 = vpop.f32.mrf.mxu0
      %v2264 = vadd.f32 0.0, %v2263
      %v2265 = vpop.f32.mrf.mxu0
      %v2266 = vadd.f32 0.0, %v2265
      %2267 = vmatmul.bf16.gmra.mxu0 %v972
      %v2268 = vpop.f32.mrf.mxu0
      %v2269 = vadd.f32 0.0, %v2268
      %v2270 = vpop.f32.mrf.mxu0
      %v2271 = vadd.f32 0.0, %v2270
      %2272 = vmatmul.bf16.gmra.mxu0 %v1550
      %v2273 = vpop.f32.mrf.mxu0
      %v2274 = vadd.f32 0.0, %v2273
      %v2275 = vpop.f32.mrf.mxu0
      %v2276 = vadd.f32 0.0, %v2275
      %2277 = vmatmul.bf16.gmra.mxu0 %v2128
      %v2278 = vpop.f32.mrf.mxu0
      %v2279 = vadd.f32 0.0, %v2278
      %v2280 = vpop.f32.mrf.mxu0
      %v2281 = vadd.f32 0.0, %v2280
      %2282 = vdwg.mxu0
      %v2283 = vadd.f32 %v2089, %v2204
      %v2284 = vadd.f32 %v2090, %v2206
      %v2285 = vadd.f32 %v2091, %v2209
      %v2286 = vadd.f32 %v2092, %v2211
      %v2287 = vadd.f32 %v2093, %v2214
      %v2288 = vadd.f32 %v2094, %v2216
      %v2289 = vadd.f32 %v2095, %v2219
      %v2290 = vadd.f32 %v2096, %v2221
      %v2291 = vadd.f32 %v2097, %v2224
      %v2292 = vadd.f32 %v2098, %v2226
      %v2293 = vadd.f32 %v2099, %v2229
      %v2294 = vadd.f32 %v2100, %v2231
      %v2295 = vadd.f32 %v2101, %v2234
      %v2296 = vadd.f32 %v2102, %v2236
      %v2297 = vadd.f32 %v2103, %v2239
      %v2298 = vadd.f32 %v2104, %v2241
      %v2299 = vadd.f32 %v2105, %v2244
      %v2300 = vadd.f32 %v2106, %v2246
      %v2301 = vadd.f32 %v2107, %v2249
      %v2302 = vadd.f32 %v2108, %v2251
      %v2303 = vadd.f32 %v2109, %v2254
      %v2304 = vadd.f32 %v2110, %v2256
      %v2305 = vadd.f32 %v2111, %v2259
      %v2306 = vadd.f32 %v2112, %v2261
      %v2307 = vadd.f32 %v2113, %v2264
      %v2308 = vadd.f32 %v2114, %v2266
      %v2309 = vadd.f32 %v2115, %v2269
      %v2310 = vadd.f32 %v2116, %v2271
      %v2311 = vadd.f32 %v2117, %v2274
      %v2312 = vadd.f32 %v2118, %v2276
      %v2313 = vadd.f32 %v2119, %v2279
      %v2314 = vadd.f32 %v2120, %v2281
      %v2315 = vpack.c.bf16 %v2283, %v2283
      %v2316 = vpack.c.bf16 %v2284, %v2284
      %v2317 = vpack.c.bf16 %v2285, %v2285
      %v2318 = vpack.c.bf16 %v2286, %v2286
      %v2319 = vpack.c.bf16 %v2287, %v2287
      %v2320 = vpack.c.bf16 %v2288, %v2288
      %v2321 = vpack.c.bf16 %v2289, %v2289
      %v2322 = vpack.c.bf16 %v2290, %v2290
      %v2323 = vpack.c.bf16 %v2291, %v2291
      %v2324 = vpack.c.bf16 %v2292, %v2292
      %v2325 = vpack.c.bf16 %v2293, %v2293
      %v2326 = vpack.c.bf16 %v2294, %v2294
      %v2327 = vpack.c.bf16 %v2295, %v2295
      %v2328 = vpack.c.bf16 %v2296, %v2296
      %v2329 = vpack.c.bf16 %v2297, %v2297
      %v2330 = vpack.c.bf16 %v2298, %v2298
      %v2331 = vpack.c.bf16 %v2299, %v2299
      %v2332 = vpack.c.bf16 %v2300, %v2300
      %v2333 = vpack.c.bf16 %v2301, %v2301
      %v2334 = vpack.c.bf16 %v2302, %v2302
      %v2335 = vpack.c.bf16 %v2303, %v2303
      %v2336 = vpack.c.bf16 %v2304, %v2304
      %v2337 = vpack.c.bf16 %v2305, %v2305
      %v2338 = vpack.c.bf16 %v2306, %v2306
      %v2339 = vpack.c.bf16 %v2307, %v2307
      %v2340 = vpack.c.bf16 %v2308, %v2308
      %v2341 = vpack.c.bf16 %v2309, %v2309
      %v2342 = vpack.c.bf16 %v2310, %v2310
      %v2343 = vpack.c.bf16 %v2311, %v2311
      %v2344 = vpack.c.bf16 %v2312, %v2312
      %v2345 = vpack.c.bf16 %v2313, %v2313
      %v2346 = vpack.c.bf16 %v2314, %v2314
      %2347 = vst [vmem:[%s231] sm:$0xf] %v2315
      %2348 = vst [vmem:[%s231 + $0x4] sm:$0xf] %v2316
      %2349 = vst [vmem:[%s231 + $0x8] sm:$0xf] %v2317
      %2350 = vst [vmem:[%s231 + $0xc] sm:$0xf] %v2318
      %2351 = vst [vmem:[%s231 + $0x10] sm:$0xf] %v2319
      %2352 = vst [vmem:[%s231 + $0x14] sm:$0xf] %v2320
      %2353 = vst [vmem:[%s231 + $0x18] sm:$0xf] %v2321
      %2354 = vst [vmem:[%s231 + $0x1c] sm:$0xf] %v2322
      %2355 = vst [vmem:[%s231 + $0x20] sm:$0xf] %v2323
      %2356 = vst [vmem:[%s231 + $0x24] sm:$0xf] %v2324
      %2357 = vst [vmem:[%s231 + $0x28] sm:$0xf] %v2325
      %2358 = vst [vmem:[%s231 + $0x2c] sm:$0xf] %v2326
      %2359 = vst [vmem:[%s231 + $0x30] sm:$0xf] %v2327
      %2360 = vst [vmem:[%s231 + $0x34] sm:$0xf] %v2328
      %2361 = vst [vmem:[%s231 + $0x38] sm:$0xf] %v2329
      %2362 = vst [vmem:[%s231 + $0x3c] sm:$0xf] %v2330
      %2363 = vst [vmem:[%s231 + $0x40] sm:$0xf] %v2331
      %2364 = vst [vmem:[%s231 + $0x44] sm:$0xf] %v2332
      %2365 = vst [vmem:[%s231 + $0x48] sm:$0xf] %v2333
      %2366 = vst [vmem:[%s231 + $0x4c] sm:$0xf] %v2334
      %2367 = vst [vmem:[%s231 + $0x50] sm:$0xf] %v2335
      %2368 = vst [vmem:[%s231 + $0x54] sm:$0xf] %v2336
      %2369 = vst [vmem:[%s231 + $0x58] sm:$0xf] %v2337
      %2370 = vst [vmem:[%s231 + $0x5c] sm:$0xf] %v2338
      %2371 = vst [vmem:[%s231 + $0x60] sm:$0xf] %v2339
      %2372 = vst [vmem:[%s231 + $0x64] sm:$0xf] %v2340
      %2373 = vst [vmem:[%s231 + $0x68] sm:$0xf] %v2341
      %2374 = vst [vmem:[%s231 + $0x6c] sm:$0xf] %v2342
      %2375 = vst [vmem:[%s231 + $0x70] sm:$0xf] %v2343
      %2376 = vst [vmem:[%s231 + $0x74] sm:$0xf] %v2344
      %2377 = vst [vmem:[%s231 + $0x78] sm:$0xf] %v2345
      %2378 = vst [vmem:[%s231 + $0x7c] sm:$0xf] %v2346
      %v2379 = vadd.f32 %v2283, %v2284
      %v2380 = vadd.f32 %v2379, %v2285
      %v2381 = vadd.f32 %v2380, %v2286
      %v2382 = vadd.f32 %v2381, %v2287
      %v2383 = vadd.f32 %v2382, %v2288
      %v2384 = vadd.f32 %v2383, %v2289
      %v2385 = vadd.f32 %v2384, %v2290
      %v2386 = vadd.f32 %v2385, %v2291
      %v2387 = vadd.f32 %v2386, %v2292
      %v2388 = vadd.f32 %v2387, %v2293
      %v2389 = vadd.f32 %v2388, %v2294
      %v2390 = vadd.f32 %v2389, %v2295
      %v2391 = vadd.f32 %v2390, %v2296
      %v2392 = vadd.f32 %v2391, %v2297
      %v2393 = vadd.f32 %v2392, %v2298
      %v2394 = vadd.f32 %v2393, %v2299
      %v2395 = vadd.f32 %v2394, %v2300
      %v2396 = vadd.f32 %v2395, %v2301
      %v2397 = vadd.f32 %v2396, %v2302
      %v2398 = vadd.f32 %v2397, %v2303
      %v2399 = vadd.f32 %v2398, %v2304
      %v2400 = vadd.f32 %v2399, %v2305
      %v2401 = vadd.f32 %v2400, %v2306
      %v2402 = vadd.f32 %v2401, %v2307
      %v2403 = vadd.f32 %v2402, %v2308
      %v2404 = vadd.f32 %v2403, %v2309
      %v2405 = vadd.f32 %v2404, %v2310
      %v2406 = vadd.f32 %v2405, %v2311
      %v2407 = vadd.f32 %v2406, %v2312
      %v2408 = vadd.f32 %v2407, %v2313
      %v2409 = vadd.f32 %v2408, %v2314
      %v2410 = vrot.slane %v2409, 4
      %v2411 = vadd.f32 %v2409, %v2410
      %v2412 = vrot.slane %v2411, 2
      %v2413 = vadd.f32 %v2411, %v2412
      %v2414 = vrot.slane %v2413, 1
      %v2415 = vadd.f32 %v2413, %v2414
      %v2416 = vmul.f32 %v2283, %v2283
      %v2417 = vmul.f32 %v2284, %v2284
      %v2418 = vmul.f32 %v2285, %v2285
      %v2419 = vmul.f32 %v2286, %v2286
      %v2420 = vmul.f32 %v2287, %v2287
      %v2421 = vmul.f32 %v2288, %v2288
      %v2422 = vmul.f32 %v2289, %v2289
      %v2423 = vmul.f32 %v2290, %v2290
      %v2424 = vmul.f32 %v2291, %v2291
      %v2425 = vmul.f32 %v2292, %v2292
      %v2426 = vmul.f32 %v2293, %v2293
      %v2427 = vmul.f32 %v2294, %v2294
      %v2428 = vmul.f32 %v2295, %v2295
      %v2429 = vmul.f32 %v2296, %v2296
      %v2430 = vmul.f32 %v2297, %v2297
      %v2431 = vmul.f32 %v2298, %v2298
      %v2432 = vmul.f32 %v2299, %v2299
      %v2433 = vmul.f32 %v2300, %v2300
      %v2434 = vmul.f32 %v2301, %v2301
      %v2435 = vmul.f32 %v2302, %v2302
      %v2436 = vmul.f32 %v2303, %v2303
      %v2437 = vmul.f32 %v2304, %v2304
      %v2438 = vmul.f32 %v2305, %v2305
      %v2439 = vmul.f32 %v2306, %v2306
      %v2440 = vmul.f32 %v2307, %v2307
      %v2441 = vmul.f32 %v2308, %v2308
      %v2442 = vmul.f32 %v2309, %v2309
      %v2443 = vmul.f32 %v2310, %v2310
      %v2444 = vmul.f32 %v2311, %v2311
      %v2445 = vmul.f32 %v2312, %v2312
      %v2446 = vmul.f32 %v2313, %v2313
      %v2447 = vmul.f32 %v2314, %v2314
      %v2448 = vadd.f32 %v2416, %v2417
      %v2449 = vadd.f32 %v2448, %v2418
      %v2450 = vadd.f32 %v2449, %v2419
      %v2451 = vadd.f32 %v2450, %v2420
      %v2452 = vadd.f32 %v2451, %v2421
      %v2453 = vadd.f32 %v2452, %v2422
      %v2454 = vadd.f32 %v2453, %v2423
      %v2455 = vadd.f32 %v2454, %v2424
      %v2456 = vadd.f32 %v2455, %v2425
      %v2457 = vadd.f32 %v2456, %v2426
      %v2458 = vadd.f32 %v2457, %v2427
      %v2459 = vadd.f32 %v2458, %v2428
      %v2460 = vadd.f32 %v2459, %v2429
      %v2461 = vadd.f32 %v2460, %v2430
      %v2462 = vadd.f32 %v2461, %v2431
      %v2463 = vadd.f32 %v2462, %v2432
      %v2464 = vadd.f32 %v2463, %v2433
      %v2465 = vadd.f32 %v2464, %v2434
      %v2466 = vadd.f32 %v2465, %v2435
      %v2467 = vadd.f32 %v2466, %v2436
      %v2468 = vadd.f32 %v2467, %v2437
      %v2469 = vadd.f32 %v2468, %v2438
      %v2470 = vadd.f32 %v2469, %v2439
      %v2471 = vadd.f32 %v2470, %v2440
      %v2472 = vadd.f32 %v2471, %v2441
      %v2473 = vadd.f32 %v2472, %v2442
      %v2474 = vadd.f32 %v2473, %v2443
      %v2475 = vadd.f32 %v2474, %v2444
      %v2476 = vadd.f32 %v2475, %v2445
      %v2477 = vadd.f32 %v2476, %v2446
      %v2478 = vadd.f32 %v2477, %v2447
      %v2479 = vrot.slane %v2478, 4
      %v2480 = vadd.f32 %v2478, %v2479
      %v2481 = vrot.slane %v2480, 2
      %v2482 = vadd.f32 %v2480, %v2481
      %v2483 = vrot.slane %v2482, 1
      %v2484 = vadd.f32 %v2482, %v2483
      %vm2485 = vcmask 1040384
      %v2486 = vsel %vm2485, %v2415, %v2484
      %2487 = vst [vmem:[%s235] sm:$0x3] %v2486
      %p2488 = scmp.lt.s32.totalorder %s17, 1
      %s2489 = scalar_select %p2488, %s17, 1
      %s2490 = smul.addr %s2489, 32
      %s2491 = smul.addr %s2490, 4
      %s2492 = scalar_lea.vmem %s4, %s2491
      %p2493 = scmp.lt.s32.totalorder %s17, 1
      %s2494 = scalar_select %p2493, %s17, 1
      %s2495 = smul.addr %s2494, 2
      %s2496 = scalar_lea.vmem %s5, %s2495
      // Predicated region
      $region37: #{_lambda_.4} parent=35 // pred_check
        %p2497 = pneg %p124
      $region38: #{_lambda_.4} parent=35 // pred_check_branch
        %2499 = sbr.rel (%p2497) target = $region40
      $region39: #{_lambda_.4} parent=35 // pred_region
        _
      $region40: #{_lambda_.4} parent=35 // pred_fallthru
        _
      // Predicated region
      $region41: #{_lambda_.4} parent=35 // pred_check
        %p2500 = pneg %p150
      $region42: #{_lambda_.4} parent=35 // pred_check_branch
        %2502 = sbr.rel (%p2500) target = $region44
      $region43: #{_lambda_.4} parent=35 // pred_region
        _
      $region44: #{_lambda_.4} parent=35 // pred_fallthru
        _
    $region36: #{_lambda_.4} parent=5 // pred_fallthru
      _
    %p2503 = scmp.le.s32.totalorder 2, %s12
    // Predicated region
    $region45: #{_lambda_.4} parent=5 // pred_check
      %p2504 = pneg %p2503
    $region46: #{_lambda_.4} parent=5 // pred_check_branch
      %2506 = sbr.rel (%p2504) target = $region48
    $region47: #{_lambda_.4} parent=5 // pred_region
      %s2507 = ssub.s32 %s12, 2
      // Predicated region
      $region49: #{_lambda_.4} parent=47 // pred_check
        %p2508 = pneg %p130
      $region50: #{_lambda_.4} parent=47 // pred_check_branch
        %2510 = sbr.rel (%p2508) target = $region52
      $region51: #{_lambda_.4} parent=47 // pred_region
        %p2511 = scmp.lt.s32.totalorder %s18, 1
        %s2512 = scalar_select %p2511, %s18, 1
        %s2513 = smul.addr %s2512, 32
        %s2514 = smul.addr %s2513, 4
        %s2515 = scalar_lea.vmem %s4, %s2514
      $region52: #{_lambda_.4} parent=47 // pred_fallthru
        _
      // Predicated region
      $region53: #{_lambda_.4} parent=47 // pred_check
        %p2516 = pneg %p156
      $region54: #{_lambda_.4} parent=47 // pred_check_branch
        %2518 = sbr.rel (%p2516) target = $region56
      $region55: #{_lambda_.4} parent=47 // pred_region
        %p2519 = scmp.lt.s32.totalorder %s18, 1
        %s2520 = scalar_select %p2519, %s18, 1
        %s2521 = smul.addr %s2520, 2
        %s2522 = scalar_lea.vmem %s5, %s2521
      $region56: #{_lambda_.4} parent=47 // pred_fallthru
        _
    $region48: #{_lambda_.4} parent=5 // pred_fallthru
      _
  $region6: #{_lambda_.4} parent=0 // loop_footer
    %s16 = sadd.s32 1, %s12
  $region7: #{_lambda_.4} parent=0 // loop_footer_branch
    %11 = sbr.rel target = $region3
  $region8: #{_lambda_.4} parent=0 // loop_exit
    _

// kernel: _lambda_.5
$region0: #{_lambda_.5}
  #allocation0 [shape = 'u32[]', space=smem, size = 0x4, offset = 0x4, fixed_abs, tag = 'smem constant byte address 0x4 - core index']
  #allocation1 [shape = 'u32[72,128]{1,0:T(1,128)}', space=vmem, size = 0x9000, scoped, tag = 'internal scratch']
  %s0 = inlined_call_operand.vmem [shape: bf16[2,18,18,128], index: 0, kind: input, shape index: {}]
  %s1 = inlined_call_operand.vmem [shape: f32[1,128], index: 1, kind: input, shape index: {}]
  %s2 = inlined_call_operand.vmem [shape: f32[1,128], index: 2, kind: input, shape index: {}]
  %s3 = inlined_call_operand.vmem [shape: bf16[9,128,128], index: 3, kind: input, shape index: {}]
  %s4 = inlined_call_operand.vmem [shape: bf16[2,16,16,128], index: 4, kind: output, shape index: {0}]
  %s5 = inlined_call_operand.vmem [shape: f32[2,2,128], index: 5, kind: output, shape index: {1}]
  %6 = xla_tuple %s4, %s5
  %s7 = sld [smem:[#allocation0]]
  $region57: #{_lambda_.5} parent=0
    _
  %s9 = ssub.s32 1, %s7
  %s10 = scalar_select 0, %s9, %s7
  loop: start=0, step=1, limit=4
  $region2: #{_lambda_.5} parent=0 // loop_pre_header
    _
  $region3: #{_lambda_.5} parent=0 // loop_header
    %s12 = sphi 0, %s16
    %p13 = scmp.ge.s32.totalorder %s12, 4
    %s22 = sphi 0, %s24
    %s25 = sphi 0, %s22
    %s26 = sphi 0, %s25
    %s42 = sphi 0, %s26
    %s46 = sphi 0, %s46
    %s48 = sphi 0, %s46
    %s49 = sphi 0, %s48
    %s63 = sphi 0, %s49
    %s67 = sphi 0, %s67
    %s69 = sphi 0, %s67
    %s70 = sphi 0, %s69
    %s84 = sphi 0, %s70
    %s88 = sphi 0, %s88
    %s90 = sphi 0, %s88
    %s91 = sphi 0, %s90
    %s105 = sphi 0, %s91
    %s111 = sphi 0, %s113
    %s114 = sphi 0, %s111
    %s115 = sphi 0, %s114
    %s131 = sphi 0, %s115
    %s137 = sphi 0, %s139
    %s140 = sphi 0, %s137
    %s141 = sphi 0, %s140
    %s157 = sphi 0, %s141
  $region4: #{_lambda_.5} parent=0 // loop_header_branch
    %15 = sbr.rel (%p13) target = $region8
  $region5: #{_lambda_.5} parent=0 // loop_body
    %s17 = ssub.s32 %s12, 1
    %s18 = ssub.s32 %s12, 2
    %s19 = sadd.s32 %s12, 1
    %s20 = ssub.s32 %s12, %s19
    %p21 = scmp.eq.s32.totalorder %s20, 0
    %s23 = sadd.s32 %s22, 1
    %s24 = scalar_select %p21, %s22, %s23
    %p27 = pneg %p21
    %p28 = scmp.eq.s32.totalorder %s12, 1
    %p29 = por %p27, %p28
    %p30 = scmp.ne.s32.totalorder %s22, %s25
    %p31 = scmp.eq.s32.totalorder %s12, 0
    %p32 = por %p30, %p31
    %p33 = scmp.ne.s32.totalorder %s22, %s25
    %p34 = scmp.eq.s32.totalorder %s17, 1
    %p35 = por %p33, %p34
    %p36 = scmp.ne.s32.totalorder %s25, %s26
    %p37 = scmp.eq.s32.totalorder %s17, 0
    %p38 = por %p36, %p37
    %p39 = scmp.ne.s32.totalorder %s25, %s26
    %p40 = scmp.eq.s32.totalorder %s18, 1
    %p41 = por %p39, %p40
    %p43 = scmp.ne.s32.totalorder %s26, %s42
    %p44 = scmp.eq.s32.totalorder %s18, 0
    %p45 = por %p43, %p44
    %s47 = sadd.s32 %s46, 1
    %p50 = scmp.eq.s32.totalorder %s12, 1
    %p51 = scmp.ne.s32.totalorder %s46, %s48
    %p52 = scmp.eq.s32.totalorder %s12, 0
    %p53 = por %p51, %p52
    %p54 = scmp.ne.s32.totalorder %s46, %s48
    %p55 = scmp.eq.s32.totalorder %s17, 1
    %p56 = por %p54, %p55
    %p57 = scmp.ne.s32.totalorder %s48, %s49
    %p58 = scmp.eq.s32.totalorder %s17, 0
    %p59 = por %p57, %p58
    %p60 = scmp.ne.s32.totalorder %s48, %s49
    %p61 = scmp.eq.s32.totalorder %s18, 1
    %p62 = por %p60, %p61
    %p64 = scmp.ne.s32.totalorder %s49, %s63
    %p65 = scmp.eq.s32.totalorder %s18, 0
    %p66 = por %p64, %p65
    %s68 = sadd.s32 %s67, 1
    %p71 = scmp.eq.s32.totalorder %s12, 1
    %p72 = scmp.ne.s32.totalorder %s67, %s69
    %p73 = scmp.eq.s32.totalorder %s12, 0
    %p74 = por %p72, %p73
    %p75 = scmp.ne.s32.totalorder %s67, %s69
    %p76 = scmp.eq.s32.totalorder %s17, 1
    %p77 = por %p75, %p76
    %p78 = scmp.ne.s32.totalorder %s69, %s70
    %p79 = scmp.eq.s32.totalorder %s17, 0
    %p80 = por %p78, %p79
    %p81 = scmp.ne.s32.totalorder %s69, %s70
    %p82 = scmp.eq.s32.totalorder %s18, 1
    %p83 = por %p81, %p82
    %p85 = scmp.ne.s32.totalorder %s70, %s84
    %p86 = scmp.eq.s32.totalorder %s18, 0
    %p87 = por %p85, %p86
    %s89 = sadd.s32 %s88, 1
    %p92 = scmp.eq.s32.totalorder %s12, 1
    %p93 = scmp.ne.s32.totalorder %s88, %s90
    %p94 = scmp.eq.s32.totalorder %s12, 0
    %p95 = por %p93, %p94
    %p96 = scmp.ne.s32.totalorder %s88, %s90
    %p97 = scmp.eq.s32.totalorder %s17, 1
    %p98 = por %p96, %p97
    %p99 = scmp.ne.s32.totalorder %s90, %s91
    %p100 = scmp.eq.s32.totalorder %s17, 0
    %p101 = por %p99, %p100
    %p102 = scmp.ne.s32.totalorder %s90, %s91
    %p103 = scmp.eq.s32.totalorder %s18, 1
    %p104 = por %p102, %p103
    %p106 = scmp.ne.s32.totalorder %s91, %s105
    %p107 = scmp.eq.s32.totalorder %s18, 0
    %p108 = por %p106, %p107
    %s109 = ssub.s32 %s12, %s19
    %p110 = scmp.eq.s32.totalorder %s109, 0
    %s112 = sadd.s32 %s111, 1
    %s113 = scalar_select %p110, %s111, %s112
    %p116 = pneg %p110
    %p117 = scmp.eq.s32.totalorder %s12, 1
    %p118 = por %p116, %p117
    %p119 = scmp.ne.s32.totalorder %s111, %s114
    %p120 = scmp.eq.s32.totalorder %s12, 0
    %p121 = por %p119, %p120
    %p122 = scmp.ne.s32.totalorder %s111, %s114
    %p123 = scmp.eq.s32.totalorder %s17, 1
    %p124 = por %p122, %p123
    %p125 = scmp.ne.s32.totalorder %s114, %s115
    %p126 = scmp.eq.s32.totalorder %s17, 0
    %p127 = por %p125, %p126
    %p128 = scmp.ne.s32.totalorder %s114, %s115
    %p129 = scmp.eq.s32.totalorder %s18, 1
    %p130 = por %p128, %p129
    %p132 = scmp.ne.s32.totalorder %s115, %s131
    %p133 = scmp.eq.s32.totalorder %s18, 0
    %p134 = por %p132, %p133
    %s135 = ssub.s32 %s12, %s19
    %p136 = scmp.eq.s32.totalorder %s135, 0
    %s138 = sadd.s32 %s137, 1
    %s139 = scalar_select %p136, %s137, %s138
    %p142 = pneg %p136
    %p143 = scmp.eq.s32.totalorder %s12, 1
    %p144 = por %p142, %p143
    %p145 = scmp.ne.s32.totalorder %s137, %s140
    %p146 = scmp.eq.s32.totalorder %s12, 0
    %p147 = por %p145, %p146
    %p148 = scmp.ne.s32.totalorder %s137, %s140
    %p149 = scmp.eq.s32.totalorder %s17, 1
    %p150 = por %p148, %p149
    %p151 = scmp.ne.s32.totalorder %s140, %s141
    %p152 = scmp.eq.s32.totalorder %s17, 0
    %p153 = por %p151, %p152
    %p154 = scmp.ne.s32.totalorder %s140, %s141
    %p155 = scmp.eq.s32.totalorder %s18, 1
    %p156 = por %p154, %p155
    %p158 = scmp.ne.s32.totalorder %s141, %s157
    %p159 = scmp.eq.s32.totalorder %s18, 0
    %p160 = por %p158, %p159
    %p161 = scmp.le.s32.totalorder 1, %s12
    %p162 = scmp.lt.s32.totalorder %s12, 3
    %p163 = pnand %p161, %p162
    %p164 = pneg %p163
    // Predicated region
    $region9: #{_lambda_.5} parent=5 // pred_check
      _
    $region10: #{_lambda_.5} parent=5 // pred_check_branch
      %166 = sbr.rel (%p163) target = $region12
    $region11: #{_lambda_.5} parent=5 // pred_region
      %s167 = ssub.s32 %s12, 1
      // Predicated region
      $region13: #{_lambda_.5} parent=11 // pred_check
        %p168 = pneg %p59
      $region14: #{_lambda_.5} parent=11 // pred_check_branch
        %170 = sbr.rel (%p168) target = $region16
      $region15: #{_lambda_.5} parent=11 // pred_region
        _
      $region16: #{_lambda_.5} parent=11 // pred_fallthru
        _
      // Predicated region
      $region17: #{_lambda_.5} parent=11 // pred_check
        %p171 = pneg %p80
      $region18: #{_lambda_.5} parent=11 // pred_check_branch
        %173 = sbr.rel (%p171) target = $region20
      $region19: #{_lambda_.5} parent=11 // pred_region
        _
      $region20: #{_lambda_.5} parent=11 // pred_fallthru
        _
      // Predicated region
      $region21: #{_lambda_.5} parent=11 // pred_check
        %p174 = pneg %p101
      $region22: #{_lambda_.5} parent=11 // pred_check_branch
        %176 = sbr.rel (%p174) target = $region24
      $region23: #{_lambda_.5} parent=11 // pred_region
        _
      $region24: #{_lambda_.5} parent=11 // pred_fallthru
        _
    $region12: #{_lambda_.5} parent=5 // pred_fallthru
      _
    %p177 = scmp.lt.s32.totalorder %s12, 2
    // Predicated region
    $region25: #{_lambda_.5} parent=5 // pred_check
      %p178 = pneg %p177
    $region26: #{_lambda_.5} parent=5 // pred_check_branch
      %180 = sbr.rel (%p178) target = $region28
    $region27: #{_lambda_.5} parent=5 // pred_region
      // Predicated region
      $region29: #{_lambda_.5} parent=27 // pred_check
        %p181 = pneg %p32
      $region30: #{_lambda_.5} parent=27 // pred_check_branch
        %183 = sbr.rel (%p181) target = $region32
      $region31: #{_lambda_.5} parent=27 // pred_region
        %p184 = scmp.lt.s32.totalorder %s12, 1
        %s185 = scalar_select %p184, %s12, 1
        %s186 = smul.addr %s185, 54
        %s187 = smul.addr %s186, 4
        %s188 = scalar_lea.vmem %s0, %s187
      $region32: #{_lambda_.5} parent=27 // pred_fallthru
        _
    $region28: #{_lambda_.5} parent=5 // pred_fallthru
      _
    %p189 = scmp.le.s32.totalorder 1, %s12
    %p190 = scmp.lt.s32.totalorder %s12, 3
    %p191 = pnand %p189, %p190
    %p192 = pneg %p191
    // Predicated region
    $region33: #{_lambda_.5} parent=5 // pred_check
      _
    $region34: #{_lambda_.5} parent=5 // pred_check_branch
      %194 = sbr.rel (%p191) target = $region36
    $region35: #{_lambda_.5} parent=5 // pred_region
      %s195 = ssub.s32 %s12, 1
      %p196 = scmp.lt.s32.totalorder %s17, 1
      %s197 = scalar_select %p196, %s17, 1
      %s198 = smul.addr %s197, 54
      %s199 = smul.addr %s198, 4
      %s200 = scalar_lea.vmem %s0, %s199
      %p201 = pneg %p38
      %p202 = pneg %p35
      %p203 = pneg %p59
      %p204 = pneg %p56
      %p205 = pneg %p80
      %p206 = pneg %p77
      %p207 = pneg %p101
      %p208 = pneg %p98
      %p209 = pneg %p127
      %p210 = pneg %p124
      %p211 = scmp.lt.s32.totalorder %s17, 1
      %s212 = scalar_select %p211, %s17, 1
      %s213 = smul.addr %s212, 32
      %s214 = smul.addr %s213, 4
      %s215 = scalar_lea.vmem %s4, %s214
      %p216 = pneg %p153
      %p217 = pneg %p150
      %p218 = scmp.lt.s32.totalorder %s17, 1
      %s219 = scalar_select %p218, %s17, 1
      %s220 = smul.addr %s219, 2
      %s221 = scalar_lea.vmem %s5, %s220
      %p222 = scmp.lt.s32.totalorder %s17, 1
      %s223 = scalar_select %p222, %s17, 1
      %s224 = smul.addr %s223, 54
      %s225 = smul.addr %s224, 4
      %s226 = scalar_lea.vmem %s0, %s225
      %p227 = scmp.lt.s32.totalorder %s17, 1
      %s228 = scalar_select %p227, %s17, 1
      %s229 = smul.addr %s228, 32
      %s230 = smul.addr %s229, 4
      %s231 = scalar_lea.vmem %s4, %s230
      %p232 = scmp.lt.s32.totalorder %s17, 1
      %s233 = scalar_select %p232, %s17, 1
      %s234 = smul.addr %s233, 2
      %s235 = scalar_lea.vmem %s5, %s234
      %v236 = vld [vmem:[%s226] sm:$0xf]
      %v237 = vld [vmem:[%s226 + $0x4] sm:$0xf]
      %v238 = vld [vmem:[%s226 + $0x8] sm:$0x1]
      %v239 = vld [vmem:[%s226 + $0xc] sm:$0xf]
      %v240 = vld [vmem:[%s226 + $0x10] sm:$0xf]
      %v241 = vld [vmem:[%s226 + $0x14] sm:$0x1]
      %v242 = vld [vmem:[%s226 + $0x18] sm:$0xf]
      %v243 = vld [vmem:[%s226 + $0x1c] sm:$0xf]
      %v244 = vld [vmem:[%s226 + $0x20] sm:$0x1]
      %v245 = vld [vmem:[%s226 + $0x24] sm:$0xf]
      %v246 = vld [vmem:[%s226 + $0x28] sm:$0xf]
      %v247 = vld [vmem:[%s226 + $0x2c] sm:$0x1]
      %v248 = vld [vmem:[%s226 + $0x30] sm:$0xf]
      %v249 = vld [vmem:[%s226 + $0x34] sm:$0xf]
      %v250 = vld [vmem:[%s226 + $0x38] sm:$0x1]
      %v251 = vld [vmem:[%s226 + $0x3c] sm:$0xf]
      %v252 = vld [vmem:[%s226 + $0x40] sm:$0xf]
      %v253 = vld [vmem:[%s226 + $0x44] sm:$0x1]
      %v254 = vld [vmem:[%s226 + $0x48] sm:$0xf]
      %v255 = vld [vmem:[%s226 + $0x4c] sm:$0xf]
      %v256 = vld [vmem:[%s226 + $0x50] sm:$0x1]
      %v257 = vld [vmem:[%s226 + $0x54] sm:$0xf]
      %v258 = vld [vmem:[%s226 + $0x58] sm:$0xf]
      %v259 = vld [vmem:[%s226 + $0x5c] sm:$0x1]
      %v260 = vld [vmem:[%s226 + $0x60] sm:$0xf]
      %v261 = vld [vmem:[%s226 + $0x64] sm:$0xf]
      %v262 = vld [vmem:[%s226 + $0x68] sm:$0x1]
      %v263 = vld [vmem:[%s226 + $0x6c] sm:$0xf]
      %v264 = vld [vmem:[%s226 + $0x70] sm:$0xf]
      %v265 = vld [vmem:[%s226 + $0x74] sm:$0x1]
      %v266 = vld [vmem:[%s226 + $0x78] sm:$0xf]
      %v267 = vld [vmem:[%s226 + $0x7c] sm:$0xf]
      %v268 = vld [vmem:[%s226 + $0x80] sm:$0x1]
      %v269 = vld [vmem:[%s226 + $0x84] sm:$0xf]
      %v270 = vld [vmem:[%s226 + $0x88] sm:$0xf]
      %v271 = vld [vmem:[%s226 + $0x8c] sm:$0x1]
      %v272 = vld [vmem:[%s226 + $0x90] sm:$0xf]
      %v273 = vld [vmem:[%s226 + $0x94] sm:$0xf]
      %v274 = vld [vmem:[%s226 + $0x98] sm:$0x1]
      %v275 = vld [vmem:[%s226 + $0x9c] sm:$0xf]
      %v276 = vld [vmem:[%s226 + $0xa0] sm:$0xf]
      %v277 = vld [vmem:[%s226 + $0xa4] sm:$0x1]
      %v278 = vld [vmem:[%s226 + $0xa8] sm:$0xf]
      %v279 = vld [vmem:[%s226 + $0xac] sm:$0xf]
      %v280 = vld [vmem:[%s226 + $0xb0] sm:$0x1]
      %v281 = vld [vmem:[%s226 + $0xb4] sm:$0xf]
      %v282 = vld [vmem:[%s226 + $0xb8] sm:$0xf]
      %v283 = vld [vmem:[%s226 + $0xbc] sm:$0x1]
      %v284 = vld [vmem:[%s226 + $0xc0] sm:$0xf]
      %v285 = vld [vmem:[%s226 + $0xc4] sm:$0xf]
      %v286 = vld [vmem:[%s226 + $0xc8] sm:$0x1]
      %v287 = vld [vmem:[%s226 + $0xcc] sm:$0xf]
      %v288 = vld [vmem:[%s226 + $0xd0] sm:$0xf]
      %v289 = vld [vmem:[%s226 + $0xd4] sm:$0x1]
      %v290 = vunpack.c.l.bf16 %v236
      %v291 = vunpack.c.l.bf16 %v237
      %v292 = vunpack.c.l.bf16 %v238
      %v293 = vunpack.c.l.bf16 %v239
      %v294 = vunpack.c.l.bf16 %v240
      %v295 = vunpack.c.l.bf16 %v241
      %v296 = vunpack.c.l.bf16 %v242
      %v297 = vunpack.c.l.bf16 %v243
      %v298 = vunpack.c.l.bf16 %v244
      %v299 = vunpack.c.l.bf16 %v245
      %v300 = vunpack.c.l.bf16 %v246
      %v301 = vunpack.c.l.bf16 %v247
      %v302 = vunpack.c.l.bf16 %v248
      %v303 = vunpack.c.l.bf16 %v249
      %v304 = vunpack.c.l.bf16 %v250
      %v305 = vunpack.c.l.bf16 %v251
      %v306 = vunpack.c.l.bf16 %v252
      %v307 = vunpack.c.l.bf16 %v253
      %v308 = vunpack.c.l.bf16 %v254
      %v309 = vunpack.c.l.bf16 %v255
      %v310 = vunpack.c.l.bf16 %v256
      %v311 = vunpack.c.l.bf16 %v257
      %v312 = vunpack.c.l.bf16 %v258
      %v313 = vunpack.c.l.bf16 %v259
      %v314 = vunpack.c.l.bf16 %v260
      %v315 = vunpack.c.l.bf16 %v261
      %v316 = vunpack.c.l.bf16 %v262
      %v317 = vunpack.c.l.bf16 %v263
      %v318 = vunpack.c.l.bf16 %v264
      %v319 = vunpack.c.l.bf16 %v265
      %v320 = vunpack.c.l.bf16 %v266
      %v321 = vunpack.c.l.bf16 %v267
      %v322 = vunpack.c.l.bf16 %v268
      %v323 = vunpack.c.l.bf16 %v269
      %v324 = vunpack.c.l.bf16 %v270
      %v325 = vunpack.c.l.bf16 %v271
      %v326 = vunpack.c.l.bf16 %v272
      %v327 = vunpack.c.l.bf16 %v273
      %v328 = vunpack.c.l.bf16 %v274
      %v329 = vunpack.c.l.bf16 %v275
      %v330 = vunpack.c.l.bf16 %v276
      %v331 = vunpack.c.l.bf16 %v277
      %v332 = vunpack.c.l.bf16 %v278
      %v333 = vunpack.c.l.bf16 %v279
      %v334 = vunpack.c.l.bf16 %v280
      %v335 = vunpack.c.l.bf16 %v281
      %v336 = vunpack.c.l.bf16 %v282
      %v337 = vunpack.c.l.bf16 %v283
      %v338 = vunpack.c.l.bf16 %v284
      %v339 = vunpack.c.l.bf16 %v285
      %v340 = vunpack.c.l.bf16 %v286
      %v341 = vunpack.c.l.bf16 %v287
      %v342 = vunpack.c.l.bf16 %v288
      %v343 = vunpack.c.l.bf16 %v289
      %v344 = vld [vmem:[%s1] sm:$0x1]
      %v346 = vperm.slane %v344, 0
      %v348 = vmul.f32 %v290, %v346
      %v349 = vmul.f32 %v291, %v346
      %v350 = vmul.f32 %v292, %v346
      %v351 = vmul.f32 %v293, %v346
      %v352 = vmul.f32 %v294, %v346
      %v353 = vmul.f32 %v295, %v346
      %v354 = vmul.f32 %v296, %v346
      %v355 = vmul.f32 %v297, %v346
      %v356 = vmul.f32 %v298, %v346
      %v357 = vmul.f32 %v299, %v346
      %v358 = vmul.f32 %v300, %v346
      %v359 = vmul.f32 %v301, %v346
      %v360 = vmul.f32 %v302, %v346
      %v361 = vmul.f32 %v303, %v346
      %v362 = vmul.f32 %v304, %v346
      %v363 = vmul.f32 %v305, %v346
      %v364 = vmul.f32 %v306, %v346
      %v365 = vmul.f32 %v307, %v346
      %v366 = vmul.f32 %v308, %v346
      %v367 = vmul.f32 %v309, %v346
      %v368 = vmul.f32 %v310, %v346
      %v369 = vmul.f32 %v311, %v346
      %v370 = vmul.f32 %v312, %v346
      %v371 = vmul.f32 %v313, %v346
      %v372 = vmul.f32 %v314, %v346
      %v373 = vmul.f32 %v315, %v346
      %v374 = vmul.f32 %v316, %v346
      %v375 = vmul.f32 %v317, %v346
      %v376 = vmul.f32 %v318, %v346
      %v377 = vmul.f32 %v319, %v346
      %v378 = vmul.f32 %v320, %v346
      %v379 = vmul.f32 %v321, %v346
      %v380 = vmul.f32 %v322, %v346
      %v381 = vmul.f32 %v323, %v346
      %v382 = vmul.f32 %v324, %v346
      %v383 = vmul.f32 %v325, %v346
      %v384 = vmul.f32 %v326, %v346
      %v385 = vmul.f32 %v327, %v346
      %v386 = vmul.f32 %v328, %v346
      %v387 = vmul.f32 %v329, %v346
      %v388 = vmul.f32 %v330, %v346
      %v389 = vmul.f32 %v331, %v346
      %v390 = vmul.f32 %v332, %v346
      %v391 = vmul.f32 %v333, %v346
      %v392 = vmul.f32 %v334, %v346
      %v393 = vmul.f32 %v335, %v346
      %v394 = vmul.f32 %v336, %v346
      %v395 = vmul.f32 %v337, %v346
      %v396 = vmul.f32 %v338, %v346
      %v397 = vmul.f32 %v339, %v346
      %v398 = vmul.f32 %v340, %v346
      %v399 = vmul.f32 %v341, %v346
      %v400 = vmul.f32 %v342, %v346
      %v401 = vmul.f32 %v343, %v346
      %v402 = vld [vmem:[%s2] sm:$0x1]
      %v404 = vperm.slane %v402, 0
      %v406 = vadd.f32 %v348, %v404
      %v407 = vadd.f32 %v349, %v404
      %v408 = vadd.f32 %v350, %v404
      %v409 = vadd.f32 %v351, %v404
      %v410 = vadd.f32 %v352, %v404
      %v411 = vadd.f32 %v353, %v404
      %v412 = vadd.f32 %v354, %v404
      %v413 = vadd.f32 %v355, %v404
      %v414 = vadd.f32 %v356, %v404
      %v415 = vadd.f32 %v357, %v404
      %v416 = vadd.f32 %v358, %v404
      %v417 = vadd.f32 %v359, %v404
      %v418 = vadd.f32 %v360, %v404
      %v419 = vadd.f32 %v361, %v404
      %v420 = vadd.f32 %v362, %v404
      %v421 = vadd.f32 %v363, %v404
      %v422 = vadd.f32 %v364, %v404
      %v423 = vadd.f32 %v365, %v404
      %v424 = vadd.f32 %v366, %v404
      %v425 = vadd.f32 %v367, %v404
      %v426 = vadd.f32 %v368, %v404
      %v427 = vadd.f32 %v369, %v404
      %v428 = vadd.f32 %v370, %v404
      %v429 = vadd.f32 %v371, %v404
      %v430 = vadd.f32 %v372, %v404
      %v431 = vadd.f32 %v373, %v404
      %v432 = vadd.f32 %v374, %v404
      %v433 = vadd.f32 %v375, %v404
      %v434 = vadd.f32 %v376, %v404
      %v435 = vadd.f32 %v377, %v404
      %v436 = vadd.f32 %v378, %v404
      %v437 = vadd.f32 %v379, %v404
      %v438 = vadd.f32 %v380, %v404
      %v439 = vadd.f32 %v381, %v404
      %v440 = vadd.f32 %v382, %v404
      %v441 = vadd.f32 %v383, %v404
      %v442 = vadd.f32 %v384, %v404
      %v443 = vadd.f32 %v385, %v404
      %v444 = vadd.f32 %v386, %v404
      %v445 = vadd.f32 %v387, %v404
      %v446 = vadd.f32 %v388, %v404
      %v447 = vadd.f32 %v389, %v404
      %v448 = vadd.f32 %v390, %v404
      %v449 = vadd.f32 %v391, %v404
      %v450 = vadd.f32 %v392, %v404
      %v451 = vadd.f32 %v393, %v404
      %v452 = vadd.f32 %v394, %v404
      %v453 = vadd.f32 %v395, %v404
      %v454 = vadd.f32 %v396, %v404
      %v455 = vadd.f32 %v397, %v404
      %v456 = vadd.f32 %v398, %v404
      %v457 = vadd.f32 %v399, %v404
      %v458 = vadd.f32 %v400, %v404
      %v459 = vadd.f32 %v401, %v404
      %v460 = vmax.f32 %v406, 0.0
      %v461 = vmax.f32 %v407, 0.0
      %v462 = vmax.f32 %v408, 0.0
      %v463 = vmax.f32 %v409, 0.0
      %v464 = vmax.f32 %v410, 0.0
      %v465 = vmax.f32 %v411, 0.0
      %v466 = vmax.f32 %v412, 0.0
      %v467 = vmax.f32 %v413, 0.0
      %v468 = vmax.f32 %v414, 0.0
      %v469 = vmax.f32 %v415, 0.0
      %v470 = vmax.f32 %v416, 0.0
      %v471 = vmax.f32 %v417, 0.0
      %v472 = vmax.f32 %v418, 0.0
      %v473 = vmax.f32 %v419, 0.0
      %v474 = vmax.f32 %v420, 0.0
      %v475 = vmax.f32 %v421, 0.0
      %v476 = vmax.f32 %v422, 0.0
      %v477 = vmax.f32 %v423, 0.0
      %v478 = vmax.f32 %v424, 0.0
      %v479 = vmax.f32 %v425, 0.0
      %v480 = vmax.f32 %v426, 0.0
      %v481 = vmax.f32 %v427, 0.0
      %v482 = vmax.f32 %v428, 0.0
      %v483 = vmax.f32 %v429, 0.0
      %v484 = vmax.f32 %v430, 0.0
      %v485 = vmax.f32 %v431, 0.0
      %v486 = vmax.f32 %v432, 0.0
      %v487 = vmax.f32 %v433, 0.0
      %v488 = vmax.f32 %v434, 0.0
      %v489 = vmax.f32 %v435, 0.0
      %v490 = vmax.f32 %v436, 0.0
      %v491 = vmax.f32 %v437, 0.0
      %v492 = vmax.f32 %v438, 0.0
      %v493 = vmax.f32 %v439, 0.0
      %v494 = vmax.f32 %v440, 0.0
      %v495 = vmax.f32 %v441, 0.0
      %v496 = vmax.f32 %v442, 0.0
      %v497 = vmax.f32 %v443, 0.0
      %v498 = vmax.f32 %v444, 0.0
      %v499 = vmax.f32 %v445, 0.0
      %v500 = vmax.f32 %v446, 0.0
      %v501 = vmax.f32 %v447, 0.0
      %v502 = vmax.f32 %v448, 0.0
      %v503 = vmax.f32 %v449, 0.0
      %v504 = vmax.f32 %v450, 0.0
      %v505 = vmax.f32 %v451, 0.0
      %v506 = vmax.f32 %v452, 0.0
      %v507 = vmax.f32 %v453, 0.0
      %v508 = vmax.f32 %v454, 0.0
      %v509 = vmax.f32 %v455, 0.0
      %v510 = vmax.f32 %v456, 0.0
      %v511 = vmax.f32 %v457, 0.0
      %v512 = vmax.f32 %v458, 0.0
      %v513 = vmax.f32 %v459, 0.0
      %v514 = vlaneseq
      %v515 = vshrl.u32 %v514, 7
      %v516 = vadd.s32 %v515, 8
      %v517 = vadd.s32 %v515, 16
      %vm518 = vcmp.ge.s32.totalorder %v515, 1
      %vm519 = vcmp.ge.s32.totalorder %v516, 1
      %vm520 = vcmp.ge.s32.totalorder %v517, 1
      %vm521 = vmand 0, %vm518
      %vm522 = vmand 0, %vm519
      %vm523 = vmand 0, %vm520
      %vm524 = vmand 1, %vm518
      %vm525 = vmand 1, %vm519
      %vm526 = vmand 1, %vm520
      %vm527 = vcmp.lt.s32.totalorder %v515, 17
      %vm528 = vcmp.lt.s32.totalorder %v516, 17
      %vm529 = vcmp.lt.s32.totalorder %v517, 17
      %vm530 = vmand %vm521, %vm527
      %vm531 = vmand %vm522, %vm528
      %vm532 = vmand %vm523, %vm529
      %vm533 = vmand %vm524, %vm527
      %vm534 = vmand %vm525, %vm528
      %vm535 = vmand %vm526, %vm529
      %v536 = vsel %vm530, %v460, 0.0
      %v537 = vsel %vm531, %v461, 0.0
      %v538 = vsel %vm532, %v462, 0.0
      %v539 = vsel %vm533, %v463, 0.0
      %v540 = vsel %vm534, %v464, 0.0
      %v541 = vsel %vm535, %v465, 0.0
      %v542 = vsel %vm533, %v466, 0.0
      %v543 = vsel %vm534, %v467, 0.0
      %v544 = vsel %vm535, %v468, 0.0
      %v545 = vsel %vm533, %v469, 0.0
      %v546 = vsel %vm534, %v470, 0.0
      %v547 = vsel %vm535, %v471, 0.0
      %v548 = vsel %vm533, %v472, 0.0
      %v549 = vsel %vm534, %v473, 0.0
      %v550 = vsel %vm535, %v474, 0.0
      %v551 = vsel %vm533, %v475, 0.0
      %v552 = vsel %vm534, %v476, 0.0
      %v553 = vsel %vm535, %v477, 0.0
      %v554 = vsel %vm533, %v478, 0.0
      %v555 = vsel %vm534, %v479, 0.0
      %v556 = vsel %vm535, %v480, 0.0
      %v557 = vsel %vm533, %v481, 0.0
      %v558 = vsel %vm534, %v482, 0.0
      %v559 = vsel %vm535, %v483, 0.0
      %v560 = vsel %vm533, %v484, 0.0
      %v561 = vsel %vm534, %v485, 0.0
      %v562 = vsel %vm535, %v486, 0.0
      %v563 = vsel %vm533, %v487, 0.0
      %v564 = vsel %vm534, %v488, 0.0
      %v565 = vsel %vm535, %v489, 0.0
      %v566 = vsel %vm533, %v490, 0.0
      %v567 = vsel %vm534, %v491, 0.0
      %v568 = vsel %vm535, %v492, 0.0
      %v569 = vsel %vm533, %v493, 0.0
      %v570 = vsel %vm534, %v494, 0.0
      %v571 = vsel %vm535, %v495, 0.0
      %v572 = vsel %vm533, %v496, 0.0
      %v573 = vsel %vm534, %v497, 0.0
      %v574 = vsel %vm535, %v498, 0.0
      %v575 = vsel %vm533, %v499, 0.0
      %v576 = vsel %vm534, %v500, 0.0
      %v577 = vsel %vm535, %v501, 0.0
      %v578 = vsel %vm533, %v502, 0.0
      %v579 = vsel %vm534, %v503, 0.0
      %v580 = vsel %vm535, %v504, 0.0
      %v581 = vsel %vm533, %v505, 0.0
      %v582 = vsel %vm534, %v506, 0.0
      %v583 = vsel %vm535, %v507, 0.0
      %v584 = vsel %vm533, %v508, 0.0
      %v585 = vsel %vm534, %v509, 0.0
      %v586 = vsel %vm535, %v510, 0.0
      %v587 = vsel %vm530, %v511, 0.0
      %v588 = vsel %vm531, %v512, 0.0
      %v589 = vsel %vm532, %v513, 0.0
      %v590 = vpack.c.bf16 %v537, %v536
      %v591 = vpack.c.bf16 %v540, %v539
      %v592 = vpack.c.bf16 %v543, %v542
      %v593 = vpack.c.bf16 %v546, %v545
      %v594 = vpack.c.bf16 %v549, %v548
      %v595 = vpack.c.bf16 %v552, %v551
      %v596 = vpack.c.bf16 %v555, %v554
      %v597 = vpack.c.bf16 %v558, %v557
      %v598 = vpack.c.bf16 %v561, %v560
      %v599 = vpack.c.bf16 %v564, %v563
      %v600 = vpack.c.bf16 %v567, %v566
      %v601 = vpack.c.bf16 %v570, %v569
      %v602 = vpack.c.bf16 %v573, %v572
      %v603 = vpack.c.bf16 %v576, %v575
      %v604 = vpack.c.bf16 %v579, %v578
      %v605 = vpack.c.bf16 %v582, %v581
      %v606 = vld [vmem:[%s3] sm:$0xf]
      %v607 = vld [vmem:[%s3 + $0x4] sm:$0xf]
      %v608 = vld [vmem:[%s3 + $0x8] sm:$0xf]
      %v609 = vld [vmem:[%s3 + $0xc] sm:$0xf]
      %v610 = vld [vmem:[%s3 + $0x10] sm:$0xf]
      %v611 = vld [vmem:[%s3 + $0x14] sm:$0xf]
      %v612 = vld [vmem:[%s3 + $0x18] sm:$0xf]
      %v613 = vld [vmem:[%s3 + $0x1c] sm:$0xf]
      %v614 = vld [vmem:[%s3 + $0x20] sm:$0xf]
      %v615 = vld [vmem:[%s3 + $0x24] sm:$0xf]
      %v616 = vld [vmem:[%s3 + $0x28] sm:$0xf]
      %v617 = vld [vmem:[%s3 + $0x2c] sm:$0xf]
      %v618 = vld [vmem:[%s3 + $0x30] sm:$0xf]
      %v619 = vld [vmem:[%s3 + $0x34] sm:$0xf]
      %v620 = vld [vmem:[%s3 + $0x38] sm:$0xf]
      %v621 = vld [vmem:[%s3 + $0x3c] sm:$0xf]
      %vm670 = vcmask 1046528
      %v671 = vrot.slane %v536, 1
      %v672 = vrot.slane %v537, 1
      %v673 = vsel %vm670, %v671, %v672
      %v674 = vrot.slane %v538, 1
      %v675 = vsel %vm670, %v672, %v674
      %v676 = vrot.slane %v539, 1
      %v677 = vrot.slane %v540, 1
      %v678 = vsel %vm670, %v676, %v677
      %v679 = vrot.slane %v541, 1
      %v680 = vsel %vm670, %v677, %v679
      %v681 = vrot.slane %v542, 1
      %v682 = vrot.slane %v543, 1
      %v683 = vsel %vm670, %v681, %v682
      %v684 = vrot.slane %v544, 1
      %v685 = vsel %vm670, %v682, %v684
      %v686 = vrot.slane %v545, 1
      %v687 = vrot.slane %v546, 1
      %v688 = vsel %vm670, %v686, %v687
      %v689 = vrot.slane %v547, 1
      %v690 = vsel %vm670, %v687, %v689
      %v691 = vrot.slane %v548, 1
      %v692 = vrot.slane %v549, 1
      %v693 = vsel %vm670, %v691, %v692
      %v694 = vrot.slane %v550, 1
      %v695 = vsel %vm670, %v692, %v694
      %v696 = vrot.slane %v551, 1
      %v697 = vrot.slane %v552, 1
      %v698 = vsel %vm670, %v696, %v697
      %v699 = vrot.slane %v553, 1
      %v700 = vsel %vm670, %v697, %v699
      %v701 = vrot.slane %v554, 1
      %v702 = vrot.slane %v555, 1
      %v703 = vsel %vm670, %v701, %v702
      %v704 = vrot.slane %v556, 1
      %v705 = vsel %vm670, %v702, %v704
      %v706 = vrot.slane %v557, 1
      %v707 = vrot.slane %v558, 1
      %v708 = vsel %vm670, %v706, %v707
      %v709 = vrot.slane %v559, 1
      %v710 = vsel %vm670, %v707, %v709
      %v711 = vrot.slane %v560, 1
      %v712 = vrot.slane %v561, 1
      %v713 = vsel %vm670, %v711, %v712
      %v714 = vrot.slane %v562, 1
      %v715 = vsel %vm670, %v712, %v714
      %v716 = vrot.slane %v563, 1
      %v717 = vrot.slane %v564, 1
      %v718 = vsel %vm670, %v716, %v717
      %v719 = vrot.slane %v565, 1
      %v720 = vsel %vm670, %v717, %v719
      %v721 = vrot.slane %v566, 1
      %v722 = vrot.slane %v567, 1
      %v723 = vsel %vm670, %v721, %v722
      %v724 = vrot.slane %v568, 1
      %v725 = vsel %vm670, %v722, %v724
      %v726 = vrot.slane %v569, 1
      %v727 = vrot.slane %v570, 1
      %v728 = vsel %vm670, %v726, %v727
      %v729 = vrot.slane %v571, 1
      %v730 = vsel %vm670, %v727, %v729
      %v731 = vrot.slane %v572, 1
      %v732 = vrot.slane %v573, 1
      %v733 = vsel %vm670, %v731, %v732
      %v734 = vrot.slane %v574, 1
      %v735 = vsel %vm670, %v732, %v734
      %v736 = vrot.slane %v575, 1
      %v737 = vrot.slane %v576, 1
      %v738 = vsel %vm670, %v736, %v737
      %v739 = vrot.slane %v577, 1
      %v740 = vsel %vm670, %v737, %v739
      %v741 = vrot.slane %v578, 1
      %v742 = vrot.slane %v579, 1
      %v743 = vsel %vm670, %v741, %v742
      %v744 = vrot.slane %v580, 1
      %v745 = vsel %vm670, %v742, %v744
      %v746 = vrot.slane %v581, 1
      %v747 = vrot.slane %v582, 1
      %v748 = vsel %vm670, %v746, %v747
      %v749 = vrot.slane %v583, 1
      %v750 = vsel %vm670, %v747, %v749
      %v783 = vpack.c.bf16 %v675, %v673
      %v784 = vpack.c.bf16 %v680, %v678
      %v785 = vpack.c.bf16 %v685, %v683
      %v786 = vpack.c.bf16 %v690, %v688
      %v787 = vpack.c.bf16 %v695, %v693
      %v788 = vpack.c.bf16 %v700, %v698
      %v789 = vpack.c.bf16 %v705, %v703
      %v790 = vpack.c.bf16 %v710, %v708
      %v791 = vpack.c.bf16 %v715, %v713
      %v792 = vpack.c.bf16 %v720, %v718
      %v793 = vpack.c.bf16 %v725, %v723
      %v794 = vpack.c.bf16 %v730, %v728
      %v795 = vpack.c.bf16 %v735, %v733
      %v796 = vpack.c.bf16 %v740, %v738
      %v797 = vpack.c.bf16 %v745, %v743
      %v798 = vpack.c.bf16 %v750, %v748
      %s799 = scalar_lea.vmem %s3, 64
      %v800 = vld [vmem:[%s799] sm:$0xf]
      %v801 = vld [vmem:[%s799 + $0x4] sm:$0xf]
      %v802 = vld [vmem:[%s799 + $0x8] sm:$0xf]
      %v803 = vld [vmem:[%s799 + $0xc] sm:$0xf]
      %v804 = vld [vmem:[%s799 + $0x10] sm:$0xf]
      %v805 = vld [vmem:[%s799 + $0x14] sm:$0xf]
      %v806 = vld [vmem:[%s799 + $0x18] sm:$0xf]
      %v807 = vld [vmem:[%s799 + $0x1c] sm:$0xf]
      %v808 = vld [vmem:[%s799 + $0x20] sm:$0xf]
      %v809 = vld [vmem:[%s799 + $0x24] sm:$0xf]
      %v810 = vld [vmem:[%s799 + $0x28] sm:$0xf]
      %v811 = vld [vmem:[%s799 + $0x2c] sm:$0xf]
      %v812 = vld [vmem:[%s799 + $0x30] sm:$0xf]
      %v813 = vld [vmem:[%s799 + $0x34] sm:$0xf]
      %v814 = vld [vmem:[%s799 + $0x38] sm:$0xf]
      %v815 = vld [vmem:[%s799 + $0x3c] sm:$0xf]
      %v832 = vunpack.c.l.b16 %v800
      %v833 = vunpack.c.l.b16 %v801
      %v834 = vunpack.c.l.b16 %v802
      %v835 = vunpack.c.l.b16 %v803
      %v836 = vunpack.c.l.b16 %v804
      %v837 = vunpack.c.l.b16 %v805
      %v838 = vunpack.c.l.b16 %v806
      %v839 = vunpack.c.l.b16 %v807
      %v840 = vunpack.c.l.b16 %v808
      %v841 = vunpack.c.l.b16 %v809
      %v842 = vunpack.c.l.b16 %v810
      %v843 = vunpack.c.l.b16 %v811
      %v844 = vunpack.c.l.b16 %v812
      %v845 = vunpack.c.l.b16 %v813
      %v846 = vunpack.c.l.b16 %v814
      %v847 = vunpack.c.l.b16 %v815
      %v848 = vpack.c.b16 %v833, %v832
      %v849 = vpack.c.b16 %v835, %v834
      %v850 = vpack.c.b16 %v837, %v836
      %v851 = vpack.c.b16 %v839, %v838
      %v852 = vpack.c.b16 %v841, %v840
      %v853 = vpack.c.b16 %v843, %v842
      %v854 = vpack.c.b16 %v845, %v844
      %v855 = vpack.c.b16 %v847, %v846
      %864 = vmatpush.bf16.msra.mxu0 %v855
      %865 = vmatpush.bf16.msra.mxu0 %v854
      %866 = vmatpush.bf16.msra.mxu0 %v853
      %867 = vmatpush.bf16.msra.mxu0 %v852
      %868 = vmatpush.bf16.msra.mxu0 %v851
      %869 = vmatpush.bf16.msra.mxu0 %v850
      %870 = vmatpush.bf16.msra.mxu0 %v849
      %871 = vmatpush.bf16.msra.mxu0 %v848
      %872 = vmatmul.bf16.gmra.mxu0 %v783
      %v873 = vpop.f32.mrf.mxu0
      %v874 = vadd.f32 0.0, %v873
      %v875 = vpop.f32.mrf.mxu0
      %v876 = vadd.f32 0.0, %v875
      %877 = vmatmul.bf16.gmra.mxu0 %v784
      %v878 = vpop.f32.mrf.mxu0
      %v879 = vadd.f32 0.0, %v878
      %v880 = vpop.f32.mrf.mxu0
      %v881 = vadd.f32 0.0, %v880
      %882 = vmatmul.bf16.gmra.mxu0 %v785
      %v883 = vpop.f32.mrf.mxu0
      %v884 = vadd.f32 0.0, %v883
      %v885 = vpop.f32.mrf.mxu0
      %v886 = vadd.f32 0.0, %v885
      %887 = vmatmul.bf16.gmra.mxu0 %v786
      %v888 = vpop.f32.mrf.mxu0
      %v889 = vadd.f32 0.0, %v888
      %v890 = vpop.f32.mrf.mxu0
      %v891 = vadd.f32 0.0, %v890
      %892 = vmatmul.bf16.gmra.mxu0 %v787
      %v893 = vpop.f32.mrf.mxu0
      %v894 = vadd.f32 0.0, %v893
      %v895 = vpop.f32.mrf.mxu0
      %v896 = vadd.f32 0.0, %v895
      %897 = vmatmul.bf16.gmra.mxu0 %v788
      %v898 = vpop.f32.mrf.mxu0
      %v899 = vadd.f32 0.0, %v898
      %v900 = vpop.f32.mrf.mxu0
      %v901 = vadd.f32 0.0, %v900
      %902 = vmatmul.bf16.gmra.mxu0 %v789
      %v903 = vpop.f32.mrf.mxu0
      %v904 = vadd.f32 0.0, %v903
      %v905 = vpop.f32.mrf.mxu0
      %v906 = vadd.f32 0.0, %v905
      %907 = vmatmul.bf16.gmra.mxu0 %v790
      %v908 = vpop.f32.mrf.mxu0
      %v909 = vadd.f32 0.0, %v908
      %v910 = vpop.f32.mrf.mxu0
      %v911 = vadd.f32 0.0, %v910
      %912 = vmatmul.bf16.gmra.mxu0 %v791
      %v913 = vpop.f32.mrf.mxu0
      %v914 = vadd.f32 0.0, %v913
      %v915 = vpop.f32.mrf.mxu0
      %v916 = vadd.f32 0.0, %v915
      %917 = vmatmul.bf16.gmra.mxu0 %v792
      %v918 = vpop.f32.mrf.mxu0
      %v919 = vadd.f32 0.0, %v918
      %v920 = vpop.f32.mrf.mxu0
      %v921 = vadd.f32 0.0, %v920
      %922 = vmatmul.bf16.gmra.mxu0 %v793
      %v923 = vpop.f32.mrf.mxu0
      %v924 = vadd.f32 0.0, %v923
      %v925 = vpop.f32.mrf.mxu0
      %v926 = vadd.f32 0.0, %v925
      %927 = vmatmul.bf16.gmra.mxu0 %v794
      %v928 = vpop.f32.mrf.mxu0
      %v929 = vadd.f32 0.0, %v928
      %v930 = vpop.f32.mrf.mxu0
      %v931 = vadd.f32 0.0, %v930
      %932 = vmatmul.bf16.gmra.mxu0 %v795
      %v933 = vpop.f32.mrf.mxu0
      %v934 = vadd.f32 0.0, %v933
      %v935 = vpop.f32.mrf.mxu0
      %v936 = vadd.f32 0.0, %v935
      %937 = vmatmul.bf16.gmra.mxu0 %v796
      %v938 = vpop.f32.mrf.mxu0
      %v939 = vadd.f32 0.0, %v938
      %v940 = vpop.f32.mrf.mxu0
      %v941 = vadd.f32 0.0, %v940
      %942 = vmatmul.bf16.gmra.mxu0 %v797
      %v943 = vpop.f32.mrf.mxu0
      %v944 = vadd.f32 0.0, %v943
      %v945 = vpop.f32.mrf.mxu0
      %v946 = vadd.f32 0.0, %v945
      %947 = vmatmul.bf16.gmra.mxu0 %v798
      %v948 = vpop.f32.mrf.mxu0
      %v949 = vadd.f32 0.0, %v948
      %v950 = vpop.f32.mrf.mxu0
      %v951 = vadd.f32 0.0, %v950
      %952 = vdwg.mxu0
      %v969 = vunpack.c.l.b16 %v606
      %v970 = vunpack.c.l.b16 %v607
      %v971 = vunpack.c.l.b16 %v608
      %v972 = vunpack.c.l.b16 %v609
      %v973 = vunpack.c.l.b16 %v610
      %v974 = vunpack.c.l.b16 %v611
      %v975 = vunpack.c.l.b16 %v612
      %v976 = vunpack.c.l.b16 %v613
      %v977 = vunpack.c.l.b16 %v614
      %v978 = vunpack.c.l.b16 %v615
      %v979 = vunpack.c.l.b16 %v616
      %v980 = vunpack.c.l.b16 %v617
      %v981 = vunpack.c.l.b16 %v618
      %v982 = vunpack.c.l.b16 %v619
      %v983 = vunpack.c.l.b16 %v620
      %v984 = vunpack.c.l.b16 %v621
      %v985 = vpack.c.b16 %v970, %v969
      %v986 = vpack.c.b16 %v972, %v971
      %v987 = vpack.c.b16 %v974, %v973
      %v988 = vpack.c.b16 %v976, %v975
      %v989 = vpack.c.b16 %v978, %v977
      %v990 = vpack.c.b16 %v980, %v979
      %v991 = vpack.c.b16 %v982, %v981
      %v992 = vpack.c.b16 %v984, %v983
      %1001 = vmatpush.bf16.msra.mxu0 %v992
      %1002 = vmatpush.bf16.msra.mxu0 %v991
      %1003 = vmatpush.bf16.msra.mxu0 %v990
      %1004 = vmatpush.bf16.msra.mxu0 %v989
      %1005 = vmatpush.bf16.msra.mxu0 %v988
      %1006 = vmatpush.bf16.msra.mxu0 %v987
      %1007 = vmatpush.bf16.msra.mxu0 %v986
      %1008 = vmatpush.bf16.msra.mxu0 %v985
      %1009 = vmatmul.bf16.gmra.mxu0 %v590
      %v1010 = vpop.f32.mrf.mxu0
      %v1011 = vadd.f32 %v874, %v1010
      %v1012 = vpop.f32.mrf.mxu0
      %v1013 = vadd.f32 %v876, %v1012
      %1014 = vmatmul.bf16.gmra.mxu0 %v591
      %v1015 = vpop.f32.mrf.mxu0
      %v1016 = vadd.f32 %v879, %v1015
      %v1017 = vpop.f32.mrf.mxu0
      %v1018 = vadd.f32 %v881, %v1017
      %1019 = vmatmul.bf16.gmra.mxu0 %v592
      %v1020 = vpop.f32.mrf.mxu0
      %v1021 = vadd.f32 %v884, %v1020
      %v1022 = vpop.f32.mrf.mxu0
      %v1023 = vadd.f32 %v886, %v1022
      %1024 = vmatmul.bf16.gmra.mxu0 %v593
      %v1025 = vpop.f32.mrf.mxu0
      %v1026 = vadd.f32 %v889, %v1025
      %v1027 = vpop.f32.mrf.mxu0
      %v1028 = vadd.f32 %v891, %v1027
      %1029 = vmatmul.bf16.gmra.mxu0 %v594
      %v1030 = vpop.f32.mrf.mxu0
      %v1031 = vadd.f32 %v894, %v1030
      %v1032 = vpop.f32.mrf.mxu0
      %v1033 = vadd.f32 %v896, %v1032
      %1034 = vmatmul.bf16.gmra.mxu0 %v595
      %v1035 = vpop.f32.mrf.mxu0
      %v1036 = vadd.f32 %v899, %v1035
      %v1037 = vpop.f32.mrf.mxu0
      %v1038 = vadd.f32 %v901, %v1037
      %1039 = vmatmul.bf16.gmra.mxu0 %v596
      %v1040 = vpop.f32.mrf.mxu0
      %v1041 = vadd.f32 %v904, %v1040
      %v1042 = vpop.f32.mrf.mxu0
      %v1043 = vadd.f32 %v906, %v1042
      %1044 = vmatmul.bf16.gmra.mxu0 %v597
      %v1045 = vpop.f32.mrf.mxu0
      %v1046 = vadd.f32 %v909, %v1045
      %v1047 = vpop.f32.mrf.mxu0
      %v1048 = vadd.f32 %v911, %v1047
      %1049 = vmatmul.bf16.gmra.mxu0 %v598
      %v1050 = vpop.f32.mrf.mxu0
      %v1051 = vadd.f32 %v914, %v1050
      %v1052 = vpop.f32.mrf.mxu0
      %v1053 = vadd.f32 %v916, %v1052
      %1054 = vmatmul.bf16.gmra.mxu0 %v599
      %v1055 = vpop.f32.mrf.mxu0
      %v1056 = vadd.f32 %v919, %v1055
      %v1057 = vpop.f32.mrf.mxu0
      %v1058 = vadd.f32 %v921, %v1057
      %1059 = vmatmul.bf16.gmra.mxu0 %v600
      %v1060 = vpop.f32.mrf.mxu0
      %v1061 = vadd.f32 %v924, %v1060
      %v1062 = vpop.f32.mrf.mxu0
      %v1063 = vadd.f32 %v926, %v1062
      %1064 = vmatmul.bf16.gmra.mxu0 %v601
      %v1065 = vpop.f32.mrf.mxu0
      %v1066 = vadd.f32 %v929, %v1065
      %v1067 = vpop.f32.mrf.mxu0
      %v1068 = vadd.f32 %v931, %v1067
      %1069 = vmatmul.bf16.gmra.mxu0 %v602
      %v1070 = vpop.f32.mrf.mxu0
      %v1071 = vadd.f32 %v934, %v1070
      %v1072 = vpop.f32.mrf.mxu0
      %v1073 = vadd.f32 %v936, %v1072
      %1074 = vmatmul.bf16.gmra.mxu0 %v603
      %v1075 = vpop.f32.mrf.mxu0
      %v1076 = vadd.f32 %v939, %v1075
      %v1077 = vpop.f32.mrf.mxu0
      %v1078 = vadd.f32 %v941, %v1077
      %1079 = vmatmul.bf16.gmra.mxu0 %v604
      %v1080 = vpop.f32.mrf.mxu0
      %v1081 = vadd.f32 %v944, %v1080
      %v1082 = vpop.f32.mrf.mxu0
      %v1083 = vadd.f32 %v946, %v1082
      %1084 = vmatmul.bf16.gmra.mxu0 %v605
      %v1085 = vpop.f32.mrf.mxu0
      %v1086 = vadd.f32 %v949, %v1085
      %v1087 = vpop.f32.mrf.mxu0
      %v1088 = vadd.f32 %v951, %v1087
      %1089 = vdwg.mxu0
      %vm1090 = vcmask 1045504
      %v1091 = vrot.slane %v536, 2
      %v1092 = vrot.slane %v537, 2
      %v1093 = vsel %vm1090, %v1091, %v1092
      %v1094 = vrot.slane %v538, 2
      %v1095 = vsel %vm1090, %v1092, %v1094
      %v1096 = vrot.slane %v539, 2
      %v1097 = vrot.slane %v540, 2
      %v1098 = vsel %vm1090, %v1096, %v1097
      %v1099 = vrot.slane %v541, 2
      %v1100 = vsel %vm1090, %v1097, %v1099
      %v1101 = vrot.slane %v542, 2
      %v1102 = vrot.slane %v543, 2
      %v1103 = vsel %vm1090, %v1101, %v1102
      %v1104 = vrot.slane %v544, 2
      %v1105 = vsel %vm1090, %v1102, %v1104
      %v1106 = vrot.slane %v545, 2
      %v1107 = vrot.slane %v546, 2
      %v1108 = vsel %vm1090, %v1106, %v1107
      %v1109 = vrot.slane %v547, 2
      %v1110 = vsel %vm1090, %v1107, %v1109
      %v1111 = vrot.slane %v548, 2
      %v1112 = vrot.slane %v549, 2
      %v1113 = vsel %vm1090, %v1111, %v1112
      %v1114 = vrot.slane %v550, 2
      %v1115 = vsel %vm1090, %v1112, %v1114
      %v1116 = vrot.slane %v551, 2
      %v1117 = vrot.slane %v552, 2
      %v1118 = vsel %vm1090, %v1116, %v1117
      %v1119 = vrot.slane %v553, 2
      %v1120 = vsel %vm1090, %v1117, %v1119
      %v1121 = vrot.slane %v554, 2
      %v1122 = vrot.slane %v555, 2
      %v1123 = vsel %vm1090, %v1121, %v1122
      %v1124 = vrot.slane %v556, 2
      %v1125 = vsel %vm1090, %v1122, %v1124
      %v1126 = vrot.slane %v557, 2
      %v1127 = vrot.slane %v558, 2
      %v1128 = vsel %vm1090, %v1126, %v1127
      %v1129 = vrot.slane %v559, 2
      %v1130 = vsel %vm1090, %v1127, %v1129
      %v1131 = vrot.slane %v560, 2
      %v1132 = vrot.slane %v561, 2
      %v1133 = vsel %vm1090, %v1131, %v1132
      %v1134 = vrot.slane %v562, 2
      %v1135 = vsel %vm1090, %v1132, %v1134
      %v1136 = vrot.slane %v563, 2
      %v1137 = vrot.slane %v564, 2
      %v1138 = vsel %vm1090, %v1136, %v1137
      %v1139 = vrot.slane %v565, 2
      %v1140 = vsel %vm1090, %v1137, %v1139
      %v1141 = vrot.slane %v566, 2
      %v1142 = vrot.slane %v567, 2
      %v1143 = vsel %vm1090, %v1141, %v1142
      %v1144 = vrot.slane %v568, 2
      %v1145 = vsel %vm1090, %v1142, %v1144
      %v1146 = vrot.slane %v569, 2
      %v1147 = vrot.slane %v570, 2
      %v1148 = vsel %vm1090, %v1146, %v1147
      %v1149 = vrot.slane %v571, 2
      %v1150 = vsel %vm1090, %v1147, %v1149
      %v1151 = vrot.slane %v572, 2
      %v1152 = vrot.slane %v573, 2
      %v1153 = vsel %vm1090, %v1151, %v1152
      %v1154 = vrot.slane %v574, 2
      %v1155 = vsel %vm1090, %v1152, %v1154
      %v1156 = vrot.slane %v575, 2
      %v1157 = vrot.slane %v576, 2
      %v1158 = vsel %vm1090, %v1156, %v1157
      %v1159 = vrot.slane %v577, 2
      %v1160 = vsel %vm1090, %v1157, %v1159
      %v1161 = vrot.slane %v578, 2
      %v1162 = vrot.slane %v579, 2
      %v1163 = vsel %vm1090, %v1161, %v1162
      %v1164 = vrot.slane %v580, 2
      %v1165 = vsel %vm1090, %v1162, %v1164
      %v1166 = vrot.slane %v581, 2
      %v1167 = vrot.slane %v582, 2
      %v1168 = vsel %vm1090, %v1166, %v1167
      %v1169 = vrot.slane %v583, 2
      %v1170 = vsel %vm1090, %v1167, %v1169
      %v1203 = vpack.c.bf16 %v1095, %v1093
      %v1204 = vpack.c.bf16 %v1100, %v1098
      %v1205 = vpack.c.bf16 %v1105, %v1103
      %v1206 = vpack.c.bf16 %v1110, %v1108
      %v1207 = vpack.c.bf16 %v1115, %v1113
      %v1208 = vpack.c.bf16 %v1120, %v1118
      %v1209 = vpack.c.bf16 %v1125, %v1123
      %v1210 = vpack.c.bf16 %v1130, %v1128
      %v1211 = vpack.c.bf16 %v1135, %v1133
      %v1212 = vpack.c.bf16 %v1140, %v1138
      %v1213 = vpack.c.bf16 %v1145, %v1143
      %v1214 = vpack.c.bf16 %v1150, %v1148
      %v1215 = vpack.c.bf16 %v1155, %v1153
      %v1216 = vpack.c.bf16 %v1160, %v1158
      %v1217 = vpack.c.bf16 %v1165, %v1163
      %v1218 = vpack.c.bf16 %v1170, %v1168
      %s1219 = scalar_lea.vmem %s3, 128
      %v1220 = vld [vmem:[%s1219] sm:$0xf]
      %v1221 = vld [vmem:[%s1219 + $0x4] sm:$0xf]
      %v1222 = vld [vmem:[%s1219 + $0x8] sm:$0xf]
      %v1223 = vld [vmem:[%s1219 + $0xc] sm:$0xf]
      %v1224 = vld [vmem:[%s1219 + $0x10] sm:$0xf]
      %v1225 = vld [vmem:[%s1219 + $0x14] sm:$0xf]
      %v1226 = vld [vmem:[%s1219 + $0x18] sm:$0xf]
      %v1227 = vld [vmem:[%s1219 + $0x1c] sm:$0xf]
      %v1228 = vld [vmem:[%s1219 + $0x20] sm:$0xf]
      %v1229 = vld [vmem:[%s1219 + $0x24] sm:$0xf]
      %v1230 = vld [vmem:[%s1219 + $0x28] sm:$0xf]
      %v1231 = vld [vmem:[%s1219 + $0x2c] sm:$0xf]
      %v1232 = vld [vmem:[%s1219 + $0x30] sm:$0xf]
      %v1233 = vld [vmem:[%s1219 + $0x34] sm:$0xf]
      %v1234 = vld [vmem:[%s1219 + $0x38] sm:$0xf]
      %v1235 = vld [vmem:[%s1219 + $0x3c] sm:$0xf]
      %v1252 = vunpack.c.l.b16 %v1220
      %v1253 = vunpack.c.l.b16 %v1221
      %v1254 = vunpack.c.l.b16 %v1222
      %v1255 = vunpack.c.l.b16 %v1223
      %v1256 = vunpack.c.l.b16 %v1224
      %v1257 = vunpack.c.l.b16 %v1225
      %v1258 = vunpack.c.l.b16 %v1226
      %v1259 = vunpack.c.l.b16 %v1227
      %v1260 = vunpack.c.l.b16 %v1228
      %v1261 = vunpack.c.l.b16 %v1229
      %v1262 = vunpack.c.l.b16 %v1230
      %v1263 = vunpack.c.l.b16 %v1231
      %v1264 = vunpack.c.l.b16 %v1232
      %v1265 = vunpack.c.l.b16 %v1233
      %v1266 = vunpack.c.l.b16 %v1234
      %v1267 = vunpack.c.l.b16 %v1235
      %v1268 = vpack.c.b16 %v1253, %v1252
      %v1269 = vpack.c.b16 %v1255, %v1254
      %v1270 = vpack.c.b16 %v1257, %v1256
      %v1271 = vpack.c.b16 %v1259, %v1258
      %v1272 = vpack.c.b16 %v1261, %v1260
      %v1273 = vpack.c.b16 %v1263, %v1262
      %v1274 = vpack.c.b16 %v1265, %v1264
      %v1275 = vpack.c.b16 %v1267, %v1266
      %1284 = vmatpush.bf16.msra.mxu0 %v1275
      %1285 = vmatpush.bf16.msra.mxu0 %v1274
      %1286 = vmatpush.bf16.msra.mxu0 %v1273
      %1287 = vmatpush.bf16.msra.mxu0 %v1272
      %1288 = vmatpush.bf16.msra.mxu0 %v1271
      %1289 = vmatpush.bf16.msra.mxu0 %v1270
      %1290 = vmatpush.bf16.msra.mxu0 %v1269
      %1291 = vmatpush.bf16.msra.mxu0 %v1268
      %1292 = vmatmul.bf16.gmra.mxu0 %v1203
      %v1293 = vpop.f32.mrf.mxu0
      %v1294 = vadd.f32 0.0, %v1293
      %v1295 = vpop.f32.mrf.mxu0
      %v1296 = vadd.f32 0.0, %v1295
      %1297 = vmatmul.bf16.gmra.mxu0 %v1204
      %v1298 = vpop.f32.mrf.mxu0
      %v1299 = vadd.f32 0.0, %v1298
      %v1300 = vpop.f32.mrf.mxu0
      %v1301 = vadd.f32 0.0, %v1300
      %1302 = vmatmul.bf16.gmra.mxu0 %v1205
      %v1303 = vpop.f32.mrf.mxu0
      %v1304 = vadd.f32 0.0, %v1303
      %v1305 = vpop.f32.mrf.mxu0
      %v1306 = vadd.f32 0.0, %v1305
      %1307 = vmatmul.bf16.gmra.mxu0 %v1206
      %v1308 = vpop.f32.mrf.mxu0
      %v1309 = vadd.f32 0.0, %v1308
      %v1310 = vpop.f32.mrf.mxu0
      %v1311 = vadd.f32 0.0, %v1310
      %1312 = vmatmul.bf16.gmra.mxu0 %v1207
      %v1313 = vpop.f32.mrf.mxu0
      %v1314 = vadd.f32 0.0, %v1313
      %v1315 = vpop.f32.mrf.mxu0
      %v1316 = vadd.f32 0.0, %v1315
      %1317 = vmatmul.bf16.gmra.mxu0 %v1208
      %v1318 = vpop.f32.mrf.mxu0
      %v1319 = vadd.f32 0.0, %v1318
      %v1320 = vpop.f32.mrf.mxu0
      %v1321 = vadd.f32 0.0, %v1320
      %1322 = vmatmul.bf16.gmra.mxu0 %v1209
      %v1323 = vpop.f32.mrf.mxu0
      %v1324 = vadd.f32 0.0, %v1323
      %v1325 = vpop.f32.mrf.mxu0
      %v1326 = vadd.f32 0.0, %v1325
      %1327 = vmatmul.bf16.gmra.mxu0 %v1210
      %v1328 = vpop.f32.mrf.mxu0
      %v1329 = vadd.f32 0.0, %v1328
      %v1330 = vpop.f32.mrf.mxu0
      %v1331 = vadd.f32 0.0, %v1330
      %1332 = vmatmul.bf16.gmra.mxu0 %v1211
      %v1333 = vpop.f32.mrf.mxu0
      %v1334 = vadd.f32 0.0, %v1333
      %v1335 = vpop.f32.mrf.mxu0
      %v1336 = vadd.f32 0.0, %v1335
      %1337 = vmatmul.bf16.gmra.mxu0 %v1212
      %v1338 = vpop.f32.mrf.mxu0
      %v1339 = vadd.f32 0.0, %v1338
      %v1340 = vpop.f32.mrf.mxu0
      %v1341 = vadd.f32 0.0, %v1340
      %1342 = vmatmul.bf16.gmra.mxu0 %v1213
      %v1343 = vpop.f32.mrf.mxu0
      %v1344 = vadd.f32 0.0, %v1343
      %v1345 = vpop.f32.mrf.mxu0
      %v1346 = vadd.f32 0.0, %v1345
      %1347 = vmatmul.bf16.gmra.mxu0 %v1214
      %v1348 = vpop.f32.mrf.mxu0
      %v1349 = vadd.f32 0.0, %v1348
      %v1350 = vpop.f32.mrf.mxu0
      %v1351 = vadd.f32 0.0, %v1350
      %1352 = vmatmul.bf16.gmra.mxu0 %v1215
      %v1353 = vpop.f32.mrf.mxu0
      %v1354 = vadd.f32 0.0, %v1353
      %v1355 = vpop.f32.mrf.mxu0
      %v1356 = vadd.f32 0.0, %v1355
      %1357 = vmatmul.bf16.gmra.mxu0 %v1216
      %v1358 = vpop.f32.mrf.mxu0
      %v1359 = vadd.f32 0.0, %v1358
      %v1360 = vpop.f32.mrf.mxu0
      %v1361 = vadd.f32 0.0, %v1360
      %1362 = vmatmul.bf16.gmra.mxu0 %v1217
      %v1363 = vpop.f32.mrf.mxu0
      %v1364 = vadd.f32 0.0, %v1363
      %v1365 = vpop.f32.mrf.mxu0
      %v1366 = vadd.f32 0.0, %v1365
      %1367 = vmatmul.bf16.gmra.mxu0 %v1218
      %v1368 = vpop.f32.mrf.mxu0
      %v1369 = vadd.f32 0.0, %v1368
      %v1370 = vpop.f32.mrf.mxu0
      %v1371 = vadd.f32 0.0, %v1370
      %1372 = vdwg.mxu0
      %v1373 = vadd.f32 %v1011, %v1294
      %v1374 = vadd.f32 %v1013, %v1296
      %v1375 = vadd.f32 %v1016, %v1299
      %v1376 = vadd.f32 %v1018, %v1301
      %v1377 = vadd.f32 %v1021, %v1304
      %v1378 = vadd.f32 %v1023, %v1306
      %v1379 = vadd.f32 %v1026, %v1309
      %v1380 = vadd.f32 %v1028, %v1311
      %v1381 = vadd.f32 %v1031, %v1314
      %v1382 = vadd.f32 %v1033, %v1316
      %v1383 = vadd.f32 %v1036, %v1319
      %v1384 = vadd.f32 %v1038, %v1321
      %v1385 = vadd.f32 %v1041, %v1324
      %v1386 = vadd.f32 %v1043, %v1326
      %v1387 = vadd.f32 %v1046, %v1329
      %v1388 = vadd.f32 %v1048, %v1331
      %v1389 = vadd.f32 %v1051, %v1334
      %v1390 = vadd.f32 %v1053, %v1336
      %v1391 = vadd.f32 %v1056, %v1339
      %v1392 = vadd.f32 %v1058, %v1341
      %v1393 = vadd.f32 %v1061, %v1344
      %v1394 = vadd.f32 %v1063, %v1346
      %v1395 = vadd.f32 %v1066, %v1349
      %v1396 = vadd.f32 %v1068, %v1351
      %v1397 = vadd.f32 %v1071, %v1354
      %v1398 = vadd.f32 %v1073, %v1356
      %v1399 = vadd.f32 %v1076, %v1359
      %v1400 = vadd.f32 %v1078, %v1361
      %v1401 = vadd.f32 %v1081, %v1364
      %v1402 = vadd.f32 %v1083, %v1366
      %v1403 = vadd.f32 %v1086, %v1369
      %v1404 = vadd.f32 %v1088, %v1371
      %v1405 = vpack.c.bf16 %v585, %v584
      %s1406 = scalar_lea.vmem %s3, 192
      %v1407 = vld [vmem:[%s1406] sm:$0xf]
      %v1408 = vld [vmem:[%s1406 + $0x4] sm:$0xf]
      %v1409 = vld [vmem:[%s1406 + $0x8] sm:$0xf]
      %v1410 = vld [vmem:[%s1406 + $0xc] sm:$0xf]
      %v1411 = vld [vmem:[%s1406 + $0x10] sm:$0xf]
      %v1412 = vld [vmem:[%s1406 + $0x14] sm:$0xf]
      %v1413 = vld [vmem:[%s1406 + $0x18] sm:$0xf]
      %v1414 = vld [vmem:[%s1406 + $0x1c] sm:$0xf]
      %v1415 = vld [vmem:[%s1406 + $0x20] sm:$0xf]
      %v1416 = vld [vmem:[%s1406 + $0x24] sm:$0xf]
      %v1417 = vld [vmem:[%s1406 + $0x28] sm:$0xf]
      %v1418 = vld [vmem:[%s1406 + $0x2c] sm:$0xf]
      %v1419 = vld [vmem:[%s1406 + $0x30] sm:$0xf]
      %v1420 = vld [vmem:[%s1406 + $0x34] sm:$0xf]
      %v1421 = vld [vmem:[%s1406 + $0x38] sm:$0xf]
      %v1422 = vld [vmem:[%s1406 + $0x3c] sm:$0xf]
      %v1439 = vunpack.c.l.b16 %v1407
      %v1440 = vunpack.c.l.b16 %v1408
      %v1441 = vunpack.c.l.b16 %v1409
      %v1442 = vunpack.c.l.b16 %v1410
      %v1443 = vunpack.c.l.b16 %v1411
      %v1444 = vunpack.c.l.b16 %v1412
      %v1445 = vunpack.c.l.b16 %v1413
      %v1446 = vunpack.c.l.b16 %v1414
      %v1447 = vunpack.c.l.b16 %v1415
      %v1448 = vunpack.c.l.b16 %v1416
      %v1449 = vunpack.c.l.b16 %v1417
      %v1450 = vunpack.c.l.b16 %v1418
      %v1451 = vunpack.c.l.b16 %v1419
      %v1452 = vunpack.c.l.b16 %v1420
      %v1453 = vunpack.c.l.b16 %v1421
      %v1454 = vunpack.c.l.b16 %v1422
      %v1455 = vpack.c.b16 %v1440, %v1439
      %v1456 = vpack.c.b16 %v1442, %v1441
      %v1457 = vpack.c.b16 %v1444, %v1443
      %v1458 = vpack.c.b16 %v1446, %v1445
      %v1459 = vpack.c.b16 %v1448, %v1447
      %v1460 = vpack.c.b16 %v1450, %v1449
      %v1461 = vpack.c.b16 %v1452, %v1451
      %v1462 = vpack.c.b16 %v1454, %v1453
      %1471 = vmatpush.bf16.msra.mxu0 %v1462
      %1472 = vmatpush.bf16.msra.mxu0 %v1461
      %1473 = vmatpush.bf16.msra.mxu0 %v1460
      %1474 = vmatpush.bf16.msra.mxu0 %v1459
      %1475 = vmatpush.bf16.msra.mxu0 %v1458
      %1476 = vmatpush.bf16.msra.mxu0 %v1457
      %1477 = vmatpush.bf16.msra.mxu0 %v1456
      %1478 = vmatpush.bf16.msra.mxu0 %v1455
      %1479 = vmatmul.bf16.gmra.mxu0 %v591
      %v1480 = vpop.f32.mrf.mxu0
      %v1481 = vadd.f32 0.0, %v1480
      %v1482 = vpop.f32.mrf.mxu0
      %v1483 = vadd.f32 0.0, %v1482
      %1484 = vmatmul.bf16.gmra.mxu0 %v592
      %v1485 = vpop.f32.mrf.mxu0
      %v1486 = vadd.f32 0.0, %v1485
      %v1487 = vpop.f32.mrf.mxu0
      %v1488 = vadd.f32 0.0, %v1487
      %1489 = vmatmul.bf16.gmra.mxu0 %v593
      %v1490 = vpop.f32.mrf.mxu0
      %v1491 = vadd.f32 0.0, %v1490
      %v1492 = vpop.f32.mrf.mxu0
      %v1493 = vadd.f32 0.0, %v1492
      %1494 = vmatmul.bf16.gmra.mxu0 %v594
      %v1495 = vpop.f32.mrf.mxu0
      %v1496 = vadd.f32 0.0, %v1495
      %v1497 = vpop.f32.mrf.mxu0
      %v1498 = vadd.f32 0.0, %v1497
      %1499 = vmatmul.bf16.gmra.mxu0 %v595
      %v1500 = vpop.f32.mrf.mxu0
      %v1501 = vadd.f32 0.0, %v1500
      %v1502 = vpop.f32.mrf.mxu0
      %v1503 = vadd.f32 0.0, %v1502
      %1504 = vmatmul.bf16.gmra.mxu0 %v596
      %v1505 = vpop.f32.mrf.mxu0
      %v1506 = vadd.f32 0.0, %v1505
      %v1507 = vpop.f32.mrf.mxu0
      %v1508 = vadd.f32 0.0, %v1507
      %1509 = vmatmul.bf16.gmra.mxu0 %v597
      %v1510 = vpop.f32.mrf.mxu0
      %v1511 = vadd.f32 0.0, %v1510
      %v1512 = vpop.f32.mrf.mxu0
      %v1513 = vadd.f32 0.0, %v1512
      %1514 = vmatmul.bf16.gmra.mxu0 %v598
      %v1515 = vpop.f32.mrf.mxu0
      %v1516 = vadd.f32 0.0, %v1515
      %v1517 = vpop.f32.mrf.mxu0
      %v1518 = vadd.f32 0.0, %v1517
      %1519 = vmatmul.bf16.gmra.mxu0 %v599
      %v1520 = vpop.f32.mrf.mxu0
      %v1521 = vadd.f32 0.0, %v1520
      %v1522 = vpop.f32.mrf.mxu0
      %v1523 = vadd.f32 0.0, %v1522
      %1524 = vmatmul.bf16.gmra.mxu0 %v600
      %v1525 = vpop.f32.mrf.mxu0
      %v1526 = vadd.f32 0.0, %v1525
      %v1527 = vpop.f32.mrf.mxu0
      %v1528 = vadd.f32 0.0, %v1527
      %1529 = vmatmul.bf16.gmra.mxu0 %v601
      %v1530 = vpop.f32.mrf.mxu0
      %v1531 = vadd.f32 0.0, %v1530
      %v1532 = vpop.f32.mrf.mxu0
      %v1533 = vadd.f32 0.0, %v1532
      %1534 = vmatmul.bf16.gmra.mxu0 %v602
      %v1535 = vpop.f32.mrf.mxu0
      %v1536 = vadd.f32 0.0, %v1535
      %v1537 = vpop.f32.mrf.mxu0
      %v1538 = vadd.f32 0.0, %v1537
      %1539 = vmatmul.bf16.gmra.mxu0 %v603
      %v1540 = vpop.f32.mrf.mxu0
      %v1541 = vadd.f32 0.0, %v1540
      %v1542 = vpop.f32.mrf.mxu0
      %v1543 = vadd.f32 0.0, %v1542
      %1544 = vmatmul.bf16.gmra.mxu0 %v604
      %v1545 = vpop.f32.mrf.mxu0
      %v1546 = vadd.f32 0.0, %v1545
      %v1547 = vpop.f32.mrf.mxu0
      %v1548 = vadd.f32 0.0, %v1547
      %1549 = vmatmul.bf16.gmra.mxu0 %v605
      %v1550 = vpop.f32.mrf.mxu0
      %v1551 = vadd.f32 0.0, %v1550
      %v1552 = vpop.f32.mrf.mxu0
      %v1553 = vadd.f32 0.0, %v1552
      %1554 = vmatmul.bf16.gmra.mxu0 %v1405
      %v1555 = vpop.f32.mrf.mxu0
      %v1556 = vadd.f32 0.0, %v1555
      %v1557 = vpop.f32.mrf.mxu0
      %v1558 = vadd.f32 0.0, %v1557
      %1559 = vdwg.mxu0
      %v1560 = vadd.f32 %v1373, %v1481
      %v1561 = vadd.f32 %v1374, %v1483
      %v1562 = vadd.f32 %v1375, %v1486
      %v1563 = vadd.f32 %v1376, %v1488
      %v1564 = vadd.f32 %v1377, %v1491
      %v1565 = vadd.f32 %v1378, %v1493
      %v1566 = vadd.f32 %v1379, %v1496
      %v1567 = vadd.f32 %v1380, %v1498
      %v1568 = vadd.f32 %v1381, %v1501
      %v1569 = vadd.f32 %v1382, %v1503
      %v1570 = vadd.f32 %v1383, %v1506
      %v1571 = vadd.f32 %v1384, %v1508
      %v1572 = vadd.f32 %v1385, %v1511
      %v1573 = vadd.f32 %v1386, %v1513
      %v1574 = vadd.f32 %v1387, %v1516
      %v1575 = vadd.f32 %v1388, %v1518
      %v1576 = vadd.f32 %v1389, %v1521
      %v1577 = vadd.f32 %v1390, %v1523
      %v1578 = vadd.f32 %v1391, %v1526
      %v1579 = vadd.f32 %v1392, %v1528
      %v1580 = vadd.f32 %v1393, %v1531
      %v1581 = vadd.f32 %v1394, %v1533
      %v1582 = vadd.f32 %v1395, %v1536
      %v1583 = vadd.f32 %v1396, %v1538
      %v1584 = vadd.f32 %v1397, %v1541
      %v1585 = vadd.f32 %v1398, %v1543
      %v1586 = vadd.f32 %v1399, %v1546
      %v1587 = vadd.f32 %v1400, %v1548
      %v1588 = vadd.f32 %v1401, %v1551
      %v1589 = vadd.f32 %v1402, %v1553
      %v1590 = vadd.f32 %v1403, %v1556
      %v1591 = vadd.f32 %v1404, %v1558
      %v1595 = vrot.slane %v584, 1
      %v1596 = vrot.slane %v585, 1
      %v1597 = vsel %vm670, %v1595, %v1596
      %v1598 = vrot.slane %v586, 1
      %v1599 = vsel %vm670, %v1596, %v1598
      %v1602 = vpack.c.bf16 %v1599, %v1597
      %s1603 = scalar_lea.vmem %s3, 256
      %v1604 = vld [vmem:[%s1603] sm:$0xf]
      %v1605 = vld [vmem:[%s1603 + $0x4] sm:$0xf]
      %v1606 = vld [vmem:[%s1603 + $0x8] sm:$0xf]
      %v1607 = vld [vmem:[%s1603 + $0xc] sm:$0xf]
      %v1608 = vld [vmem:[%s1603 + $0x10] sm:$0xf]
      %v1609 = vld [vmem:[%s1603 + $0x14] sm:$0xf]
      %v1610 = vld [vmem:[%s1603 + $0x18] sm:$0xf]
      %v1611 = vld [vmem:[%s1603 + $0x1c] sm:$0xf]
      %v1612 = vld [vmem:[%s1603 + $0x20] sm:$0xf]
      %v1613 = vld [vmem:[%s1603 + $0x24] sm:$0xf]
      %v1614 = vld [vmem:[%s1603 + $0x28] sm:$0xf]
      %v1615 = vld [vmem:[%s1603 + $0x2c] sm:$0xf]
      %v1616 = vld [vmem:[%s1603 + $0x30] sm:$0xf]
      %v1617 = vld [vmem:[%s1603 + $0x34] sm:$0xf]
      %v1618 = vld [vmem:[%s1603 + $0x38] sm:$0xf]
      %v1619 = vld [vmem:[%s1603 + $0x3c] sm:$0xf]
      %v1636 = vunpack.c.l.b16 %v1604
      %v1637 = vunpack.c.l.b16 %v1605
      %v1638 = vunpack.c.l.b16 %v1606
      %v1639 = vunpack.c.l.b16 %v1607
      %v1640 = vunpack.c.l.b16 %v1608
      %v1641 = vunpack.c.l.b16 %v1609
      %v1642 = vunpack.c.l.b16 %v1610
      %v1643 = vunpack.c.l.b16 %v1611
      %v1644 = vunpack.c.l.b16 %v1612
      %v1645 = vunpack.c.l.b16 %v1613
      %v1646 = vunpack.c.l.b16 %v1614
      %v1647 = vunpack.c.l.b16 %v1615
      %v1648 = vunpack.c.l.b16 %v1616
      %v1649 = vunpack.c.l.b16 %v1617
      %v1650 = vunpack.c.l.b16 %v1618
      %v1651 = vunpack.c.l.b16 %v1619
      %v1652 = vpack.c.b16 %v1637, %v1636
      %v1653 = vpack.c.b16 %v1639, %v1638
      %v1654 = vpack.c.b16 %v1641, %v1640
      %v1655 = vpack.c.b16 %v1643, %v1642
      %v1656 = vpack.c.b16 %v1645, %v1644
      %v1657 = vpack.c.b16 %v1647, %v1646
      %v1658 = vpack.c.b16 %v1649, %v1648
      %v1659 = vpack.c.b16 %v1651, %v1650
      %1668 = vmatpush.bf16.msra.mxu0 %v1659
      %1669 = vmatpush.bf16.msra.mxu0 %v1658
      %1670 = vmatpush.bf16.msra.mxu0 %v1657
      %1671 = vmatpush.bf16.msra.mxu0 %v1656
      %1672 = vmatpush.bf16.msra.mxu0 %v1655
      %1673 = vmatpush.bf16.msra.mxu0 %v1654
      %1674 = vmatpush.bf16.msra.mxu0 %v1653
      %1675 = vmatpush.bf16.msra.mxu0 %v1652
      %1676 = vmatmul.bf16.gmra.mxu0 %v784
      %v1677 = vpop.f32.mrf.mxu0
      %v1678 = vadd.f32 0.0, %v1677
      %v1679 = vpop.f32.mrf.mxu0
      %v1680 = vadd.f32 0.0, %v1679
      %1681 = vmatmul.bf16.gmra.mxu0 %v785
      %v1682 = vpop.f32.mrf.mxu0
      %v1683 = vadd.f32 0.0, %v1682
      %v1684 = vpop.f32.mrf.mxu0
      %v1685 = vadd.f32 0.0, %v1684
      %1686 = vmatmul.bf16.gmra.mxu0 %v786
      %v1687 = vpop.f32.mrf.mxu0
      %v1688 = vadd.f32 0.0, %v1687
      %v1689 = vpop.f32.mrf.mxu0
      %v1690 = vadd.f32 0.0, %v1689
      %1691 = vmatmul.bf16.gmra.mxu0 %v787
      %v1692 = vpop.f32.mrf.mxu0
      %v1693 = vadd.f32 0.0, %v1692
      %v1694 = vpop.f32.mrf.mxu0
      %v1695 = vadd.f32 0.0, %v1694
      %1696 = vmatmul.bf16.gmra.mxu0 %v788
      %v1697 = vpop.f32.mrf.mxu0
      %v1698 = vadd.f32 0.0, %v1697
      %v1699 = vpop.f32.mrf.mxu0
      %v1700 = vadd.f32 0.0, %v1699
      %1701 = vmatmul.bf16.gmra.mxu0 %v789
      %v1702 = vpop.f32.mrf.mxu0
      %v1703 = vadd.f32 0.0, %v1702
      %v1704 = vpop.f32.mrf.mxu0
      %v1705 = vadd.f32 0.0, %v1704
      %1706 = vmatmul.bf16.gmra.mxu0 %v790
      %v1707 = vpop.f32.mrf.mxu0
      %v1708 = vadd.f32 0.0, %v1707
      %v1709 = vpop.f32.mrf.mxu0
      %v1710 = vadd.f32 0.0, %v1709
      %1711 = vmatmul.bf16.gmra.mxu0 %v791
      %v1712 = vpop.f32.mrf.mxu0
      %v1713 = vadd.f32 0.0, %v1712
      %v1714 = vpop.f32.mrf.mxu0
      %v1715 = vadd.f32 0.0, %v1714
      %1716 = vmatmul.bf16.gmra.mxu0 %v792
      %v1717 = vpop.f32.mrf.mxu0
      %v1718 = vadd.f32 0.0, %v1717
      %v1719 = vpop.f32.mrf.mxu0
      %v1720 = vadd.f32 0.0, %v1719
      %1721 = vmatmul.bf16.gmra.mxu0 %v793
      %v1722 = vpop.f32.mrf.mxu0
      %v1723 = vadd.f32 0.0, %v1722
      %v1724 = vpop.f32.mrf.mxu0
      %v1725 = vadd.f32 0.0, %v1724
      %1726 = vmatmul.bf16.gmra.mxu0 %v794
      %v1727 = vpop.f32.mrf.mxu0
      %v1728 = vadd.f32 0.0, %v1727
      %v1729 = vpop.f32.mrf.mxu0
      %v1730 = vadd.f32 0.0, %v1729
      %1731 = vmatmul.bf16.gmra.mxu0 %v795
      %v1732 = vpop.f32.mrf.mxu0
      %v1733 = vadd.f32 0.0, %v1732
      %v1734 = vpop.f32.mrf.mxu0
      %v1735 = vadd.f32 0.0, %v1734
      %1736 = vmatmul.bf16.gmra.mxu0 %v796
      %v1737 = vpop.f32.mrf.mxu0
      %v1738 = vadd.f32 0.0, %v1737
      %v1739 = vpop.f32.mrf.mxu0
      %v1740 = vadd.f32 0.0, %v1739
      %1741 = vmatmul.bf16.gmra.mxu0 %v797
      %v1742 = vpop.f32.mrf.mxu0
      %v1743 = vadd.f32 0.0, %v1742
      %v1744 = vpop.f32.mrf.mxu0
      %v1745 = vadd.f32 0.0, %v1744
      %1746 = vmatmul.bf16.gmra.mxu0 %v798
      %v1747 = vpop.f32.mrf.mxu0
      %v1748 = vadd.f32 0.0, %v1747
      %v1749 = vpop.f32.mrf.mxu0
      %v1750 = vadd.f32 0.0, %v1749
      %1751 = vmatmul.bf16.gmra.mxu0 %v1602
      %v1752 = vpop.f32.mrf.mxu0
      %v1753 = vadd.f32 0.0, %v1752
      %v1754 = vpop.f32.mrf.mxu0
      %v1755 = vadd.f32 0.0, %v1754
      %1756 = vdwg.mxu0
      %v1757 = vadd.f32 %v1560, %v1678
      %v1758 = vadd.f32 %v1561, %v1680
      %v1759 = vadd.f32 %v1562, %v1683
      %v1760 = vadd.f32 %v1563, %v1685
      %v1761 = vadd.f32 %v1564, %v1688
      %v1762 = vadd.f32 %v1565, %v1690
      %v1763 = vadd.f32 %v1566, %v1693
      %v1764 = vadd.f32 %v1567, %v1695
      %v1765 = vadd.f32 %v1568, %v1698
      %v1766 = vadd.f32 %v1569, %v1700
      %v1767 = vadd.f32 %v1570, %v1703
      %v1768 = vadd.f32 %v1571, %v1705
      %v1769 = vadd.f32 %v1572, %v1708
      %v1770 = vadd.f32 %v1573, %v1710
      %v1771 = vadd.f32 %v1574, %v1713
      %v1772 = vadd.f32 %v1575, %v1715
      %v1773 = vadd.f32 %v1576, %v1718
      %v1774 = vadd.f32 %v1577, %v1720
      %v1775 = vadd.f32 %v1578, %v1723
      %v1776 = vadd.f32 %v1579, %v1725
      %v1777 = vadd.f32 %v1580, %v1728
      %v1778 = vadd.f32 %v1581, %v1730
      %v1779 = vadd.f32 %v1582, %v1733
      %v1780 = vadd.f32 %v1583, %v1735
      %v1781 = vadd.f32 %v1584, %v1738
      %v1782 = vadd.f32 %v1585, %v1740
      %v1783 = vadd.f32 %v1586, %v1743
      %v1784 = vadd.f32 %v1587, %v1745
      %v1785 = vadd.f32 %v1588, %v1748
      %v1786 = vadd.f32 %v1589, %v1750
      %v1787 = vadd.f32 %v1590, %v1753
      %v1788 = vadd.f32 %v1591, %v1755
      %v1789 = vrot.slane %v584, 2
      %v1790 = vrot.slane %v585, 2
      %v1791 = vsel %vm1090, %v1789, %v1790
      %v1792 = vrot.slane %v586, 2
      %v1793 = vsel %vm1090, %v1790, %v1792
      %v1796 = vpack.c.bf16 %v1793, %v1791
      %s1797 = scalar_lea.vmem %s3, 320
      %v1798 = vld [vmem:[%s1797] sm:$0xf]
      %v1799 = vld [vmem:[%s1797 + $0x4] sm:$0xf]
      %v1800 = vld [vmem:[%s1797 + $0x8] sm:$0xf]
      %v1801 = vld [vmem:[%s1797 + $0xc] sm:$0xf]
      %v1802 = vld [vmem:[%s1797 + $0x10] sm:$0xf]
      %v1803 = vld [vmem:[%s1797 + $0x14] sm:$0xf]
      %v1804 = vld [vmem:[%s1797 + $0x18] sm:$0xf]
      %v1805 = vld [vmem:[%s1797 + $0x1c] sm:$0xf]
      %v1806 = vld [vmem:[%s1797 + $0x20] sm:$0xf]
      %v1807 = vld [vmem:[%s1797 + $0x24] sm:$0xf]
      %v1808 = vld [vmem:[%s1797 + $0x28] sm:$0xf]
      %v1809 = vld [vmem:[%s1797 + $0x2c] sm:$0xf]
      %v1810 = vld [vmem:[%s1797 + $0x30] sm:$0xf]
      %v1811 = vld [vmem:[%s1797 + $0x34] sm:$0xf]
      %v1812 = vld [vmem:[%s1797 + $0x38] sm:$0xf]
      %v1813 = vld [vmem:[%s1797 + $0x3c] sm:$0xf]
      %v1830 = vunpack.c.l.b16 %v1798
      %v1831 = vunpack.c.l.b16 %v1799
      %v1832 = vunpack.c.l.b16 %v1800
      %v1833 = vunpack.c.l.b16 %v1801
      %v1834 = vunpack.c.l.b16 %v1802
      %v1835 = vunpack.c.l.b16 %v1803
      %v1836 = vunpack.c.l.b16 %v1804
      %v1837 = vunpack.c.l.b16 %v1805
      %v1838 = vunpack.c.l.b16 %v1806
      %v1839 = vunpack.c.l.b16 %v1807
      %v1840 = vunpack.c.l.b16 %v1808
      %v1841 = vunpack.c.l.b16 %v1809
      %v1842 = vunpack.c.l.b16 %v1810
      %v1843 = vunpack.c.l.b16 %v1811
      %v1844 = vunpack.c.l.b16 %v1812
      %v1845 = vunpack.c.l.b16 %v1813
      %v1846 = vpack.c.b16 %v1831, %v1830
      %v1847 = vpack.c.b16 %v1833, %v1832
      %v1848 = vpack.c.b16 %v1835, %v1834
      %v1849 = vpack.c.b16 %v1837, %v1836
      %v1850 = vpack.c.b16 %v1839, %v1838
      %v1851 = vpack.c.b16 %v1841, %v1840
      %v1852 = vpack.c.b16 %v1843, %v1842
      %v1853 = vpack.c.b16 %v1845, %v1844
      %1862 = vmatpush.bf16.msra.mxu0 %v1853
      %1863 = vmatpush.bf16.msra.mxu0 %v1852
      %1864 = vmatpush.bf16.msra.mxu0 %v1851
      %1865 = vmatpush.bf16.msra.mxu0 %v1850
      %1866 = vmatpush.bf16.msra.mxu0 %v1849
      %1867 = vmatpush.bf16.msra.mxu0 %v1848
      %1868 = vmatpush.bf16.msra.mxu0 %v1847
      %1869 = vmatpush.bf16.msra.mxu0 %v1846
      %1870 = vmatmul.bf16.gmra.mxu0 %v1204
      %v1871 = vpop.f32.mrf.mxu0
      %v1872 = vadd.f32 0.0, %v1871
      %v1873 = vpop.f32.mrf.mxu0
      %v1874 = vadd.f32 0.0, %v1873
      %1875 = vmatmul.bf16.gmra.mxu0 %v1205
      %v1876 = vpop.f32.mrf.mxu0
      %v1877 = vadd.f32 0.0, %v1876
      %v1878 = vpop.f32.mrf.mxu0
      %v1879 = vadd.f32 0.0, %v1878
      %1880 = vmatmul.bf16.gmra.mxu0 %v1206
      %v1881 = vpop.f32.mrf.mxu0
      %v1882 = vadd.f32 0.0, %v1881
      %v1883 = vpop.f32.mrf.mxu0
      %v1884 = vadd.f32 0.0, %v1883
      %1885 = vmatmul.bf16.gmra.mxu0 %v1207
      %v1886 = vpop.f32.mrf.mxu0
      %v1887 = vadd.f32 0.0, %v1886
      %v1888 = vpop.f32.mrf.mxu0
      %v1889 = vadd.f32 0.0, %v1888
      %1890 = vmatmul.bf16.gmra.mxu0 %v1208
      %v1891 = vpop.f32.mrf.mxu0
      %v1892 = vadd.f32 0.0, %v1891
      %v1893 = vpop.f32.mrf.mxu0
      %v1894 = vadd.f32 0.0, %v1893
      %1895 = vmatmul.bf16.gmra.mxu0 %v1209
      %v1896 = vpop.f32.mrf.mxu0
      %v1897 = vadd.f32 0.0, %v1896
      %v1898 = vpop.f32.mrf.mxu0
      %v1899 = vadd.f32 0.0, %v1898
      %1900 = vmatmul.bf16.gmra.mxu0 %v1210
      %v1901 = vpop.f32.mrf.mxu0
      %v1902 = vadd.f32 0.0, %v1901
      %v1903 = vpop.f32.mrf.mxu0
      %v1904 = vadd.f32 0.0, %v1903
      %1905 = vmatmul.bf16.gmra.mxu0 %v1211
      %v1906 = vpop.f32.mrf.mxu0
      %v1907 = vadd.f32 0.0, %v1906
      %v1908 = vpop.f32.mrf.mxu0
      %v1909 = vadd.f32 0.0, %v1908
      %1910 = vmatmul.bf16.gmra.mxu0 %v1212
      %v1911 = vpop.f32.mrf.mxu0
      %v1912 = vadd.f32 0.0, %v1911
      %v1913 = vpop.f32.mrf.mxu0
      %v1914 = vadd.f32 0.0, %v1913
      %1915 = vmatmul.bf16.gmra.mxu0 %v1213
      %v1916 = vpop.f32.mrf.mxu0
      %v1917 = vadd.f32 0.0, %v1916
      %v1918 = vpop.f32.mrf.mxu0
      %v1919 = vadd.f32 0.0, %v1918
      %1920 = vmatmul.bf16.gmra.mxu0 %v1214
      %v1921 = vpop.f32.mrf.mxu0
      %v1922 = vadd.f32 0.0, %v1921
      %v1923 = vpop.f32.mrf.mxu0
      %v1924 = vadd.f32 0.0, %v1923
      %1925 = vmatmul.bf16.gmra.mxu0 %v1215
      %v1926 = vpop.f32.mrf.mxu0
      %v1927 = vadd.f32 0.0, %v1926
      %v1928 = vpop.f32.mrf.mxu0
      %v1929 = vadd.f32 0.0, %v1928
      %1930 = vmatmul.bf16.gmra.mxu0 %v1216
      %v1931 = vpop.f32.mrf.mxu0
      %v1932 = vadd.f32 0.0, %v1931
      %v1933 = vpop.f32.mrf.mxu0
      %v1934 = vadd.f32 0.0, %v1933
      %1935 = vmatmul.bf16.gmra.mxu0 %v1217
      %v1936 = vpop.f32.mrf.mxu0
      %v1937 = vadd.f32 0.0, %v1936
      %v1938 = vpop.f32.mrf.mxu0
      %v1939 = vadd.f32 0.0, %v1938
      %1940 = vmatmul.bf16.gmra.mxu0 %v1218
      %v1941 = vpop.f32.mrf.mxu0
      %v1942 = vadd.f32 0.0, %v1941
      %v1943 = vpop.f32.mrf.mxu0
      %v1944 = vadd.f32 0.0, %v1943
      %1945 = vmatmul.bf16.gmra.mxu0 %v1796
      %v1946 = vpop.f32.mrf.mxu0
      %v1947 = vadd.f32 0.0, %v1946
      %v1948 = vpop.f32.mrf.mxu0
      %v1949 = vadd.f32 0.0, %v1948
      %1950 = vdwg.mxu0
      %v1951 = vadd.f32 %v1757, %v1872
      %v1952 = vadd.f32 %v1758, %v1874
      %v1953 = vadd.f32 %v1759, %v1877
      %v1954 = vadd.f32 %v1760, %v1879
      %v1955 = vadd.f32 %v1761, %v1882
      %v1956 = vadd.f32 %v1762, %v1884
      %v1957 = vadd.f32 %v1763, %v1887
      %v1958 = vadd.f32 %v1764, %v1889
      %v1959 = vadd.f32 %v1765, %v1892
      %v1960 = vadd.f32 %v1766, %v1894
      %v1961 = vadd.f32 %v1767, %v1897
      %v1962 = vadd.f32 %v1768, %v1899
      %v1963 = vadd.f32 %v1769, %v1902
      %v1964 = vadd.f32 %v1770, %v1904
      %v1965 = vadd.f32 %v1771, %v1907
      %v1966 = vadd.f32 %v1772, %v1909
      %v1967 = vadd.f32 %v1773, %v1912
      %v1968 = vadd.f32 %v1774, %v1914
      %v1969 = vadd.f32 %v1775, %v1917
      %v1970 = vadd.f32 %v1776, %v1919
      %v1971 = vadd.f32 %v1777, %v1922
      %v1972 = vadd.f32 %v1778, %v1924
      %v1973 = vadd.f32 %v1779, %v1927
      %v1974 = vadd.f32 %v1780, %v1929
      %v1975 = vadd.f32 %v1781, %v1932
      %v1976 = vadd.f32 %v1782, %v1934
      %v1977 = vadd.f32 %v1783, %v1937
      %v1978 = vadd.f32 %v1784, %v1939
      %v1979 = vadd.f32 %v1785, %v1942
      %v1980 = vadd.f32 %v1786, %v1944
      %v1981 = vadd.f32 %v1787, %v1947
      %v1982 = vadd.f32 %v1788, %v1949
      %v1983 = vpack.c.bf16 %v588, %v587
      %s1984 = scalar_lea.vmem %s3, 384
      %v1985 = vld [vmem:[%s1984] sm:$0xf]
      %v1986 = vld [vmem:[%s1984 + $0x4] sm:$0xf]
      %v1987 = vld [vmem:[%s1984 + $0x8] sm:$0xf]
      %v1988 = vld [vmem:[%s1984 + $0xc] sm:$0xf]
      %v1989 = vld [vmem:[%s1984 + $0x10] sm:$0xf]
      %v1990 = vld [vmem:[%s1984 + $0x14] sm:$0xf]
      %v1991 = vld [vmem:[%s1984 + $0x18] sm:$0xf]
      %v1992 = vld [vmem:[%s1984 + $0x1c] sm:$0xf]
      %v1993 = vld [vmem:[%s1984 + $0x20] sm:$0xf]
      %v1994 = vld [vmem:[%s1984 + $0x24] sm:$0xf]
      %v1995 = vld [vmem:[%s1984 + $0x28] sm:$0xf]
      %v1996 = vld [vmem:[%s1984 + $0x2c] sm:$0xf]
      %v1997 = vld [vmem:[%s1984 + $0x30] sm:$0xf]
      %v1998 = vld [vmem:[%s1984 + $0x34] sm:$0xf]
      %v1999 = vld [vmem:[%s1984 + $0x38] sm:$0xf]
      %v2000 = vld [vmem:[%s1984 + $0x3c] sm:$0xf]
      %v2017 = vunpack.c.l.b16 %v1985
      %v2018 = vunpack.c.l.b16 %v1986
      %v2019 = vunpack.c.l.b16 %v1987
      %v2020 = vunpack.c.l.b16 %v1988
      %v2021 = vunpack.c.l.b16 %v1989
      %v2022 = vunpack.c.l.b16 %v1990
      %v2023 = vunpack.c.l.b16 %v1991
      %v2024 = vunpack.c.l.b16 %v1992
      %v2025 = vunpack.c.l.b16 %v1993
      %v2026 = vunpack.c.l.b16 %v1994
      %v2027 = vunpack.c.l.b16 %v1995
      %v2028 = vunpack.c.l.b16 %v1996
      %v2029 = vunpack.c.l.b16 %v1997
      %v2030 = vunpack.c.l.b16 %v1998
      %v2031 = vunpack.c.l.b16 %v1999
      %v2032 = vunpack.c.l.b16 %v2000
      %v2033 = vpack.c.b16 %v2018, %v2017
      %v2034 = vpack.c.b16 %v2020, %v2019
      %v2035 = vpack.c.b16 %v2022, %v2021
      %v2036 = vpack.c.b16 %v2024, %v2023
      %v2037 = vpack.c.b16 %v2026, %v2025
      %v2038 = vpack.c.b16 %v2028, %v2027
      %v2039 = vpack.c.b16 %v2030, %v2029
      %v2040 = vpack.c.b16 %v2032, %v2031
      %2049 = vmatpush.bf16.msra.mxu0 %v2040
      %2050 = vmatpush.bf16.msra.mxu0 %v2039
      %2051 = vmatpush.bf16.msra.mxu0 %v2038
      %2052 = vmatpush.bf16.msra.mxu0 %v2037
      %2053 = vmatpush.bf16.msra.mxu0 %v2036
      %2054 = vmatpush.bf16.msra.mxu0 %v2035
      %2055 = vmatpush.bf16.msra.mxu0 %v2034
      %2056 = vmatpush.bf16.msra.mxu0 %v2033
      %2057 = vmatmul.bf16.gmra.mxu0 %v592
      %v2058 = vpop.f32.mrf.mxu0
      %v2059 = vadd.f32 0.0, %v2058
      %v2060 = vpop.f32.mrf.mxu0
      %v2061 = vadd.f32 0.0, %v2060
      %2062 = vmatmul.bf16.gmra.mxu0 %v593
      %v2063 = vpop.f32.mrf.mxu0
      %v2064 = vadd.f32 0.0, %v2063
      %v2065 = vpop.f32.mrf.mxu0
      %v2066 = vadd.f32 0.0, %v2065
      %2067 = vmatmul.bf16.gmra.mxu0 %v594
      %v2068 = vpop.f32.mrf.mxu0
      %v2069 = vadd.f32 0.0, %v2068
      %v2070 = vpop.f32.mrf.mxu0
      %v2071 = vadd.f32 0.0, %v2070
      %2072 = vmatmul.bf16.gmra.mxu0 %v595
      %v2073 = vpop.f32.mrf.mxu0
      %v2074 = vadd.f32 0.0, %v2073
      %v2075 = vpop.f32.mrf.mxu0
      %v2076 = vadd.f32 0.0, %v2075
      %2077 = vmatmul.bf16.gmra.mxu0 %v596
      %v2078 = vpop.f32.mrf.mxu0
      %v2079 = vadd.f32 0.0, %v2078
      %v2080 = vpop.f32.mrf.mxu0
      %v2081 = vadd.f32 0.0, %v2080
      %2082 = vmatmul.bf16.gmra.mxu0 %v597
      %v2083 = vpop.f32.mrf.mxu0
      %v2084 = vadd.f32 0.0, %v2083
      %v2085 = vpop.f32.mrf.mxu0
      %v2086 = vadd.f32 0.0, %v2085
      %2087 = vmatmul.bf16.gmra.mxu0 %v598
      %v2088 = vpop.f32.mrf.mxu0
      %v2089 = vadd.f32 0.0, %v2088
      %v2090 = vpop.f32.mrf.mxu0
      %v2091 = vadd.f32 0.0, %v2090
      %2092 = vmatmul.bf16.gmra.mxu0 %v599
      %v2093 = vpop.f32.mrf.mxu0
      %v2094 = vadd.f32 0.0, %v2093
      %v2095 = vpop.f32.mrf.mxu0
      %v2096 = vadd.f32 0.0, %v2095
      %2097 = vmatmul.bf16.gmra.mxu0 %v600
      %v2098 = vpop.f32.mrf.mxu0
      %v2099 = vadd.f32 0.0, %v2098
      %v2100 = vpop.f32.mrf.mxu0
      %v2101 = vadd.f32 0.0, %v2100
      %2102 = vmatmul.bf16.gmra.mxu0 %v601
      %v2103 = vpop.f32.mrf.mxu0
      %v2104 = vadd.f32 0.0, %v2103
      %v2105 = vpop.f32.mrf.mxu0
      %v2106 = vadd.f32 0.0, %v2105
      %2107 = vmatmul.bf16.gmra.mxu0 %v602
      %v2108 = vpop.f32.mrf.mxu0
      %v2109 = vadd.f32 0.0, %v2108
      %v2110 = vpop.f32.mrf.mxu0
      %v2111 = vadd.f32 0.0, %v2110
      %2112 = vmatmul.bf16.gmra.mxu0 %v603
      %v2113 = vpop.f32.mrf.mxu0
      %v2114 = vadd.f32 0.0, %v2113
      %v2115 = vpop.f32.mrf.mxu0
      %v2116 = vadd.f32 0.0, %v2115
      %2117 = vmatmul.bf16.gmra.mxu0 %v604
      %v2118 = vpop.f32.mrf.mxu0
      %v2119 = vadd.f32 0.0, %v2118
      %v2120 = vpop.f32.mrf.mxu0
      %v2121 = vadd.f32 0.0, %v2120
      %2122 = vmatmul.bf16.gmra.mxu0 %v605
      %v2123 = vpop.f32.mrf.mxu0
      %v2124 = vadd.f32 0.0, %v2123
      %v2125 = vpop.f32.mrf.mxu0
      %v2126 = vadd.f32 0.0, %v2125
      %2127 = vmatmul.bf16.gmra.mxu0 %v1405
      %v2128 = vpop.f32.mrf.mxu0
      %v2129 = vadd.f32 0.0, %v2128
      %v2130 = vpop.f32.mrf.mxu0
      %v2131 = vadd.f32 0.0, %v2130
      %2132 = vmatmul.bf16.gmra.mxu0 %v1983
      %v2133 = vpop.f32.mrf.mxu0
      %v2134 = vadd.f32 0.0, %v2133
      %v2135 = vpop.f32.mrf.mxu0
      %v2136 = vadd.f32 0.0, %v2135
      %2137 = vdwg.mxu0
      %v2138 = vadd.f32 %v1951, %v2059
      %v2139 = vadd.f32 %v1952, %v2061
      %v2140 = vadd.f32 %v1953, %v2064
      %v2141 = vadd.f32 %v1954, %v2066
      %v2142 = vadd.f32 %v1955, %v2069
      %v2143 = vadd.f32 %v1956, %v2071
      %v2144 = vadd.f32 %v1957, %v2074
      %v2145 = vadd.f32 %v1958, %v2076
      %v2146 = vadd.f32 %v1959, %v2079
      %v2147 = vadd.f32 %v1960, %v2081
      %v2148 = vadd.f32 %v1961, %v2084
      %v2149 = vadd.f32 %v1962, %v2086
      %v2150 = vadd.f32 %v1963, %v2089
      %v2151 = vadd.f32 %v1964, %v2091
      %v2152 = vadd.f32 %v1965, %v2094
      %v2153 = vadd.f32 %v1966, %v2096
      %v2154 = vadd.f32 %v1967, %v2099
      %v2155 = vadd.f32 %v1968, %v2101
      %v2156 = vadd.f32 %v1969, %v2104
      %v2157 = vadd.f32 %v1970, %v2106
      %v2158 = vadd.f32 %v1971, %v2109
      %v2159 = vadd.f32 %v1972, %v2111
      %v2160 = vadd.f32 %v1973, %v2114
      %v2161 = vadd.f32 %v1974, %v2116
      %v2162 = vadd.f32 %v1975, %v2119
      %v2163 = vadd.f32 %v1976, %v2121
      %v2164 = vadd.f32 %v1977, %v2124
      %v2165 = vadd.f32 %v1978, %v2126
      %v2166 = vadd.f32 %v1979, %v2129
      %v2167 = vadd.f32 %v1980, %v2131
      %v2168 = vadd.f32 %v1981, %v2134
      %v2169 = vadd.f32 %v1982, %v2136
      %v2173 = vrot.slane %v587, 1
      %v2174 = vrot.slane %v588, 1
      %v2175 = vsel %vm670, %v2173, %v2174
      %v2176 = vrot.slane %v589, 1
      %v2177 = vsel %vm670, %v2174, %v2176
      %v2180 = vpack.c.bf16 %v2177, %v2175
      %s2181 = scalar_lea.vmem %s3, 448
      %v2182 = vld [vmem:[%s2181] sm:$0xf]
      %v2183 = vld [vmem:[%s2181 + $0x4] sm:$0xf]
      %v2184 = vld [vmem:[%s2181 + $0x8] sm:$0xf]
      %v2185 = vld [vmem:[%s2181 + $0xc] sm:$0xf]
      %v2186 = vld [vmem:[%s2181 + $0x10] sm:$0xf]
      %v2187 = vld [vmem:[%s2181 + $0x14] sm:$0xf]
      %v2188 = vld [vmem:[%s2181 + $0x18] sm:$0xf]
      %v2189 = vld [vmem:[%s2181 + $0x1c] sm:$0xf]
      %v2190 = vld [vmem:[%s2181 + $0x20] sm:$0xf]
      %v2191 = vld [vmem:[%s2181 + $0x24] sm:$0xf]
      %v2192 = vld [vmem:[%s2181 + $0x28] sm:$0xf]
      %v2193 = vld [vmem:[%s2181 + $0x2c] sm:$0xf]
      %v2194 = vld [vmem:[%s2181 + $0x30] sm:$0xf]
      %v2195 = vld [vmem:[%s2181 + $0x34] sm:$0xf]
      %v2196 = vld [vmem:[%s2181 + $0x38] sm:$0xf]
      %v2197 = vld [vmem:[%s2181 + $0x3c] sm:$0xf]
      %v2214 = vunpack.c.l.b16 %v2182
      %v2215 = vunpack.c.l.b16 %v2183
      %v2216 = vunpack.c.l.b16 %v2184
      %v2217 = vunpack.c.l.b16 %v2185
      %v2218 = vunpack.c.l.b16 %v2186
      %v2219 = vunpack.c.l.b16 %v2187
      %v2220 = vunpack.c.l.b16 %v2188
      %v2221 = vunpack.c.l.b16 %v2189
      %v2222 = vunpack.c.l.b16 %v2190
      %v2223 = vunpack.c.l.b16 %v2191
      %v2224 = vunpack.c.l.b16 %v2192
      %v2225 = vunpack.c.l.b16 %v2193
      %v2226 = vunpack.c.l.b16 %v2194
      %v2227 = vunpack.c.l.b16 %v2195
      %v2228 = vunpack.c.l.b16 %v2196
      %v2229 = vunpack.c.l.b16 %v2197
      %v2230 = vpack.c.b16 %v2215, %v2214
      %v2231 = vpack.c.b16 %v2217, %v2216
      %v2232 = vpack.c.b16 %v2219, %v2218
      %v2233 = vpack.c.b16 %v2221, %v2220
      %v2234 = vpack.c.b16 %v2223, %v2222
      %v2235 = vpack.c.b16 %v2225, %v2224
      %v2236 = vpack.c.b16 %v2227, %v2226
      %v2237 = vpack.c.b16 %v2229, %v2228
      %2246 = vmatpush.bf16.msra.mxu0 %v2237
      %2247 = vmatpush.bf16.msra.mxu0 %v2236
      %2248 = vmatpush.bf16.msra.mxu0 %v2235
      %2249 = vmatpush.bf16.msra.mxu0 %v2234
      %2250 = vmatpush.bf16.msra.mxu0 %v2233
      %2251 = vmatpush.bf16.msra.mxu0 %v2232
      %2252 = vmatpush.bf16.msra.mxu0 %v2231
      %2253 = vmatpush.bf16.msra.mxu0 %v2230
      %2254 = vmatmul.bf16.gmra.mxu0 %v785
      %v2255 = vpop.f32.mrf.mxu0
      %v2256 = vadd.f32 0.0, %v2255
      %v2257 = vpop.f32.mrf.mxu0
      %v2258 = vadd.f32 0.0, %v2257
      %2259 = vmatmul.bf16.gmra.mxu0 %v786
      %v2260 = vpop.f32.mrf.mxu0
      %v2261 = vadd.f32 0.0, %v2260
      %v2262 = vpop.f32.mrf.mxu0
      %v2263 = vadd.f32 0.0, %v2262
      %2264 = vmatmul.bf16.gmra.mxu0 %v787
      %v2265 = vpop.f32.mrf.mxu0
      %v2266 = vadd.f32 0.0, %v2265
      %v2267 = vpop.f32.mrf.mxu0
      %v2268 = vadd.f32 0.0, %v2267
      %2269 = vmatmul.bf16.gmra.mxu0 %v788
      %v2270 = vpop.f32.mrf.mxu0
      %v2271 = vadd.f32 0.0, %v2270
      %v2272 = vpop.f32.mrf.mxu0
      %v2273 = vadd.f32 0.0, %v2272
      %2274 = vmatmul.bf16.gmra.mxu0 %v789
      %v2275 = vpop.f32.mrf.mxu0
      %v2276 = vadd.f32 0.0, %v2275
      %v2277 = vpop.f32.mrf.mxu0
      %v2278 = vadd.f32 0.0, %v2277
      %2279 = vmatmul.bf16.gmra.mxu0 %v790
      %v2280 = vpop.f32.mrf.mxu0
      %v2281 = vadd.f32 0.0, %v2280
      %v2282 = vpop.f32.mrf.mxu0
      %v2283 = vadd.f32 0.0, %v2282
      %2284 = vmatmul.bf16.gmra.mxu0 %v791
      %v2285 = vpop.f32.mrf.mxu0
      %v2286 = vadd.f32 0.0, %v2285
      %v2287 = vpop.f32.mrf.mxu0
      %v2288 = vadd.f32 0.0, %v2287
      %2289 = vmatmul.bf16.gmra.mxu0 %v792
      %v2290 = vpop.f32.mrf.mxu0
      %v2291 = vadd.f32 0.0, %v2290
      %v2292 = vpop.f32.mrf.mxu0
      %v2293 = vadd.f32 0.0, %v2292
      %2294 = vmatmul.bf16.gmra.mxu0 %v793
      %v2295 = vpop.f32.mrf.mxu0
      %v2296 = vadd.f32 0.0, %v2295
      %v2297 = vpop.f32.mrf.mxu0
      %v2298 = vadd.f32 0.0, %v2297
      %2299 = vmatmul.bf16.gmra.mxu0 %v794
      %v2300 = vpop.f32.mrf.mxu0
      %v2301 = vadd.f32 0.0, %v2300
      %v2302 = vpop.f32.mrf.mxu0
      %v2303 = vadd.f32 0.0, %v2302
      %2304 = vmatmul.bf16.gmra.mxu0 %v795
      %v2305 = vpop.f32.mrf.mxu0
      %v2306 = vadd.f32 0.0, %v2305
      %v2307 = vpop.f32.mrf.mxu0
      %v2308 = vadd.f32 0.0, %v2307
      %2309 = vmatmul.bf16.gmra.mxu0 %v796
      %v2310 = vpop.f32.mrf.mxu0
      %v2311 = vadd.f32 0.0, %v2310
      %v2312 = vpop.f32.mrf.mxu0
      %v2313 = vadd.f32 0.0, %v2312
      %2314 = vmatmul.bf16.gmra.mxu0 %v797
      %v2315 = vpop.f32.mrf.mxu0
      %v2316 = vadd.f32 0.0, %v2315
      %v2317 = vpop.f32.mrf.mxu0
      %v2318 = vadd.f32 0.0, %v2317
      %2319 = vmatmul.bf16.gmra.mxu0 %v798
      %v2320 = vpop.f32.mrf.mxu0
      %v2321 = vadd.f32 0.0, %v2320
      %v2322 = vpop.f32.mrf.mxu0
      %v2323 = vadd.f32 0.0, %v2322
      %2324 = vmatmul.bf16.gmra.mxu0 %v1602
      %v2325 = vpop.f32.mrf.mxu0
      %v2326 = vadd.f32 0.0, %v2325
      %v2327 = vpop.f32.mrf.mxu0
      %v2328 = vadd.f32 0.0, %v2327
      %2329 = vmatmul.bf16.gmra.mxu0 %v2180
      %v2330 = vpop.f32.mrf.mxu0
      %v2331 = vadd.f32 0.0, %v2330
      %v2332 = vpop.f32.mrf.mxu0
      %v2333 = vadd.f32 0.0, %v2332
      %2334 = vdwg.mxu0
      %v2335 = vadd.f32 %v2138, %v2256
      %v2336 = vadd.f32 %v2139, %v2258
      %v2337 = vadd.f32 %v2140, %v2261
      %v2338 = vadd.f32 %v2141, %v2263
      %v2339 = vadd.f32 %v2142, %v2266
      %v2340 = vadd.f32 %v2143, %v2268
      %v2341 = vadd.f32 %v2144, %v2271
      %v2342 = vadd.f32 %v2145, %v2273
      %v2343 = vadd.f32 %v2146, %v2276
      %v2344 = vadd.f32 %v2147, %v2278
      %v2345 = vadd.f32 %v2148, %v2281
      %v2346 = vadd.f32 %v2149, %v2283
      %v2347 = vadd.f32 %v2150, %v2286
      %v2348 = vadd.f32 %v2151, %v2288
      %v2349 = vadd.f32 %v2152, %v2291
      %v2350 = vadd.f32 %v2153, %v2293
      %v2351 = vadd.f32 %v2154, %v2296
      %v2352 = vadd.f32 %v2155, %v2298
      %v2353 = vadd.f32 %v2156, %v2301
      %v2354 = vadd.f32 %v2157, %v2303
      %v2355 = vadd.f32 %v2158, %v2306
      %v2356 = vadd.f32 %v2159, %v2308
      %v2357 = vadd.f32 %v2160, %v2311
      %v2358 = vadd.f32 %v2161, %v2313
      %v2359 = vadd.f32 %v2162, %v2316
      %v2360 = vadd.f32 %v2163, %v2318
      %v2361 = vadd.f32 %v2164, %v2321
      %v2362 = vadd.f32 %v2165, %v2323
      %v2363 = vadd.f32 %v2166, %v2326
      %v2364 = vadd.f32 %v2167, %v2328
      %v2365 = vadd.f32 %v2168, %v2331
      %v2366 = vadd.f32 %v2169, %v2333
      %v2367 = vrot.slane %v587, 2
      %v2368 = vrot.slane %v588, 2
      %v2369 = vsel %vm1090, %v2367, %v2368
      %v2370 = vrot.slane %v589, 2
      %v2371 = vsel %vm1090, %v2368, %v2370
      %v2374 = vpack.c.bf16 %v2371, %v2369
      %s2375 = scalar_lea.vmem %s3, 512
      %v2376 = vld [vmem:[%s2375] sm:$0xf]
      %v2377 = vld [vmem:[%s2375 + $0x4] sm:$0xf]
      %v2378 = vld [vmem:[%s2375 + $0x8] sm:$0xf]
      %v2379 = vld [vmem:[%s2375 + $0xc] sm:$0xf]
      %v2380 = vld [vmem:[%s2375 + $0x10] sm:$0xf]
      %v2381 = vld [vmem:[%s2375 + $0x14] sm:$0xf]
      %v2382 = vld [vmem:[%s2375 + $0x18] sm:$0xf]
      %v2383 = vld [vmem:[%s2375 + $0x1c] sm:$0xf]
      %v2384 = vld [vmem:[%s2375 + $0x20] sm:$0xf]
      %v2385 = vld [vmem:[%s2375 + $0x24] sm:$0xf]
      %v2386 = vld [vmem:[%s2375 + $0x28] sm:$0xf]
      %v2387 = vld [vmem:[%s2375 + $0x2c] sm:$0xf]
      %v2388 = vld [vmem:[%s2375 + $0x30] sm:$0xf]
      %v2389 = vld [vmem:[%s2375 + $0x34] sm:$0xf]
      %v2390 = vld [vmem:[%s2375 + $0x38] sm:$0xf]
      %v2391 = vld [vmem:[%s2375 + $0x3c] sm:$0xf]
      %v2408 = vunpack.c.l.b16 %v2376
      %v2409 = vunpack.c.l.b16 %v2377
      %v2410 = vunpack.c.l.b16 %v2378
      %v2411 = vunpack.c.l.b16 %v2379
      %v2412 = vunpack.c.l.b16 %v2380
      %v2413 = vunpack.c.l.b16 %v2381
      %v2414 = vunpack.c.l.b16 %v2382
      %v2415 = vunpack.c.l.b16 %v2383
      %v2416 = vunpack.c.l.b16 %v2384
      %v2417 = vunpack.c.l.b16 %v2385
      %v2418 = vunpack.c.l.b16 %v2386
      %v2419 = vunpack.c.l.b16 %v2387
      %v2420 = vunpack.c.l.b16 %v2388
      %v2421 = vunpack.c.l.b16 %v2389
      %v2422 = vunpack.c.l.b16 %v2390
      %v2423 = vunpack.c.l.b16 %v2391
      %v2424 = vpack.c.b16 %v2409, %v2408
      %v2425 = vpack.c.b16 %v2411, %v2410
      %v2426 = vpack.c.b16 %v2413, %v2412
      %v2427 = vpack.c.b16 %v2415, %v2414
      %v2428 = vpack.c.b16 %v2417, %v2416
      %v2429 = vpack.c.b16 %v2419, %v2418
      %v2430 = vpack.c.b16 %v2421, %v2420
      %v2431 = vpack.c.b16 %v2423, %v2422
      %2440 = vmatpush.bf16.msra.mxu0 %v2431
      %2441 = vmatpush.bf16.msra.mxu0 %v2430
      %2442 = vmatpush.bf16.msra.mxu0 %v2429
      %2443 = vmatpush.bf16.msra.mxu0 %v2428
      %2444 = vmatpush.bf16.msra.mxu0 %v2427
      %2445 = vmatpush.bf16.msra.mxu0 %v2426
      %2446 = vmatpush.bf16.msra.mxu0 %v2425
      %2447 = vmatpush.bf16.msra.mxu0 %v2424
      %2448 = vmatmul.bf16.gmra.mxu0 %v1205
      %v2449 = vpop.f32.mrf.mxu0
      %v2450 = vadd.f32 0.0, %v2449
      %v2451 = vpop.f32.mrf.mxu0
      %v2452 = vadd.f32 0.0, %v2451
      %2453 = vmatmul.bf16.gmra.mxu0 %v1206
      %v2454 = vpop.f32.mrf.mxu0
      %v2455 = vadd.f32 0.0, %v2454
      %v2456 = vpop.f32.mrf.mxu0
      %v2457 = vadd.f32 0.0, %v2456
      %2458 = vmatmul.bf16.gmra.mxu0 %v1207
      %v2459 = vpop.f32.mrf.mxu0
      %v2460 = vadd.f32 0.0, %v2459
      %v2461 = vpop.f32.mrf.mxu0
      %v2462 = vadd.f32 0.0, %v2461
      %2463 = vmatmul.bf16.gmra.mxu0 %v1208
      %v2464 = vpop.f32.mrf.mxu0
      %v2465 = vadd.f32 0.0, %v2464
      %v2466 = vpop.f32.mrf.mxu0
      %v2467 = vadd.f32 0.0, %v2466
      %2468 = vmatmul.bf16.gmra.mxu0 %v1209
      %v2469 = vpop.f32.mrf.mxu0
      %v2470 = vadd.f32 0.0, %v2469
      %v2471 = vpop.f32.mrf.mxu0
      %v2472 = vadd.f32 0.0, %v2471
      %2473 = vmatmul.bf16.gmra.mxu0 %v1210
      %v2474 = vpop.f32.mrf.mxu0
      %v2475 = vadd.f32 0.0, %v2474
      %v2476 = vpop.f32.mrf.mxu0
      %v2477 = vadd.f32 0.0, %v2476
      %2478 = vmatmul.bf16.gmra.mxu0 %v1211
      %v2479 = vpop.f32.mrf.mxu0
      %v2480 = vadd.f32 0.0, %v2479
      %v2481 = vpop.f32.mrf.mxu0
      %v2482 = vadd.f32 0.0, %v2481
      %2483 = vmatmul.bf16.gmra.mxu0 %v1212
      %v2484 = vpop.f32.mrf.mxu0
      %v2485 = vadd.f32 0.0, %v2484
      %v2486 = vpop.f32.mrf.mxu0
      %v2487 = vadd.f32 0.0, %v2486
      %2488 = vmatmul.bf16.gmra.mxu0 %v1213
      %v2489 = vpop.f32.mrf.mxu0
      %v2490 = vadd.f32 0.0, %v2489
      %v2491 = vpop.f32.mrf.mxu0
      %v2492 = vadd.f32 0.0, %v2491
      %2493 = vmatmul.bf16.gmra.mxu0 %v1214
      %v2494 = vpop.f32.mrf.mxu0
      %v2495 = vadd.f32 0.0, %v2494
      %v2496 = vpop.f32.mrf.mxu0
      %v2497 = vadd.f32 0.0, %v2496
      %2498 = vmatmul.bf16.gmra.mxu0 %v1215
      %v2499 = vpop.f32.mrf.mxu0
      %v2500 = vadd.f32 0.0, %v2499
      %v2501 = vpop.f32.mrf.mxu0
      %v2502 = vadd.f32 0.0, %v2501
      %2503 = vmatmul.bf16.gmra.mxu0 %v1216
      %v2504 = vpop.f32.mrf.mxu0
      %v2505 = vadd.f32 0.0, %v2504
      %v2506 = vpop.f32.mrf.mxu0
      %v2507 = vadd.f32 0.0, %v2506
      %2508 = vmatmul.bf16.gmra.mxu0 %v1217
      %v2509 = vpop.f32.mrf.mxu0
      %v2510 = vadd.f32 0.0, %v2509
      %v2511 = vpop.f32.mrf.mxu0
      %v2512 = vadd.f32 0.0, %v2511
      %2513 = vmatmul.bf16.gmra.mxu0 %v1218
      %v2514 = vpop.f32.mrf.mxu0
      %v2515 = vadd.f32 0.0, %v2514
      %v2516 = vpop.f32.mrf.mxu0
      %v2517 = vadd.f32 0.0, %v2516
      %2518 = vmatmul.bf16.gmra.mxu0 %v1796
      %v2519 = vpop.f32.mrf.mxu0
      %v2520 = vadd.f32 0.0, %v2519
      %v2521 = vpop.f32.mrf.mxu0
      %v2522 = vadd.f32 0.0, %v2521
      %2523 = vmatmul.bf16.gmra.mxu0 %v2374
      %v2524 = vpop.f32.mrf.mxu0
      %v2525 = vadd.f32 0.0, %v2524
      %v2526 = vpop.f32.mrf.mxu0
      %v2527 = vadd.f32 0.0, %v2526
      %2528 = vdwg.mxu0
      %v2529 = vadd.f32 %v2335, %v2450
      %v2530 = vadd.f32 %v2336, %v2452
      %v2531 = vadd.f32 %v2337, %v2455
      %v2532 = vadd.f32 %v2338, %v2457
      %v2533 = vadd.f32 %v2339, %v2460
      %v2534 = vadd.f32 %v2340, %v2462
      %v2535 = vadd.f32 %v2341, %v2465
      %v2536 = vadd.f32 %v2342, %v2467
      %v2537 = vadd.f32 %v2343, %v2470
      %v2538 = vadd.f32 %v2344, %v2472
      %v2539 = vadd.f32 %v2345, %v2475
      %v2540 = vadd.f32 %v2346, %v2477
      %v2541 = vadd.f32 %v2347, %v2480
      %v2542 = vadd.f32 %v2348, %v2482
      %v2543 = vadd.f32 %v2349, %v2485
      %v2544 = vadd.f32 %v2350, %v2487
      %v2545 = vadd.f32 %v2351, %v2490
      %v2546 = vadd.f32 %v2352, %v2492
      %v2547 = vadd.f32 %v2353, %v2495
      %v2548 = vadd.f32 %v2354, %v2497
      %v2549 = vadd.f32 %v2355, %v2500
      %v2550 = vadd.f32 %v2356, %v2502
      %v2551 = vadd.f32 %v2357, %v2505
      %v2552 = vadd.f32 %v2358, %v2507
      %v2553 = vadd.f32 %v2359, %v2510
      %v2554 = vadd.f32 %v2360, %v2512
      %v2555 = vadd.f32 %v2361, %v2515
      %v2556 = vadd.f32 %v2362, %v2517
      %v2557 = vadd.f32 %v2363, %v2520
      %v2558 = vadd.f32 %v2364, %v2522
      %v2559 = vadd.f32 %v2365, %v2525
      %v2560 = vadd.f32 %v2366, %v2527
      %v2561 = vpack.c.bf16 %v2529, %v2529
      %v2562 = vpack.c.bf16 %v2530, %v2530
      %v2563 = vpack.c.bf16 %v2531, %v2531
      %v2564 = vpack.c.bf16 %v2532, %v2532
      %v2565 = vpack.c.bf16 %v2533, %v2533
      %v2566 = vpack.c.bf16 %v2534, %v2534
      %v2567 = vpack.c.bf16 %v2535, %v2535
      %v2568 = vpack.c.bf16 %v2536, %v2536
      %v2569 = vpack.c.bf16 %v2537, %v2537
      %v2570 = vpack.c.bf16 %v2538, %v2538
      %v2571 = vpack.c.bf16 %v2539, %v2539
      %v2572 = vpack.c.bf16 %v2540, %v2540
      %v2573 = vpack.c.bf16 %v2541, %v2541
      %v2574 = vpack.c.bf16 %v2542, %v2542
      %v2575 = vpack.c.bf16 %v2543, %v2543
      %v2576 = vpack.c.bf16 %v2544, %v2544
      %v2577 = vpack.c.bf16 %v2545, %v2545
      %v2578 = vpack.c.bf16 %v2546, %v2546
      %v2579 = vpack.c.bf16 %v2547, %v2547
      %v2580 = vpack.c.bf16 %v2548, %v2548
      %v2581 = vpack.c.bf16 %v2549, %v2549
      %v2582 = vpack.c.bf16 %v2550, %v2550
      %v2583 = vpack.c.bf16 %v2551, %v2551
      %v2584 = vpack.c.bf16 %v2552, %v2552
      %v2585 = vpack.c.bf16 %v2553, %v2553
      %v2586 = vpack.c.bf16 %v2554, %v2554
      %v2587 = vpack.c.bf16 %v2555, %v2555
      %v2588 = vpack.c.bf16 %v2556, %v2556
      %v2589 = vpack.c.bf16 %v2557, %v2557
      %v2590 = vpack.c.bf16 %v2558, %v2558
      %v2591 = vpack.c.bf16 %v2559, %v2559
      %v2592 = vpack.c.bf16 %v2560, %v2560
      %2593 = vst [vmem:[%s231] sm:$0xf] %v2561
      %2594 = vst [vmem:[%s231 + $0x4] sm:$0xf] %v2562
      %2595 = vst [vmem:[%s231 + $0x8] sm:$0xf] %v2563
      %2596 = vst [vmem:[%s231 + $0xc] sm:$0xf] %v2564
      %2597 = vst [vmem:[%s231 + $0x10] sm:$0xf] %v2565
      %2598 = vst [vmem:[%s231 + $0x14] sm:$0xf] %v2566
      %2599 = vst [vmem:[%s231 + $0x18] sm:$0xf] %v2567
      %2600 = vst [vmem:[%s231 + $0x1c] sm:$0xf] %v2568
      %2601 = vst [vmem:[%s231 + $0x20] sm:$0xf] %v2569
      %2602 = vst [vmem:[%s231 + $0x24] sm:$0xf] %v2570
      %2603 = vst [vmem:[%s231 + $0x28] sm:$0xf] %v2571
      %2604 = vst [vmem:[%s231 + $0x2c] sm:$0xf] %v2572
      %2605 = vst [vmem:[%s231 + $0x30] sm:$0xf] %v2573
      %2606 = vst [vmem:[%s231 + $0x34] sm:$0xf] %v2574
      %2607 = vst [vmem:[%s231 + $0x38] sm:$0xf] %v2575
      %2608 = vst [vmem:[%s231 + $0x3c] sm:$0xf] %v2576
      %2609 = vst [vmem:[%s231 + $0x40] sm:$0xf] %v2577
      %2610 = vst [vmem:[%s231 + $0x44] sm:$0xf] %v2578
      %2611 = vst [vmem:[%s231 + $0x48] sm:$0xf] %v2579
      %2612 = vst [vmem:[%s231 + $0x4c] sm:$0xf] %v2580
      %2613 = vst [vmem:[%s231 + $0x50] sm:$0xf] %v2581
      %2614 = vst [vmem:[%s231 + $0x54] sm:$0xf] %v2582
      %2615 = vst [vmem:[%s231 + $0x58] sm:$0xf] %v2583
      %2616 = vst [vmem:[%s231 + $0x5c] sm:$0xf] %v2584
      %2617 = vst [vmem:[%s231 + $0x60] sm:$0xf] %v2585
      %2618 = vst [vmem:[%s231 + $0x64] sm:$0xf] %v2586
      %2619 = vst [vmem:[%s231 + $0x68] sm:$0xf] %v2587
      %2620 = vst [vmem:[%s231 + $0x6c] sm:$0xf] %v2588
      %2621 = vst [vmem:[%s231 + $0x70] sm:$0xf] %v2589
      %2622 = vst [vmem:[%s231 + $0x74] sm:$0xf] %v2590
      %2623 = vst [vmem:[%s231 + $0x78] sm:$0xf] %v2591
      %2624 = vst [vmem:[%s231 + $0x7c] sm:$0xf] %v2592
      %v2625 = vadd.f32 %v2529, %v2530
      %v2626 = vadd.f32 %v2625, %v2531
      %v2627 = vadd.f32 %v2626, %v2532
      %v2628 = vadd.f32 %v2627, %v2533
      %v2629 = vadd.f32 %v2628, %v2534
      %v2630 = vadd.f32 %v2629, %v2535
      %v2631 = vadd.f32 %v2630, %v2536
      %v2632 = vadd.f32 %v2631, %v2537
      %v2633 = vadd.f32 %v2632, %v2538
      %v2634 = vadd.f32 %v2633, %v2539
      %v2635 = vadd.f32 %v2634, %v2540
      %v2636 = vadd.f32 %v2635, %v2541
      %v2637 = vadd.f32 %v2636, %v2542
      %v2638 = vadd.f32 %v2637, %v2543
      %v2639 = vadd.f32 %v2638, %v2544
      %v2640 = vadd.f32 %v2639, %v2545
      %v2641 = vadd.f32 %v2640, %v2546
      %v2642 = vadd.f32 %v2641, %v2547
      %v2643 = vadd.f32 %v2642, %v2548
      %v2644 = vadd.f32 %v2643, %v2549
      %v2645 = vadd.f32 %v2644, %v2550
      %v2646 = vadd.f32 %v2645, %v2551
      %v2647 = vadd.f32 %v2646, %v2552
      %v2648 = vadd.f32 %v2647, %v2553
      %v2649 = vadd.f32 %v2648, %v2554
      %v2650 = vadd.f32 %v2649, %v2555
      %v2651 = vadd.f32 %v2650, %v2556
      %v2652 = vadd.f32 %v2651, %v2557
      %v2653 = vadd.f32 %v2652, %v2558
      %v2654 = vadd.f32 %v2653, %v2559
      %v2655 = vadd.f32 %v2654, %v2560
      %v2656 = vrot.slane %v2655, 4
      %v2657 = vadd.f32 %v2655, %v2656
      %v2658 = vrot.slane %v2657, 2
      %v2659 = vadd.f32 %v2657, %v2658
      %v2660 = vrot.slane %v2659, 1
      %v2661 = vadd.f32 %v2659, %v2660
      %v2662 = vmul.f32 %v2529, %v2529
      %v2663 = vmul.f32 %v2530, %v2530
      %v2664 = vmul.f32 %v2531, %v2531
      %v2665 = vmul.f32 %v2532, %v2532
      %v2666 = vmul.f32 %v2533, %v2533
      %v2667 = vmul.f32 %v2534, %v2534
      %v2668 = vmul.f32 %v2535, %v2535
      %v2669 = vmul.f32 %v2536, %v2536
      %v2670 = vmul.f32 %v2537, %v2537
      %v2671 = vmul.f32 %v2538, %v2538
      %v2672 = vmul.f32 %v2539, %v2539
      %v2673 = vmul.f32 %v2540, %v2540
      %v2674 = vmul.f32 %v2541, %v2541
      %v2675 = vmul.f32 %v2542, %v2542
      %v2676 = vmul.f32 %v2543, %v2543
      %v2677 = vmul.f32 %v2544, %v2544
      %v2678 = vmul.f32 %v2545, %v2545
      %v2679 = vmul.f32 %v2546, %v2546
      %v2680 = vmul.f32 %v2547, %v2547
      %v2681 = vmul.f32 %v2548, %v2548
      %v2682 = vmul.f32 %v2549, %v2549
      %v2683 = vmul.f32 %v2550, %v2550
      %v2684 = vmul.f32 %v2551, %v2551
      %v2685 = vmul.f32 %v2552, %v2552
      %v2686 = vmul.f32 %v2553, %v2553
      %v2687 = vmul.f32 %v2554, %v2554
      %v2688 = vmul.f32 %v2555, %v2555
      %v2689 = vmul.f32 %v2556, %v2556
      %v2690 = vmul.f32 %v2557, %v2557
      %v2691 = vmul.f32 %v2558, %v2558
      %v2692 = vmul.f32 %v2559, %v2559
      %v2693 = vmul.f32 %v2560, %v2560
      %v2694 = vadd.f32 %v2662, %v2663
      %v2695 = vadd.f32 %v2694, %v2664
      %v2696 = vadd.f32 %v2695, %v2665
      %v2697 = vadd.f32 %v2696, %v2666
      %v2698 = vadd.f32 %v2697, %v2667
      %v2699 = vadd.f32 %v2698, %v2668
      %v2700 = vadd.f32 %v2699, %v2669
      %v2701 = vadd.f32 %v2700, %v2670
      %v2702 = vadd.f32 %v2701, %v2671
      %v2703 = vadd.f32 %v2702, %v2672
      %v2704 = vadd.f32 %v2703, %v2673
      %v2705 = vadd.f32 %v2704, %v2674
      %v2706 = vadd.f32 %v2705, %v2675
      %v2707 = vadd.f32 %v2706, %v2676
      %v2708 = vadd.f32 %v2707, %v2677
      %v2709 = vadd.f32 %v2708, %v2678
      %v2710 = vadd.f32 %v2709, %v2679
      %v2711 = vadd.f32 %v2710, %v2680
      %v2712 = vadd.f32 %v2711, %v2681
      %v2713 = vadd.f32 %v2712, %v2682
      %v2714 = vadd.f32 %v2713, %v2683
      %v2715 = vadd.f32 %v2714, %v2684
      %v2716 = vadd.f32 %v2715, %v2685
      %v2717 = vadd.f32 %v2716, %v2686
      %v2718 = vadd.f32 %v2717, %v2687
      %v2719 = vadd.f32 %v2718, %v2688
      %v2720 = vadd.f32 %v2719, %v2689
      %v2721 = vadd.f32 %v2720, %v2690
      %v2722 = vadd.f32 %v2721, %v2691
      %v2723 = vadd.f32 %v2722, %v2692
      %v2724 = vadd.f32 %v2723, %v2693
      %v2725 = vrot.slane %v2724, 4
      %v2726 = vadd.f32 %v2724, %v2725
      %v2727 = vrot.slane %v2726, 2
      %v2728 = vadd.f32 %v2726, %v2727
      %v2729 = vrot.slane %v2728, 1
      %v2730 = vadd.f32 %v2728, %v2729
      %vm2731 = vcmask 1040384
      %v2732 = vsel %vm2731, %v2661, %v2730
      %2733 = vst [vmem:[%s235] sm:$0x3] %v2732
      %p2734 = scmp.lt.s32.totalorder %s17, 1
      %s2735 = scalar_select %p2734, %s17, 1
      %s2736 = smul.addr %s2735, 32
      %s2737 = smul.addr %s2736, 4
      %s2738 = scalar_lea.vmem %s4, %s2737
      %p2739 = scmp.lt.s32.totalorder %s17, 1
      %s2740 = scalar_select %p2739, %s17, 1
      %s2741 = smul.addr %s2740, 2
      %s2742 = scalar_lea.vmem %s5, %s2741
      // Predicated region
      $region37: #{_lambda_.5} parent=35 // pred_check
        %p2743 = pneg %p124
      $region38: #{_lambda_.5} parent=35 // pred_check_branch
        %2745 = sbr.rel (%p2743) target = $region40
      $region39: #{_lambda_.5} parent=35 // pred_region
        _
      $region40: #{_lambda_.5} parent=35 // pred_fallthru
        _
      // Predicated region
      $region41: #{_lambda_.5} parent=35 // pred_check
        %p2746 = pneg %p150
      $region42: #{_lambda_.5} parent=35 // pred_check_branch
        %2748 = sbr.rel (%p2746) target = $region44
      $region43: #{_lambda_.5} parent=35 // pred_region
        _
      $region44: #{_lambda_.5} parent=35 // pred_fallthru
        _
    $region36: #{_lambda_.5} parent=5 // pred_fallthru
      _
    %p2749 = scmp.le.s32.totalorder 2, %s12
    // Predicated region
    $region45: #{_lambda_.5} parent=5 // pred_check
      %p2750 = pneg %p2749
    $region46: #{_lambda_.5} parent=5 // pred_check_branch
      %2752 = sbr.rel (%p2750) target = $region48
    $region47: #{_lambda_.5} parent=5 // pred_region
      %s2753 = ssub.s32 %s12, 2
      // Predicated region
      $region49: #{_lambda_.5} parent=47 // pred_check
        %p2754 = pneg %p130
      $region50: #{_lambda_.5} parent=47 // pred_check_branch
        %2756 = sbr.rel (%p2754) target = $region52
      $region51: #{_lambda_.5} parent=47 // pred_region
        %p2757 = scmp.lt.s32.totalorder %s18, 1
        %s2758 = scalar_select %p2757, %s18, 1
        %s2759 = smul.addr %s2758, 32
        %s2760 = smul.addr %s2759, 4
        %s2761 = scalar_lea.vmem %s4, %s2760
      $region52: #{_lambda_.5} parent=47 // pred_fallthru
        _
      // Predicated region
      $region53: #{_lambda_.5} parent=47 // pred_check
        %p2762 = pneg %p156
      $region54: #{_lambda_.5} parent=47 // pred_check_branch
        %2764 = sbr.rel (%p2762) target = $region56
      $region55: #{_lambda_.5} parent=47 // pred_region
        %p2765 = scmp.lt.s32.totalorder %s18, 1
        %s2766 = scalar_select %p2765, %s18, 1
        %s2767 = smul.addr %s2766, 2
        %s2768 = scalar_lea.vmem %s5, %s2767
      $region56: #{_lambda_.5} parent=47 // pred_fallthru
        _
    $region48: #{_lambda_.5} parent=5 // pred_fallthru
      _
  $region6: #{_lambda_.5} parent=0 // loop_footer
    %s16 = sadd.s32 1, %s12
  $region7: #{_lambda_.5} parent=0 // loop_footer_branch
    %11 = sbr.rel target = $region3
  $region8: #{_lambda_.5} parent=0 // loop_exit
    _

</llo_original>
